<compile_context>
chip_gen: v7x
topology: tpu7x:2x2x1
jax: 0.10.0
libtpu: 0.0.40
codegen_flags: <defaults>
</compile_context>

<pallas_src>
import functools
import math

import jax
import jax.numpy as jnp
from jax import lax
from jax.experimental import pallas as pl
from jax.experimental.pallas import tpu as pltpu


def mask_value(epoch, T, v_min=-100.0, v_max=-1e9):
    # Same schedule as the PyTorch helper (epoch 0 -> -100.0).
    return -10.0 ** (math.log10(-v_min) +
                     (math.log10(-v_max) - math.log10(-v_min)) * (epoch / T))


def _mha_kernel(q_ref, k_ref, v_ref,
                wq_ref, bq_ref, wk_ref, bk_ref, wv_ref, bv_ref,
                wo_ref, bo_ref, o_ref,
                *, num_heads, scale, mask_fill):
    f32 = jnp.float32
    bf16 = jnp.bfloat16

    # One batch element per grid step; hidden axis stays last (lane-dense).
    q_in = q_ref[0].astype(bf16)          # (S, H)
    k_in = k_ref[0].astype(bf16)
    v_in = v_ref[0].astype(bf16)
    S, H = q_in.shape
    dk = H // num_heads

    # Fused, full-width projections: (S,H)@(H,H) bf16 operands, f32 accumulation.
    wq = wq_ref[...].astype(bf16)
    wk = wk_ref[...].astype(bf16)
    wv = wv_ref[...].astype(bf16)
    q_all = jnp.dot(q_in, wq, preferred_element_type=f32) + bq_ref[...].astype(f32)
    q_all = (q_all * f32(scale)).astype(bf16)                     # scale pre-scores
    k_all = (jnp.dot(k_in, wk, preferred_element_type=f32)
             + bk_ref[...].astype(f32)).astype(bf16)
    v_all = (jnp.dot(v_in, wv, preferred_element_type=f32)
             + bv_ref[...].astype(f32)).astype(bf16)

    # Strictly-upper-triangular causal mask, filled with the finite epoch value.
    row = lax.broadcasted_iota(jnp.int32, (S, S), 0)
    col = lax.broadcasted_iota(jnp.int32, (S, S), 1)
    causal = col > row

    # Per-head attention with online accumulation of the output projection.
    contract_last = (((1,), (1,)), ((), ()))      # q @ k^T without a kh.T copy
    out_acc = jnp.zeros((S, H), f32)
    # TODO(synk): for long sequences, tile this flash-style (query/key-tile grid
    # axes + online softmax) instead of materializing the full (S, S) score; that
    # also gives v7x's two TensorCores finer-grained parallel work than batch.
    for h in range(num_heads):                    # small compile-time constant
        lo = h * dk
        qh = q_all[:, lo:lo + dk]                 # (S, dk) bf16
        kh = k_all[:, lo:lo + dk]
        vh = v_all[:, lo:lo + dk]

        s = lax.dot_general(qh, kh, contract_last,
                            preferred_element_type=f32)           # (S, S) f32
        s = jnp.where(causal, f32(mask_fill), s)  # finite fill (not -inf)

        m = jnp.max(s, axis=-1, keepdims=True)
        e = jnp.exp(s - m)
        l = jnp.sum(e, axis=-1, keepdims=True)
        # TODO(synk): attention dropout omitted (inference); a train-mode variant
        # would use pltpu.prng_seed / pltpu.prng_random_bits here.

        # Unnormalized context, then normalize the (S, dk) context with an EUP
        # approximate reciprocal (instead of dividing the (S, S) probabilities).
        ctx = jnp.dot(e.astype(bf16), vh, preferred_element_type=f32)
        ctx = ctx * pl.reciprocal(l, approx=True)

        # Per-head output-projection accumulation (no lane-axis concatenate).
        out_acc = out_acc + jnp.dot(ctx.astype(bf16), wo_ref[h].astype(bf16),
                                    preferred_element_type=f32)

    o_ref[0] = (out_acc + bo_ref[...].astype(f32)).astype(o_ref.dtype)


def multi_head_attention(q, k, v, params, *, num_heads, current_epoch=0):
    """q, k, v: (B, S, H). params: weights in (in, out) layout (= torch W^T)."""
    B, S, H = q.shape
    assert H % num_heads == 0
    dk = H // num_heads
    scale = dk ** -0.5
    fill = float(mask_value(current_epoch, 100))

    wq, wk, wv = params["wq"], params["wk"], params["wv"]         # (H, H)
    bq = params["bq"].reshape(1, H)
    bk = params["bk"].reshape(1, H)
    bv = params["bv"].reshape(1, H)
    wo = params["wo"].reshape(num_heads, dk, H)                   # head-major rows
    bo = params["bo"].reshape(1, H)

    kernel = functools.partial(
        _mha_kernel, num_heads=num_heads, scale=scale, mask_fill=fill)

    itemsize = q.dtype.itemsize
    cost = pl.CostEstimate(
        flops=int(B * (8 * S * H * H + 4 * S * S * H)),
        transcendentals=int(B * num_heads * S * (S + 1)),
        bytes_accessed=int(itemsize * 4 * B * S * H + 4 * (4 * H * H + 4 * H)),
    )

    # Explicit VMEM budget: double-buffered q/k/v/out blocks + single-buffered
    # weights/biases + per-step intermediates, 2x headroom, floor 32 MiB,
    # cap 56 MiB (v7x physical VMEM is 64 MiB).
    blk_bytes = S * H * itemsize
    weight_bytes = 4 * H * H * 4 + 4 * H * 4
    interm_bytes = (8 * S * H + 2 * S * S) * 4
    vmem_limit = int(min(56 * 1024 * 1024,
                         max(32 * 1024 * 1024,
                             2 * (8 * blk_bytes + weight_bytes + interm_bytes))))

    def build(single_buffer_weights):
        w_kw = (dict(pipeline_mode=pl.Buffered(1))
                if single_buffer_weights else {})
        qkv_spec = pl.BlockSpec((1, S, H), lambda i: (i, 0, 0))
        w_spec = pl.BlockSpec((H, H), lambda i: (0, 0), **w_kw)
        b_spec = pl.BlockSpec((1, H), lambda i: (0, 0), **w_kw)
        wo_spec = pl.BlockSpec((num_heads, dk, H), lambda i: (0, 0, 0), **w_kw)
        return pl.pallas_call(
            kernel,
            out_shape=jax.ShapeDtypeStruct((B, S, H), q.dtype),
            grid_spec=pltpu.PrefetchScalarGridSpec(
                num_scalar_prefetch=0,
                grid=(B,),
                in_specs=[
                    qkv_spec, qkv_spec, qkv_spec,
                    w_spec, b_spec,          # q projection
                    w_spec, b_spec,          # k projection
                    w_spec, b_spec,          # v projection
                    wo_spec, b_spec,         # output projection
                ],
                out_specs=pl.BlockSpec((1, S, H), lambda i: (i, 0, 0)),
            ),
            compiler_params=pltpu.CompilerParams(
                dimension_semantics=("parallel",),
                vmem_limit_bytes=vmem_limit),
            cost_estimate=cost,
        )

    args = (q, k, v, wq, bq, wk, bk, wv, bv, wo, bo)
    try:
        return build(True)(*args)
    except Exception:
        # Fallback if pipeline_mode=pl.Buffered(1) is unsupported on this build:
        # default double-buffered constant-index weights (correct, more VMEM).
        return build(False)(*args)


def _reference(q, k, v, params, *, num_heads, current_epoch=0,
               mxu_dtype=jnp.float32):
    """Pure-JAX reference; mxu_dtype=bfloat16 mirrors the kernel's MXU operands."""
    B, S, H = q.shape
    dk = H // num_heads
    scale = dk ** -0.5
    fill = mask_value(current_epoch, 100)

    def mm(a, b):
        return jnp.dot(a.astype(mxu_dtype), b.astype(mxu_dtype),
                       preferred_element_type=jnp.float32)

    def proj(x, w, b):
        y = mm(x.reshape(B * S, H), w) + b
        return y.reshape(B, S, num_heads, dk).transpose(0, 2, 1, 3)

    qh = proj(q, params["wq"], params["bq"]) * scale
    kh = proj(k, params["wk"], params["bk"])
    vh = proj(v, params["wv"], params["bv"])
    s = jnp.einsum("bhqd,bhkd->bhqk", qh.astype(mxu_dtype), kh.astype(mxu_dtype),
                   preferred_element_type=jnp.float32)
    causal = jnp.triu(jnp.ones((S, S), dtype=bool), k=1)
    s = jnp.where(causal[None, None], jnp.float32(fill), s)
    p = jax.nn.softmax(s, axis=-1)
    ctx = jnp.einsum("bhqk,bhkd->bhqd", p.astype(mxu_dtype), vh.astype(mxu_dtype),
                     preferred_element_type=jnp.float32)
    ctx = ctx.transpose(0, 2, 1, 3).reshape(B * S, H)
    return (mm(ctx, params["wo"]) + params["bo"]).reshape(B, S, H)


if __name__ == "__main__":
    B, S, H, num_heads = 2, 8, 32, 4    # hidden_size=32, att_size=8

    key = jax.random.PRNGKey(0)
    keys = jax.random.split(key, 11)
    std = 1.0 / math.sqrt(H)

    q = jax.random.normal(keys[0], (B, S, H), dtype=jnp.float32)
    k = jax.random.normal(keys[1], (B, S, H), dtype=jnp.float32)
    v = jax.random.normal(keys[2], (B, S, H), dtype=jnp.float32)

    params = {
        "wq": jax.random.normal(keys[3], (H, H), jnp.float32) * std,
        "bq": jax.random.normal(keys[4], (H,), jnp.float32) * std,
        "wk": jax.random.normal(keys[5], (H, H), jnp.float32) * std,
        "bk": jax.random.normal(keys[6], (H,), jnp.float32) * std,
        "wv": jax.random.normal(keys[7], (H, H), jnp.float32) * std,
        "bv": jax.random.normal(keys[8], (H,), jnp.float32) * std,
        "wo": jax.random.normal(keys[9], (H, H), jnp.float32) * std,
        "bo": jax.random.normal(keys[10], (H,), jnp.float32) * std,
    }

    out = multi_head_attention(q, k, v, params, num_heads=num_heads,
                               current_epoch=0)
    out = jax.block_until_ready(out)
    assert out.shape == (B, S, H)

    # Tight check against a reference that mirrors the kernel's bf16 MXU operands
    # (f32 accumulation, f32 mask/softmax).
    ref_bf16 = _reference(q, k, v, params, num_heads=num_heads,
                          current_epoch=0, mxu_dtype=jnp.bfloat16)
    err_bf16 = float(jnp.max(jnp.abs(out - ref_bf16)))
    assert err_bf16 < 6e-2, ("bf16-matched reference mismatch", err_bf16)

    # Loose structural check against the exact f32 module semantics.
    ref_f32 = _reference(q, k, v, params, num_heads=num_heads,
                         current_epoch=0, mxu_dtype=jnp.float32)
    err_f32 = float(jnp.max(jnp.abs(out - ref_f32)))
    assert err_f32 < 2.5e-1, ("f32 reference mismatch", err_f32)

    print("KERNEL_OK")
</pallas_src>

<mosaic_0001>
module attributes {stable_mosaic.version = 11 : i64} {
  func.func @_mha_kernel(%arg0: i32, %arg1: memref<1x8x32xf32, #tpu.memory_space<vmem>>, %arg2: memref<1x8x32xf32, #tpu.memory_space<vmem>>, %arg3: memref<1x8x32xf32, #tpu.memory_space<vmem>>, %arg4: memref<32x32xf32, #tpu.memory_space<vmem>>, %arg5: memref<1x32xf32, #tpu.memory_space<vmem>>, %arg6: memref<32x32xf32, #tpu.memory_space<vmem>>, %arg7: memref<1x32xf32, #tpu.memory_space<vmem>>, %arg8: memref<32x32xf32, #tpu.memory_space<vmem>>, %arg9: memref<1x32xf32, #tpu.memory_space<vmem>>, %arg10: memref<4x8x32xf32, #tpu.memory_space<vmem>>, %arg11: memref<1x32xf32, #tpu.memory_space<vmem>>, %arg12: memref<1x8x32xf32, #tpu.memory_space<vmem>>) attributes {dimension_semantics = [#tpu.dimension_semantics<parallel>], iteration_bounds = array<i64: 2>, scalar_prefetch = 0 : i64, scratch_operands = 0 : i64, tpu.core_type = #tpu.core_type<tc>, window_params = [{transform_indices = @transform_0, window_bounds = array<i64: 1, 8, 32>}, {transform_indices = @transform_1, window_bounds = array<i64: 1, 8, 32>}, {transform_indices = @transform_2, window_bounds = array<i64: 1, 8, 32>}, {pipeline_mode = #tpu.pipeline_mode<synchronous>, transform_indices = @transform_3, window_bounds = array<i64: 32, 32>}, {pipeline_mode = #tpu.pipeline_mode<synchronous>, transform_indices = @transform_4, window_bounds = array<i64: 1, 32>}, {pipeline_mode = #tpu.pipeline_mode<synchronous>, transform_indices = @transform_5, window_bounds = array<i64: 32, 32>}, {pipeline_mode = #tpu.pipeline_mode<synchronous>, transform_indices = @transform_6, window_bounds = array<i64: 1, 32>}, {pipeline_mode = #tpu.pipeline_mode<synchronous>, transform_indices = @transform_7, window_bounds = array<i64: 32, 32>}, {pipeline_mode = #tpu.pipeline_mode<synchronous>, transform_indices = @transform_8, window_bounds = array<i64: 1, 32>}, {pipeline_mode = #tpu.pipeline_mode<synchronous>, transform_indices = @transform_9, window_bounds = array<i64: 4, 8, 32>}, {pipeline_mode = #tpu.pipeline_mode<synchronous>, transform_indices = @transform_10, window_bounds = array<i64: 1, 32>}, {transform_indices = @transform_11, window_bounds = array<i64: 1, 8, 32>}]} {
    %c0 = arith.constant 0 : index
    %c0_0 = arith.constant 0 : index
    %c0_1 = arith.constant 0 : index
    %0 = vector.load %arg1[%c0, %c0_0, %c0_1] : memref<1x8x32xf32, #tpu.memory_space<vmem>>, vector<1x8x32xf32>
    %1 = vector.shape_cast %0 : vector<1x8x32xf32> to vector<8x32xf32>
    %2 = arith.truncf %1 : vector<8x32xf32> to vector<8x32xbf16>
    %c0_2 = arith.constant 0 : index
    %c0_3 = arith.constant 0 : index
    %c0_4 = arith.constant 0 : index
    %3 = vector.load %arg2[%c0_2, %c0_3, %c0_4] : memref<1x8x32xf32, #tpu.memory_space<vmem>>, vector<1x8x32xf32>
    %4 = vector.shape_cast %3 : vector<1x8x32xf32> to vector<8x32xf32>
    %5 = arith.truncf %4 : vector<8x32xf32> to vector<8x32xbf16>
    %c0_5 = arith.constant 0 : index
    %c0_6 = arith.constant 0 : index
    %c0_7 = arith.constant 0 : index
    %6 = vector.load %arg3[%c0_5, %c0_6, %c0_7] : memref<1x8x32xf32, #tpu.memory_space<vmem>>, vector<1x8x32xf32>
    %7 = vector.shape_cast %6 : vector<1x8x32xf32> to vector<8x32xf32>
    %8 = arith.truncf %7 : vector<8x32xf32> to vector<8x32xbf16>
    %c0_8 = arith.constant 0 : index
    %c0_9 = arith.constant 0 : index
    %9 = vector.load %arg4[%c0_8, %c0_9] : memref<32x32xf32, #tpu.memory_space<vmem>>, vector<32x32xf32>
    %10 = arith.truncf %9 : vector<32x32xf32> to vector<32x32xbf16>
    %c0_10 = arith.constant 0 : index
    %c0_11 = arith.constant 0 : index
    %11 = vector.load %arg6[%c0_10, %c0_11] : memref<32x32xf32, #tpu.memory_space<vmem>>, vector<32x32xf32>
    %12 = arith.truncf %11 : vector<32x32xf32> to vector<32x32xbf16>
    %c0_12 = arith.constant 0 : index
    %c0_13 = arith.constant 0 : index
    %13 = vector.load %arg8[%c0_12, %c0_13] : memref<32x32xf32, #tpu.memory_space<vmem>>, vector<32x32xf32>
    %14 = arith.truncf %13 : vector<32x32xf32> to vector<32x32xbf16>
    %cst = arith.constant dense<0.000000e+00> : vector<8x32xf32>
    %15 = tpu.matmul %2, %10, %cst {dimension_numbers = #tpu.dot_dimension_numbers<[1], [0], [0], [1], [0, 0, 1, 1], [], []>} : vector<8x32xbf16>, vector<32x32xbf16>, vector<8x32xf32> -> vector<8x32xf32>
    %c0_14 = arith.constant 0 : index
    %c0_15 = arith.constant 0 : index
    %16 = vector.load %arg5[%c0_14, %c0_15] : memref<1x32xf32, #tpu.memory_space<vmem>>, vector<1x32xf32>
    %17 = vector.broadcast %16 : vector<1x32xf32> to vector<8x32xf32>
    %18 = arith.addf %15, %17 : vector<8x32xf32>
    %cst_16 = arith.constant 0.353553385 : f32
    %19 = vector.broadcast %cst_16 : f32 to vector<8x32xf32>
    %20 = arith.mulf %18, %19 : vector<8x32xf32>
    %21 = arith.truncf %20 : vector<8x32xf32> to vector<8x32xbf16>
    %cst_17 = arith.constant dense<0.000000e+00> : vector<8x32xf32>
    %22 = tpu.matmul %5, %12, %cst_17 {dimension_numbers = #tpu.dot_dimension_numbers<[1], [0], [0], [1], [0, 0, 1, 1], [], []>} : vector<8x32xbf16>, vector<32x32xbf16>, vector<8x32xf32> -> vector<8x32xf32>
    %c0_18 = arith.constant 0 : index
    %c0_19 = arith.constant 0 : index
    %23 = vector.load %arg7[%c0_18, %c0_19] : memref<1x32xf32, #tpu.memory_space<vmem>>, vector<1x32xf32>
    %24 = vector.broadcast %23 : vector<1x32xf32> to vector<8x32xf32>
    %25 = arith.addf %22, %24 : vector<8x32xf32>
    %26 = arith.truncf %25 : vector<8x32xf32> to vector<8x32xbf16>
    %cst_20 = arith.constant dense<0.000000e+00> : vector<8x32xf32>
    %27 = tpu.matmul %8, %14, %cst_20 {dimension_numbers = #tpu.dot_dimension_numbers<[1], [0], [0], [1], [0, 0, 1, 1], [], []>} : vector<8x32xbf16>, vector<32x32xbf16>, vector<8x32xf32> -> vector<8x32xf32>
    %c0_21 = arith.constant 0 : index
    %c0_22 = arith.constant 0 : index
    %28 = vector.load %arg9[%c0_21, %c0_22] : memref<1x32xf32, #tpu.memory_space<vmem>>, vector<1x32xf32>
    %29 = vector.broadcast %28 : vector<1x32xf32> to vector<8x32xf32>
    %30 = arith.addf %27, %29 : vector<8x32xf32>
    %31 = arith.truncf %30 : vector<8x32xf32> to vector<8x32xbf16>
    %32 = tpu.iota {dimensions = array<i32: 0>} : vector<8x8xi32>
    %33 = tpu.iota {dimensions = array<i32: 1>} : vector<8x8xi32>
    %34 = arith.cmpi sgt, %33, %32 : vector<8x8xi32>
    %cst_23 = arith.constant 0.000000e+00 : f32
    %35 = vector.broadcast %cst_23 : f32 to vector<8x32xf32>
    %36 = vector.extract_strided_slice %21 {offsets = [0, 0], sizes = [8, 8], strides = [1, 1]} : vector<8x32xbf16> to vector<8x8xbf16>
    %37 = vector.extract_strided_slice %26 {offsets = [0, 0], sizes = [8, 8], strides = [1, 1]} : vector<8x32xbf16> to vector<8x8xbf16>
    %38 = vector.extract_strided_slice %31 {offsets = [0, 0], sizes = [8, 8], strides = [1, 1]} : vector<8x32xbf16> to vector<8x8xbf16>
    %cst_24 = arith.constant dense<0.000000e+00> : vector<8x8xf32>
    %39 = tpu.matmul %36, %37, %cst_24 {dimension_numbers = #tpu.dot_dimension_numbers<[1], [1], [0], [0], [0, 0, 1, 0], [], []>} : vector<8x8xbf16>, vector<8x8xbf16>, vector<8x8xf32> -> vector<8x8xf32>
    %cst_25 = arith.constant -1.000000e+02 : f32
    %40 = vector.broadcast %cst_25 : f32 to vector<8x8xf32>
    %41 = arith.select %34, %40, %39 : vector<8x8xi1>, vector<8x8xf32>
    %cst_26 = arith.constant dense<0xFF800000> : vector<8xf32>
    %42 = vector.multi_reduction <maximumf>, %41, %cst_26 [1] : vector<8x8xf32> to vector<8xf32>
    %43 = vector.shape_cast %42 : vector<8xf32> to vector<8x1xf32>
    %44 = vector.broadcast %43 : vector<8x1xf32> to vector<8x8xf32>
    %45 = arith.subf %41, %44 : vector<8x8xf32>
    %46 = math.exp %45 : vector<8x8xf32>
    %cst_27 = arith.constant dense<0.000000e+00> : vector<8xf32>
    %47 = vector.multi_reduction <add>, %46, %cst_27 [1] : vector<8x8xf32> to vector<8xf32>
    %48 = vector.shape_cast %47 : vector<8xf32> to vector<8x1xf32>
    %49 = arith.truncf %46 : vector<8x8xf32> to vector<8x8xbf16>
    %cst_28 = arith.constant dense<0.000000e+00> : vector<8x8xf32>
    %50 = tpu.matmul %49, %38, %cst_28 {dimension_numbers = #tpu.dot_dimension_numbers<[1], [0], [0], [1], [0, 0, 1, 1], [], []>} : vector<8x8xbf16>, vector<8x8xbf16>, vector<8x8xf32> -> vector<8x8xf32>
    %51 = tpu.reciprocal %48 {approx = true} : vector<8x1xf32> -> vector<8x1xf32>
    %52 = vector.broadcast %51 : vector<8x1xf32> to vector<8x8xf32>
    %53 = arith.mulf %50, %52 : vector<8x8xf32>
    %54 = arith.truncf %53 : vector<8x8xf32> to vector<8x8xbf16>
    %c0_29 = arith.constant 0 : index
    %c0_30 = arith.constant 0 : index
    %c0_31 = arith.constant 0 : index
    %55 = vector.load %arg10[%c0_29, %c0_30, %c0_31] : memref<4x8x32xf32, #tpu.memory_space<vmem>>, vector<1x8x32xf32>
    %56 = vector.shape_cast %55 : vector<1x8x32xf32> to vector<8x32xf32>
    %57 = arith.truncf %56 : vector<8x32xf32> to vector<8x32xbf16>
    %cst_32 = arith.constant dense<0.000000e+00> : vector<8x32xf32>
    %58 = tpu.matmul %54, %57, %cst_32 {dimension_numbers = #tpu.dot_dimension_numbers<[1], [0], [0], [1], [0, 0, 1, 1], [], []>} : vector<8x8xbf16>, vector<8x32xbf16>, vector<8x32xf32> -> vector<8x32xf32>
    %59 = arith.addf %35, %58 : vector<8x32xf32>
    %60 = vector.extract_strided_slice %21 {offsets = [0, 8], sizes = [8, 8], strides = [1, 1]} : vector<8x32xbf16> to vector<8x8xbf16>
    %61 = vector.extract_strided_slice %26 {offsets = [0, 8], sizes = [8, 8], strides = [1, 1]} : vector<8x32xbf16> to vector<8x8xbf16>
    %62 = vector.extract_strided_slice %31 {offsets = [0, 8], sizes = [8, 8], strides = [1, 1]} : vector<8x32xbf16> to vector<8x8xbf16>
    %cst_33 = arith.constant dense<0.000000e+00> : vector<8x8xf32>
    %63 = tpu.matmul %60, %61, %cst_33 {dimension_numbers = #tpu.dot_dimension_numbers<[1], [1], [0], [0], [0, 0, 1, 0], [], []>} : vector<8x8xbf16>, vector<8x8xbf16>, vector<8x8xf32> -> vector<8x8xf32>
    %cst_34 = arith.constant -1.000000e+02 : f32
    %64 = vector.broadcast %cst_34 : f32 to vector<8x8xf32>
    %65 = arith.select %34, %64, %63 : vector<8x8xi1>, vector<8x8xf32>
    %cst_35 = arith.constant dense<0xFF800000> : vector<8xf32>
    %66 = vector.multi_reduction <maximumf>, %65, %cst_35 [1] : vector<8x8xf32> to vector<8xf32>
    %67 = vector.shape_cast %66 : vector<8xf32> to vector<8x1xf32>
    %68 = vector.broadcast %67 : vector<8x1xf32> to vector<8x8xf32>
    %69 = arith.subf %65, %68 : vector<8x8xf32>
    %70 = math.exp %69 : vector<8x8xf32>
    %cst_36 = arith.constant dense<0.000000e+00> : vector<8xf32>
    %71 = vector.multi_reduction <add>, %70, %cst_36 [1] : vector<8x8xf32> to vector<8xf32>
    %72 = vector.shape_cast %71 : vector<8xf32> to vector<8x1xf32>
    %73 = arith.truncf %70 : vector<8x8xf32> to vector<8x8xbf16>
    %cst_37 = arith.constant dense<0.000000e+00> : vector<8x8xf32>
    %74 = tpu.matmul %73, %62, %cst_37 {dimension_numbers = #tpu.dot_dimension_numbers<[1], [0], [0], [1], [0, 0, 1, 1], [], []>} : vector<8x8xbf16>, vector<8x8xbf16>, vector<8x8xf32> -> vector<8x8xf32>
    %75 = tpu.reciprocal %72 {approx = true} : vector<8x1xf32> -> vector<8x1xf32>
    %76 = vector.broadcast %75 : vector<8x1xf32> to vector<8x8xf32>
    %77 = arith.mulf %74, %76 : vector<8x8xf32>
    %78 = arith.truncf %77 : vector<8x8xf32> to vector<8x8xbf16>
    %c1 = arith.constant 1 : index
    %c0_38 = arith.constant 0 : index
    %c0_39 = arith.constant 0 : index
    %79 = vector.load %arg10[%c1, %c0_38, %c0_39] : memref<4x8x32xf32, #tpu.memory_space<vmem>>, vector<1x8x32xf32>
    %80 = vector.shape_cast %79 : vector<1x8x32xf32> to vector<8x32xf32>
    %81 = arith.truncf %80 : vector<8x32xf32> to vector<8x32xbf16>
    %cst_40 = arith.constant dense<0.000000e+00> : vector<8x32xf32>
    %82 = tpu.matmul %78, %81, %cst_40 {dimension_numbers = #tpu.dot_dimension_numbers<[1], [0], [0], [1], [0, 0, 1, 1], [], []>} : vector<8x8xbf16>, vector<8x32xbf16>, vector<8x32xf32> -> vector<8x32xf32>
    %83 = arith.addf %59, %82 : vector<8x32xf32>
    %84 = vector.extract_strided_slice %21 {offsets = [0, 16], sizes = [8, 8], strides = [1, 1]} : vector<8x32xbf16> to vector<8x8xbf16>
    %85 = vector.extract_strided_slice %26 {offsets = [0, 16], sizes = [8, 8], strides = [1, 1]} : vector<8x32xbf16> to vector<8x8xbf16>
    %86 = vector.extract_strided_slice %31 {offsets = [0, 16], sizes = [8, 8], strides = [1, 1]} : vector<8x32xbf16> to vector<8x8xbf16>
    %cst_41 = arith.constant dense<0.000000e+00> : vector<8x8xf32>
    %87 = tpu.matmul %84, %85, %cst_41 {dimension_numbers = #tpu.dot_dimension_numbers<[1], [1], [0], [0], [0, 0, 1, 0], [], []>} : vector<8x8xbf16>, vector<8x8xbf16>, vector<8x8xf32> -> vector<8x8xf32>
    %cst_42 = arith.constant -1.000000e+02 : f32
    %88 = vector.broadcast %cst_42 : f32 to vector<8x8xf32>
    %89 = arith.select %34, %88, %87 : vector<8x8xi1>, vector<8x8xf32>
    %cst_43 = arith.constant dense<0xFF800000> : vector<8xf32>
    %90 = vector.multi_reduction <maximumf>, %89, %cst_43 [1] : vector<8x8xf32> to vector<8xf32>
    %91 = vector.shape_cast %90 : vector<8xf32> to vector<8x1xf32>
    %92 = vector.broadcast %91 : vector<8x1xf32> to vector<8x8xf32>
    %93 = arith.subf %89, %92 : vector<8x8xf32>
    %94 = math.exp %93 : vector<8x8xf32>
    %cst_44 = arith.constant dense<0.000000e+00> : vector<8xf32>
    %95 = vector.multi_reduction <add>, %94, %cst_44 [1] : vector<8x8xf32> to vector<8xf32>
    %96 = vector.shape_cast %95 : vector<8xf32> to vector<8x1xf32>
    %97 = arith.truncf %94 : vector<8x8xf32> to vector<8x8xbf16>
    %cst_45 = arith.constant dense<0.000000e+00> : vector<8x8xf32>
    %98 = tpu.matmul %97, %86, %cst_45 {dimension_numbers = #tpu.dot_dimension_numbers<[1], [0], [0], [1], [0, 0, 1, 1], [], []>} : vector<8x8xbf16>, vector<8x8xbf16>, vector<8x8xf32> -> vector<8x8xf32>
    %99 = tpu.reciprocal %96 {approx = true} : vector<8x1xf32> -> vector<8x1xf32>
    %100 = vector.broadcast %99 : vector<8x1xf32> to vector<8x8xf32>
    %101 = arith.mulf %98, %100 : vector<8x8xf32>
    %102 = arith.truncf %101 : vector<8x8xf32> to vector<8x8xbf16>
    %c2 = arith.constant 2 : index
    %c0_46 = arith.constant 0 : index
    %c0_47 = arith.constant 0 : index
    %103 = vector.load %arg10[%c2, %c0_46, %c0_47] : memref<4x8x32xf32, #tpu.memory_space<vmem>>, vector<1x8x32xf32>
    %104 = vector.shape_cast %103 : vector<1x8x32xf32> to vector<8x32xf32>
    %105 = arith.truncf %104 : vector<8x32xf32> to vector<8x32xbf16>
    %cst_48 = arith.constant dense<0.000000e+00> : vector<8x32xf32>
    %106 = tpu.matmul %102, %105, %cst_48 {dimension_numbers = #tpu.dot_dimension_numbers<[1], [0], [0], [1], [0, 0, 1, 1], [], []>} : vector<8x8xbf16>, vector<8x32xbf16>, vector<8x32xf32> -> vector<8x32xf32>
    %107 = arith.addf %83, %106 : vector<8x32xf32>
    %108 = vector.extract_strided_slice %21 {offsets = [0, 24], sizes = [8, 8], strides = [1, 1]} : vector<8x32xbf16> to vector<8x8xbf16>
    %109 = vector.extract_strided_slice %26 {offsets = [0, 24], sizes = [8, 8], strides = [1, 1]} : vector<8x32xbf16> to vector<8x8xbf16>
    %110 = vector.extract_strided_slice %31 {offsets = [0, 24], sizes = [8, 8], strides = [1, 1]} : vector<8x32xbf16> to vector<8x8xbf16>
    %cst_49 = arith.constant dense<0.000000e+00> : vector<8x8xf32>
    %111 = tpu.matmul %108, %109, %cst_49 {dimension_numbers = #tpu.dot_dimension_numbers<[1], [1], [0], [0], [0, 0, 1, 0], [], []>} : vector<8x8xbf16>, vector<8x8xbf16>, vector<8x8xf32> -> vector<8x8xf32>
    %cst_50 = arith.constant -1.000000e+02 : f32
    %112 = vector.broadcast %cst_50 : f32 to vector<8x8xf32>
    %113 = arith.select %34, %112, %111 : vector<8x8xi1>, vector<8x8xf32>
    %cst_51 = arith.constant dense<0xFF800000> : vector<8xf32>
    %114 = vector.multi_reduction <maximumf>, %113, %cst_51 [1] : vector<8x8xf32> to vector<8xf32>
    %115 = vector.shape_cast %114 : vector<8xf32> to vector<8x1xf32>
    %116 = vector.broadcast %115 : vector<8x1xf32> to vector<8x8xf32>
    %117 = arith.subf %113, %116 : vector<8x8xf32>
    %118 = math.exp %117 : vector<8x8xf32>
    %cst_52 = arith.constant dense<0.000000e+00> : vector<8xf32>
    %119 = vector.multi_reduction <add>, %118, %cst_52 [1] : vector<8x8xf32> to vector<8xf32>
    %120 = vector.shape_cast %119 : vector<8xf32> to vector<8x1xf32>
    %121 = arith.truncf %118 : vector<8x8xf32> to vector<8x8xbf16>
    %cst_53 = arith.constant dense<0.000000e+00> : vector<8x8xf32>
    %122 = tpu.matmul %121, %110, %cst_53 {dimension_numbers = #tpu.dot_dimension_numbers<[1], [0], [0], [1], [0, 0, 1, 1], [], []>} : vector<8x8xbf16>, vector<8x8xbf16>, vector<8x8xf32> -> vector<8x8xf32>
    %123 = tpu.reciprocal %120 {approx = true} : vector<8x1xf32> -> vector<8x1xf32>
    %124 = vector.broadcast %123 : vector<8x1xf32> to vector<8x8xf32>
    %125 = arith.mulf %122, %124 : vector<8x8xf32>
    %126 = arith.truncf %125 : vector<8x8xf32> to vector<8x8xbf16>
    %c3 = arith.constant 3 : index
    %c0_54 = arith.constant 0 : index
    %c0_55 = arith.constant 0 : index
    %127 = vector.load %arg10[%c3, %c0_54, %c0_55] : memref<4x8x32xf32, #tpu.memory_space<vmem>>, vector<1x8x32xf32>
    %128 = vector.shape_cast %127 : vector<1x8x32xf32> to vector<8x32xf32>
    %129 = arith.truncf %128 : vector<8x32xf32> to vector<8x32xbf16>
    %cst_56 = arith.constant dense<0.000000e+00> : vector<8x32xf32>
    %130 = tpu.matmul %126, %129, %cst_56 {dimension_numbers = #tpu.dot_dimension_numbers<[1], [0], [0], [1], [0, 0, 1, 1], [], []>} : vector<8x8xbf16>, vector<8x32xbf16>, vector<8x32xf32> -> vector<8x32xf32>
    %131 = arith.addf %107, %130 : vector<8x32xf32>
    %c0_57 = arith.constant 0 : index
    %c0_58 = arith.constant 0 : index
    %132 = vector.load %arg11[%c0_57, %c0_58] : memref<1x32xf32, #tpu.memory_space<vmem>>, vector<1x32xf32>
    %133 = vector.broadcast %132 : vector<1x32xf32> to vector<8x32xf32>
    %134 = arith.addf %131, %133 : vector<8x32xf32>
    %c0_59 = arith.constant 0 : index
    %c0_60 = arith.constant 0 : index
    %c0_61 = arith.constant 0 : index
    %135 = vector.load %arg12[%c0_59, %c0_60, %c0_61] : memref<1x8x32xf32, #tpu.memory_space<vmem>>, vector<1x8x32xf32>
    %136 = vector.shape_cast %135 : vector<1x8x32xf32> to vector<8x32xf32>
    %137 = vector.shape_cast %134 : vector<8x32xf32> to vector<1x8x32xf32>
    tpu.vector_store %arg12[%c0_59, %c0_60, %c0_61], %137 {strides = array<i32>} : memref<1x8x32xf32, #tpu.memory_space<vmem>>, vector<1x8x32xf32>,
    return
  }
  func.func @transform_0(%arg0: i32) -> (i32, i32, i32) {
    %c0_i32 = arith.constant 0 : i32
    %c0_i32_0 = arith.constant 0 : i32
    %c0_i32_1 = arith.constant 0 : i32
    return %arg0, %c0_i32, %c0_i32_0 : i32, i32, i32
  }
  func.func @transform_1(%arg0: i32) -> (i32, i32, i32) {
    %c0_i32 = arith.constant 0 : i32
    %c0_i32_0 = arith.constant 0 : i32
    %c0_i32_1 = arith.constant 0 : i32
    return %arg0, %c0_i32, %c0_i32_0 : i32, i32, i32
  }
  func.func @transform_2(%arg0: i32) -> (i32, i32, i32) {
    %c0_i32 = arith.constant 0 : i32
    %c0_i32_0 = arith.constant 0 : i32
    %c0_i32_1 = arith.constant 0 : i32
    return %arg0, %c0_i32, %c0_i32_0 : i32, i32, i32
  }
  func.func @transform_3(%arg0: i32) -> (i32, i32) {
    %c0_i32 = arith.constant 0 : i32
    %c0_i32_0 = arith.constant 0 : i32
    %c0_i32_1 = arith.constant 0 : i32
    return %c0_i32, %c0_i32_0 : i32, i32
  }
  func.func @transform_4(%arg0: i32) -> (i32, i32) {
    %c0_i32 = arith.constant 0 : i32
    %c0_i32_0 = arith.constant 0 : i32
    %c0_i32_1 = arith.constant 0 : i32
    return %c0_i32, %c0_i32_0 : i32, i32
  }
  func.func @transform_5(%arg0: i32) -> (i32, i32) {
    %c0_i32 = arith.constant 0 : i32
    %c0_i32_0 = arith.constant 0 : i32
    %c0_i32_1 = arith.constant 0 : i32
    return %c0_i32, %c0_i32_0 : i32, i32
  }
  func.func @transform_6(%arg0: i32) -> (i32, i32) {
    %c0_i32 = arith.constant 0 : i32
    %c0_i32_0 = arith.constant 0 : i32
    %c0_i32_1 = arith.constant 0 : i32
    return %c0_i32, %c0_i32_0 : i32, i32
  }
  func.func @transform_7(%arg0: i32) -> (i32, i32) {
    %c0_i32 = arith.constant 0 : i32
    %c0_i32_0 = arith.constant 0 : i32
    %c0_i32_1 = arith.constant 0 : i32
    return %c0_i32, %c0_i32_0 : i32, i32
  }
  func.func @transform_8(%arg0: i32) -> (i32, i32) {
    %c0_i32 = arith.constant 0 : i32
    %c0_i32_0 = arith.constant 0 : i32
    %c0_i32_1 = arith.constant 0 : i32
    return %c0_i32, %c0_i32_0 : i32, i32
  }
  func.func @transform_9(%arg0: i32) -> (i32, i32, i32) {
    %c0_i32 = arith.constant 0 : i32
    %c0_i32_0 = arith.constant 0 : i32
    %c0_i32_1 = arith.constant 0 : i32
    %c0_i32_2 = arith.constant 0 : i32
    return %c0_i32, %c0_i32_0, %c0_i32_1 : i32, i32, i32
  }
  func.func @transform_10(%arg0: i32) -> (i32, i32) {
    %c0_i32 = arith.constant 0 : i32
    %c0_i32_0 = arith.constant 0 : i32
    %c0_i32_1 = arith.constant 0 : i32
    return %c0_i32, %c0_i32_0 : i32, i32
  }
  func.func @transform_11(%arg0: i32) -> (i32, i32, i32) {
    %c0_i32 = arith.constant 0 : i32
    %c0_i32_0 = arith.constant 0 : i32
    %c0_i32_1 = arith.constant 0 : i32
    return %arg0, %c0_i32, %c0_i32_0 : i32, i32, i32
  }
}

module attributes {stable_mosaic.version = 11 : i64} {
  func.func @_mha_kernel(%arg0: i32, %arg1: memref<1x8x32xf32, #tpu.memory_space<vmem>>, %arg2: memref<1x8x32xf32, #tpu.memory_space<vmem>>, %arg3: memref<1x8x32xf32, #tpu.memory_space<vmem>>, %arg4: memref<32x32xf32, #tpu.memory_space<vmem>>, %arg5: memref<1x32xf32, #tpu.memory_space<vmem>>, %arg6: memref<32x32xf32, #tpu.memory_space<vmem>>, %arg7: memref<1x32xf32, #tpu.memory_space<vmem>>, %arg8: memref<32x32xf32, #tpu.memory_space<vmem>>, %arg9: memref<1x32xf32, #tpu.memory_space<vmem>>, %arg10: memref<4x8x32xf32, #tpu.memory_space<vmem>>, %arg11: memref<1x32xf32, #tpu.memory_space<vmem>>, %arg12: memref<1x8x32xf32, #tpu.memory_space<vmem>>) attributes {dimension_semantics = [#tpu.dimension_semantics<parallel>], iteration_bounds = array<i64: 2>, scalar_prefetch = 0 : i64, scratch_operands = 0 : i64, tpu.core_type = #tpu.core_type<tc>, window_params = [{transform_indices = @transform_0, window_bounds = array<i64: 1, 8, 32>}, {transform_indices = @transform_1, window_bounds = array<i64: 1, 8, 32>}, {transform_indices = @transform_2, window_bounds = array<i64: 1, 8, 32>}, {pipeline_mode = #tpu.pipeline_mode<synchronous>, transform_indices = @transform_3, window_bounds = array<i64: 32, 32>}, {pipeline_mode = #tpu.pipeline_mode<synchronous>, transform_indices = @transform_4, window_bounds = array<i64: 1, 32>}, {pipeline_mode = #tpu.pipeline_mode<synchronous>, transform_indices = @transform_5, window_bounds = array<i64: 32, 32>}, {pipeline_mode = #tpu.pipeline_mode<synchronous>, transform_indices = @transform_6, window_bounds = array<i64: 1, 32>}, {pipeline_mode = #tpu.pipeline_mode<synchronous>, transform_indices = @transform_7, window_bounds = array<i64: 32, 32>}, {pipeline_mode = #tpu.pipeline_mode<synchronous>, transform_indices = @transform_8, window_bounds = array<i64: 1, 32>}, {pipeline_mode = #tpu.pipeline_mode<synchronous>, transform_indices = @transform_9, window_bounds = array<i64: 4, 8, 32>}, {pipeline_mode = #tpu.pipeline_mode<synchronous>, transform_indices = @transform_10, window_bounds = array<i64: 1, 32>}, {transform_indices = @transform_11, window_bounds = array<i64: 1, 8, 32>}]} {
    %c0 = arith.constant 0 : index
    %c0_0 = arith.constant 0 : index
    %c0_1 = arith.constant 0 : index
    %0 = vector.load %arg1[%c0, %c0_0, %c0_1] : memref<1x8x32xf32, #tpu.memory_space<vmem>>, vector<1x8x32xf32>
    %1 = vector.shape_cast %0 : vector<1x8x32xf32> to vector<8x32xf32>
    %2 = arith.truncf %1 : vector<8x32xf32> to vector<8x32xbf16>
    %c0_2 = arith.constant 0 : index
    %c0_3 = arith.constant 0 : index
    %c0_4 = arith.constant 0 : index
    %3 = vector.load %arg2[%c0_2, %c0_3, %c0_4] : memref<1x8x32xf32, #tpu.memory_space<vmem>>, vector<1x8x32xf32>
    %4 = vector.shape_cast %3 : vector<1x8x32xf32> to vector<8x32xf32>
    %5 = arith.truncf %4 : vector<8x32xf32> to vector<8x32xbf16>
    %c0_5 = arith.constant 0 : index
    %c0_6 = arith.constant 0 : index
    %c0_7 = arith.constant 0 : index
    %6 = vector.load %arg3[%c0_5, %c0_6, %c0_7] : memref<1x8x32xf32, #tpu.memory_space<vmem>>, vector<1x8x32xf32>
    %7 = vector.shape_cast %6 : vector<1x8x32xf32> to vector<8x32xf32>
    %8 = arith.truncf %7 : vector<8x32xf32> to vector<8x32xbf16>
    %c0_8 = arith.constant 0 : index
    %c0_9 = arith.constant 0 : index
    %9 = vector.load %arg4[%c0_8, %c0_9] : memref<32x32xf32, #tpu.memory_space<vmem>>, vector<32x32xf32>
    %10 = arith.truncf %9 : vector<32x32xf32> to vector<32x32xbf16>
    %c0_10 = arith.constant 0 : index
    %c0_11 = arith.constant 0 : index
    %11 = vector.load %arg6[%c0_10, %c0_11] : memref<32x32xf32, #tpu.memory_space<vmem>>, vector<32x32xf32>
    %12 = arith.truncf %11 : vector<32x32xf32> to vector<32x32xbf16>
    %c0_12 = arith.constant 0 : index
    %c0_13 = arith.constant 0 : index
    %13 = vector.load %arg8[%c0_12, %c0_13] : memref<32x32xf32, #tpu.memory_space<vmem>>, vector<32x32xf32>
    %14 = arith.truncf %13 : vector<32x32xf32> to vector<32x32xbf16>
    %cst = arith.constant dense<0.000000e+00> : vector<8x32xf32>
    %15 = tpu.matmul %2, %10, %cst {dimension_numbers = #tpu.dot_dimension_numbers<[1], [0], [0], [1], [0, 0, 1, 1], [], []>} : vector<8x32xbf16>, vector<32x32xbf16>, vector<8x32xf32> -> vector<8x32xf32>
    %c0_14 = arith.constant 0 : index
    %c0_15 = arith.constant 0 : index
    %16 = vector.load %arg5[%c0_14, %c0_15] : memref<1x32xf32, #tpu.memory_space<vmem>>, vector<1x32xf32>
    %17 = vector.broadcast %16 : vector<1x32xf32> to vector<8x32xf32>
    %18 = arith.addf %15, %17 : vector<8x32xf32>
    %cst_16 = arith.constant 0.353553385 : f32
    %19 = vector.broadcast %cst_16 : f32 to vector<8x32xf32>
    %20 = arith.mulf %18, %19 : vector<8x32xf32>
    %21 = arith.truncf %20 : vector<8x32xf32> to vector<8x32xbf16>
    %cst_17 = arith.constant dense<0.000000e+00> : vector<8x32xf32>
    %22 = tpu.matmul %5, %12, %cst_17 {dimension_numbers = #tpu.dot_dimension_numbers<[1], [0], [0], [1], [0, 0, 1, 1], [], []>} : vector<8x32xbf16>, vector<32x32xbf16>, vector<8x32xf32> -> vector<8x32xf32>
    %c0_18 = arith.constant 0 : index
    %c0_19 = arith.constant 0 : index
    %23 = vector.load %arg7[%c0_18, %c0_19] : memref<1x32xf32, #tpu.memory_space<vmem>>, vector<1x32xf32>
    %24 = vector.broadcast %23 : vector<1x32xf32> to vector<8x32xf32>
    %25 = arith.addf %22, %24 : vector<8x32xf32>
    %26 = arith.truncf %25 : vector<8x32xf32> to vector<8x32xbf16>
    %cst_20 = arith.constant dense<0.000000e+00> : vector<8x32xf32>
    %27 = tpu.matmul %8, %14, %cst_20 {dimension_numbers = #tpu.dot_dimension_numbers<[1], [0], [0], [1], [0, 0, 1, 1], [], []>} : vector<8x32xbf16>, vector<32x32xbf16>, vector<8x32xf32> -> vector<8x32xf32>
    %c0_21 = arith.constant 0 : index
    %c0_22 = arith.constant 0 : index
    %28 = vector.load %arg9[%c0_21, %c0_22] : memref<1x32xf32, #tpu.memory_space<vmem>>, vector<1x32xf32>
    %29 = vector.broadcast %28 : vector<1x32xf32> to vector<8x32xf32>
    %30 = arith.addf %27, %29 : vector<8x32xf32>
    %31 = arith.truncf %30 : vector<8x32xf32> to vector<8x32xbf16>
    %32 = tpu.iota {dimensions = array<i32: 0>} : vector<8x8xi32>
    %33 = tpu.iota {dimensions = array<i32: 1>} : vector<8x8xi32>
    %34 = arith.cmpi sgt, %33, %32 : vector<8x8xi32>
    %cst_23 = arith.constant 0.000000e+00 : f32
    %35 = vector.broadcast %cst_23 : f32 to vector<8x32xf32>
    %36 = vector.extract_strided_slice %21 {offsets = [0, 0], sizes = [8, 8], strides = [1, 1]} : vector<8x32xbf16> to vector<8x8xbf16>
    %37 = vector.extract_strided_slice %26 {offsets = [0, 0], sizes = [8, 8], strides = [1, 1]} : vector<8x32xbf16> to vector<8x8xbf16>
    %38 = vector.extract_strided_slice %31 {offsets = [0, 0], sizes = [8, 8], strides = [1, 1]} : vector<8x32xbf16> to vector<8x8xbf16>
    %cst_24 = arith.constant dense<0.000000e+00> : vector<8x8xf32>
    %39 = tpu.matmul %36, %37, %cst_24 {dimension_numbers = #tpu.dot_dimension_numbers<[1], [1], [0], [0], [0, 0, 1, 0], [], []>} : vector<8x8xbf16>, vector<8x8xbf16>, vector<8x8xf32> -> vector<8x8xf32>
    %cst_25 = arith.constant -1.000000e+02 : f32
    %40 = vector.broadcast %cst_25 : f32 to vector<8x8xf32>
    %41 = arith.select %34, %40, %39 : vector<8x8xi1>, vector<8x8xf32>
    %cst_26 = arith.constant dense<0xFF800000> : vector<8xf32>
    %42 = vector.multi_reduction <maximumf>, %41, %cst_26 [1] : vector<8x8xf32> to vector<8xf32>
    %43 = vector.shape_cast %42 : vector<8xf32> to vector<8x1xf32>
    %44 = vector.broadcast %43 : vector<8x1xf32> to vector<8x8xf32>
    %45 = arith.subf %41, %44 : vector<8x8xf32>
    %46 = math.exp %45 : vector<8x8xf32>
    %cst_27 = arith.constant dense<0.000000e+00> : vector<8xf32>
    %47 = vector.multi_reduction <add>, %46, %cst_27 [1] : vector<8x8xf32> to vector<8xf32>
    %48 = vector.shape_cast %47 : vector<8xf32> to vector<8x1xf32>
    %49 = arith.truncf %46 : vector<8x8xf32> to vector<8x8xbf16>
    %cst_28 = arith.constant dense<0.000000e+00> : vector<8x8xf32>
    %50 = tpu.matmul %49, %38, %cst_28 {dimension_numbers = #tpu.dot_dimension_numbers<[1], [0], [0], [1], [0, 0, 1, 1], [], []>} : vector<8x8xbf16>, vector<8x8xbf16>, vector<8x8xf32> -> vector<8x8xf32>
    %51 = tpu.reciprocal %48 {approx = true} : vector<8x1xf32> -> vector<8x1xf32>
    %52 = vector.broadcast %51 : vector<8x1xf32> to vector<8x8xf32>
    %53 = arith.mulf %50, %52 : vector<8x8xf32>
    %54 = arith.truncf %53 : vector<8x8xf32> to vector<8x8xbf16>
    %c0_29 = arith.constant 0 : index
    %c0_30 = arith.constant 0 : index
    %c0_31 = arith.constant 0 : index
    %55 = vector.load %arg10[%c0_29, %c0_30, %c0_31] : memref<4x8x32xf32, #tpu.memory_space<vmem>>, vector<1x8x32xf32>
    %56 = vector.shape_cast %55 : vector<1x8x32xf32> to vector<8x32xf32>
    %57 = arith.truncf %56 : vector<8x32xf32> to vector<8x32xbf16>
    %cst_32 = arith.constant dense<0.000000e+00> : vector<8x32xf32>
    %58 = tpu.matmul %54, %57, %cst_32 {dimension_numbers = #tpu.dot_dimension_numbers<[1], [0], [0], [1], [0, 0, 1, 1], [], []>} : vector<8x8xbf16>, vector<8x32xbf16>, vector<8x32xf32> -> vector<8x32xf32>
    %59 = arith.addf %35, %58 : vector<8x32xf32>
    %60 = vector.extract_strided_slice %21 {offsets = [0, 8], sizes = [8, 8], strides = [1, 1]} : vector<8x32xbf16> to vector<8x8xbf16>
    %61 = vector.extract_strided_slice %26 {offsets = [0, 8], sizes = [8, 8], strides = [1, 1]} : vector<8x32xbf16> to vector<8x8xbf16>
    %62 = vector.extract_strided_slice %31 {offsets = [0, 8], sizes = [8, 8], strides = [1, 1]} : vector<8x32xbf16> to vector<8x8xbf16>
    %cst_33 = arith.constant dense<0.000000e+00> : vector<8x8xf32>
    %63 = tpu.matmul %60, %61, %cst_33 {dimension_numbers = #tpu.dot_dimension_numbers<[1], [1], [0], [0], [0, 0, 1, 0], [], []>} : vector<8x8xbf16>, vector<8x8xbf16>, vector<8x8xf32> -> vector<8x8xf32>
    %cst_34 = arith.constant -1.000000e+02 : f32
    %64 = vector.broadcast %cst_34 : f32 to vector<8x8xf32>
    %65 = arith.select %34, %64, %63 : vector<8x8xi1>, vector<8x8xf32>
    %cst_35 = arith.constant dense<0xFF800000> : vector<8xf32>
    %66 = vector.multi_reduction <maximumf>, %65, %cst_35 [1] : vector<8x8xf32> to vector<8xf32>
    %67 = vector.shape_cast %66 : vector<8xf32> to vector<8x1xf32>
    %68 = vector.broadcast %67 : vector<8x1xf32> to vector<8x8xf32>
    %69 = arith.subf %65, %68 : vector<8x8xf32>
    %70 = math.exp %69 : vector<8x8xf32>
    %cst_36 = arith.constant dense<0.000000e+00> : vector<8xf32>
    %71 = vector.multi_reduction <add>, %70, %cst_36 [1] : vector<8x8xf32> to vector<8xf32>
    %72 = vector.shape_cast %71 : vector<8xf32> to vector<8x1xf32>
    %73 = arith.truncf %70 : vector<8x8xf32> to vector<8x8xbf16>
    %cst_37 = arith.constant dense<0.000000e+00> : vector<8x8xf32>
    %74 = tpu.matmul %73, %62, %cst_37 {dimension_numbers = #tpu.dot_dimension_numbers<[1], [0], [0], [1], [0, 0, 1, 1], [], []>} : vector<8x8xbf16>, vector<8x8xbf16>, vector<8x8xf32> -> vector<8x8xf32>
    %75 = tpu.reciprocal %72 {approx = true} : vector<8x1xf32> -> vector<8x1xf32>
    %76 = vector.broadcast %75 : vector<8x1xf32> to vector<8x8xf32>
    %77 = arith.mulf %74, %76 : vector<8x8xf32>
    %78 = arith.truncf %77 : vector<8x8xf32> to vector<8x8xbf16>
    %c1 = arith.constant 1 : index
    %c0_38 = arith.constant 0 : index
    %c0_39 = arith.constant 0 : index
    %79 = vector.load %arg10[%c1, %c0_38, %c0_39] : memref<4x8x32xf32, #tpu.memory_space<vmem>>, vector<1x8x32xf32>
    %80 = vector.shape_cast %79 : vector<1x8x32xf32> to vector<8x32xf32>
    %81 = arith.truncf %80 : vector<8x32xf32> to vector<8x32xbf16>
    %cst_40 = arith.constant dense<0.000000e+00> : vector<8x32xf32>
    %82 = tpu.matmul %78, %81, %cst_40 {dimension_numbers = #tpu.dot_dimension_numbers<[1], [0], [0], [1], [0, 0, 1, 1], [], []>} : vector<8x8xbf16>, vector<8x32xbf16>, vector<8x32xf32> -> vector<8x32xf32>
    %83 = arith.addf %59, %82 : vector<8x32xf32>
    %84 = vector.extract_strided_slice %21 {offsets = [0, 16], sizes = [8, 8], strides = [1, 1]} : vector<8x32xbf16> to vector<8x8xbf16>
    %85 = vector.extract_strided_slice %26 {offsets = [0, 16], sizes = [8, 8], strides = [1, 1]} : vector<8x32xbf16> to vector<8x8xbf16>
    %86 = vector.extract_strided_slice %31 {offsets = [0, 16], sizes = [8, 8], strides = [1, 1]} : vector<8x32xbf16> to vector<8x8xbf16>
    %cst_41 = arith.constant dense<0.000000e+00> : vector<8x8xf32>
    %87 = tpu.matmul %84, %85, %cst_41 {dimension_numbers = #tpu.dot_dimension_numbers<[1], [1], [0], [0], [0, 0, 1, 0], [], []>} : vector<8x8xbf16>, vector<8x8xbf16>, vector<8x8xf32> -> vector<8x8xf32>
    %cst_42 = arith.constant -1.000000e+02 : f32
    %88 = vector.broadcast %cst_42 : f32 to vector<8x8xf32>
    %89 = arith.select %34, %88, %87 : vector<8x8xi1>, vector<8x8xf32>
    %cst_43 = arith.constant dense<0xFF800000> : vector<8xf32>
    %90 = vector.multi_reduction <maximumf>, %89, %cst_43 [1] : vector<8x8xf32> to vector<8xf32>
    %91 = vector.shape_cast %90 : vector<8xf32> to vector<8x1xf32>
    %92 = vector.broadcast %91 : vector<8x1xf32> to vector<8x8xf32>
    %93 = arith.subf %89, %92 : vector<8x8xf32>
    %94 = math.exp %93 : vector<8x8xf32>
    %cst_44 = arith.constant dense<0.000000e+00> : vector<8xf32>
    %95 = vector.multi_reduction <add>, %94, %cst_44 [1] : vector<8x8xf32> to vector<8xf32>
    %96 = vector.shape_cast %95 : vector<8xf32> to vector<8x1xf32>
    %97 = arith.truncf %94 : vector<8x8xf32> to vector<8x8xbf16>
    %cst_45 = arith.constant dense<0.000000e+00> : vector<8x8xf32>
    %98 = tpu.matmul %97, %86, %cst_45 {dimension_numbers = #tpu.dot_dimension_numbers<[1], [0], [0], [1], [0, 0, 1, 1], [], []>} : vector<8x8xbf16>, vector<8x8xbf16>, vector<8x8xf32> -> vector<8x8xf32>
    %99 = tpu.reciprocal %96 {approx = true} : vector<8x1xf32> -> vector<8x1xf32>
    %100 = vector.broadcast %99 : vector<8x1xf32> to vector<8x8xf32>
    %101 = arith.mulf %98, %100 : vector<8x8xf32>
    %102 = arith.truncf %101 : vector<8x8xf32> to vector<8x8xbf16>
    %c2 = arith.constant 2 : index
    %c0_46 = arith.constant 0 : index
    %c0_47 = arith.constant 0 : index
    %103 = vector.load %arg10[%c2, %c0_46, %c0_47] : memref<4x8x32xf32, #tpu.memory_space<vmem>>, vector<1x8x32xf32>
    %104 = vector.shape_cast %103 : vector<1x8x32xf32> to vector<8x32xf32>
    %105 = arith.truncf %104 : vector<8x32xf32> to vector<8x32xbf16>
    %cst_48 = arith.constant dense<0.000000e+00> : vector<8x32xf32>
    %106 = tpu.matmul %102, %105, %cst_48 {dimension_numbers = #tpu.dot_dimension_numbers<[1], [0], [0], [1], [0, 0, 1, 1], [], []>} : vector<8x8xbf16>, vector<8x32xbf16>, vector<8x32xf32> -> vector<8x32xf32>
    %107 = arith.addf %83, %106 : vector<8x32xf32>
    %108 = vector.extract_strided_slice %21 {offsets = [0, 24], sizes = [8, 8], strides = [1, 1]} : vector<8x32xbf16> to vector<8x8xbf16>
    %109 = vector.extract_strided_slice %26 {offsets = [0, 24], sizes = [8, 8], strides = [1, 1]} : vector<8x32xbf16> to vector<8x8xbf16>
    %110 = vector.extract_strided_slice %31 {offsets = [0, 24], sizes = [8, 8], strides = [1, 1]} : vector<8x32xbf16> to vector<8x8xbf16>
    %cst_49 = arith.constant dense<0.000000e+00> : vector<8x8xf32>
    %111 = tpu.matmul %108, %109, %cst_49 {dimension_numbers = #tpu.dot_dimension_numbers<[1], [1], [0], [0], [0, 0, 1, 0], [], []>} : vector<8x8xbf16>, vector<8x8xbf16>, vector<8x8xf32> -> vector<8x8xf32>
    %cst_50 = arith.constant -1.000000e+02 : f32
    %112 = vector.broadcast %cst_50 : f32 to vector<8x8xf32>
    %113 = arith.select %34, %112, %111 : vector<8x8xi1>, vector<8x8xf32>
    %cst_51 = arith.constant dense<0xFF800000> : vector<8xf32>
    %114 = vector.multi_reduction <maximumf>, %113, %cst_51 [1] : vector<8x8xf32> to vector<8xf32>
    %115 = vector.shape_cast %114 : vector<8xf32> to vector<8x1xf32>
    %116 = vector.broadcast %115 : vector<8x1xf32> to vector<8x8xf32>
    %117 = arith.subf %113, %116 : vector<8x8xf32>
    %118 = math.exp %117 : vector<8x8xf32>
    %cst_52 = arith.constant dense<0.000000e+00> : vector<8xf32>
    %119 = vector.multi_reduction <add>, %118, %cst_52 [1] : vector<8x8xf32> to vector<8xf32>
    %120 = vector.shape_cast %119 : vector<8xf32> to vector<8x1xf32>
    %121 = arith.truncf %118 : vector<8x8xf32> to vector<8x8xbf16>
    %cst_53 = arith.constant dense<0.000000e+00> : vector<8x8xf32>
    %122 = tpu.matmul %121, %110, %cst_53 {dimension_numbers = #tpu.dot_dimension_numbers<[1], [0], [0], [1], [0, 0, 1, 1], [], []>} : vector<8x8xbf16>, vector<8x8xbf16>, vector<8x8xf32> -> vector<8x8xf32>
    %123 = tpu.reciprocal %120 {approx = true} : vector<8x1xf32> -> vector<8x1xf32>
    %124 = vector.broadcast %123 : vector<8x1xf32> to vector<8x8xf32>
    %125 = arith.mulf %122, %124 : vector<8x8xf32>
    %126 = arith.truncf %125 : vector<8x8xf32> to vector<8x8xbf16>
    %c3 = arith.constant 3 : index
    %c0_54 = arith.constant 0 : index
    %c0_55 = arith.constant 0 : index
    %127 = vector.load %arg10[%c3, %c0_54, %c0_55] : memref<4x8x32xf32, #tpu.memory_space<vmem>>, vector<1x8x32xf32>
    %128 = vector.shape_cast %127 : vector<1x8x32xf32> to vector<8x32xf32>
    %129 = arith.truncf %128 : vector<8x32xf32> to vector<8x32xbf16>
    %cst_56 = arith.constant dense<0.000000e+00> : vector<8x32xf32>
    %130 = tpu.matmul %126, %129, %cst_56 {dimension_numbers = #tpu.dot_dimension_numbers<[1], [0], [0], [1], [0, 0, 1, 1], [], []>} : vector<8x8xbf16>, vector<8x32xbf16>, vector<8x32xf32> -> vector<8x32xf32>
    %131 = arith.addf %107, %130 : vector<8x32xf32>
    %c0_57 = arith.constant 0 : index
    %c0_58 = arith.constant 0 : index
    %132 = vector.load %arg11[%c0_57, %c0_58] : memref<1x32xf32, #tpu.memory_space<vmem>>, vector<1x32xf32>
    %133 = vector.broadcast %132 : vector<1x32xf32> to vector<8x32xf32>
    %134 = arith.addf %131, %133 : vector<8x32xf32>
    %c0_59 = arith.constant 0 : index
    %c0_60 = arith.constant 0 : index
    %c0_61 = arith.constant 0 : index
    %135 = vector.load %arg12[%c0_59, %c0_60, %c0_61] : memref<1x8x32xf32, #tpu.memory_space<vmem>>, vector<1x8x32xf32>
    %136 = vector.shape_cast %135 : vector<1x8x32xf32> to vector<8x32xf32>
    %137 = vector.shape_cast %134 : vector<8x32xf32> to vector<1x8x32xf32>
    tpu.vector_store %arg12[%c0_59, %c0_60, %c0_61], %137 {strides = array<i32>} : memref<1x8x32xf32, #tpu.memory_space<vmem>>, vector<1x8x32xf32>,
    return
  }
  func.func @transform_0(%arg0: i32) -> (i32, i32, i32) {
    %c0_i32 = arith.constant 0 : i32
    %c0_i32_0 = arith.constant 0 : i32
    %c0_i32_1 = arith.constant 0 : i32
    return %arg0, %c0_i32, %c0_i32_0 : i32, i32, i32
  }
  func.func @transform_1(%arg0: i32) -> (i32, i32, i32) {
    %c0_i32 = arith.constant 0 : i32
    %c0_i32_0 = arith.constant 0 : i32
    %c0_i32_1 = arith.constant 0 : i32
    return %arg0, %c0_i32, %c0_i32_0 : i32, i32, i32
  }
  func.func @transform_2(%arg0: i32) -> (i32, i32, i32) {
    %c0_i32 = arith.constant 0 : i32
    %c0_i32_0 = arith.constant 0 : i32
    %c0_i32_1 = arith.constant 0 : i32
    return %arg0, %c0_i32, %c0_i32_0 : i32, i32, i32
  }
  func.func @transform_3(%arg0: i32) -> (i32, i32) {
    %c0_i32 = arith.constant 0 : i32
    %c0_i32_0 = arith.constant 0 : i32
    %c0_i32_1 = arith.constant 0 : i32
    return %c0_i32, %c0_i32_0 : i32, i32
  }
  func.func @transform_4(%arg0: i32) -> (i32, i32) {
    %c0_i32 = arith.constant 0 : i32
    %c0_i32_0 = arith.constant 0 : i32
    %c0_i32_1 = arith.constant 0 : i32
    return %c0_i32, %c0_i32_0 : i32, i32
  }
  func.func @transform_5(%arg0: i32) -> (i32, i32) {
    %c0_i32 = arith.constant 0 : i32
    %c0_i32_0 = arith.constant 0 : i32
    %c0_i32_1 = arith.constant 0 : i32
    return %c0_i32, %c0_i32_0 : i32, i32
  }
  func.func @transform_6(%arg0: i32) -> (i32, i32) {
    %c0_i32 = arith.constant 0 : i32
    %c0_i32_0 = arith.constant 0 : i32
    %c0_i32_1 = arith.constant 0 : i32
    return %c0_i32, %c0_i32_0 : i32, i32
  }
  func.func @transform_7(%arg0: i32) -> (i32, i32) {
    %c0_i32 = arith.constant 0 : i32
    %c0_i32_0 = arith.constant 0 : i32
    %c0_i32_1 = arith.constant 0 : i32
    return %c0_i32, %c0_i32_0 : i32, i32
  }
  func.func @transform_8(%arg0: i32) -> (i32, i32) {
    %c0_i32 = arith.constant 0 : i32
    %c0_i32_0 = arith.constant 0 : i32
    %c0_i32_1 = arith.constant 0 : i32
    return %c0_i32, %c0_i32_0 : i32, i32
  }
  func.func @transform_9(%arg0: i32) -> (i32, i32, i32) {
    %c0_i32 = arith.constant 0 : i32
    %c0_i32_0 = arith.constant 0 : i32
    %c0_i32_1 = arith.constant 0 : i32
    %c0_i32_2 = arith.constant 0 : i32
    return %c0_i32, %c0_i32_0, %c0_i32_1 : i32, i32, i32
  }
  func.func @transform_10(%arg0: i32) -> (i32, i32) {
    %c0_i32 = arith.constant 0 : i32
    %c0_i32_0 = arith.constant 0 : i32
    %c0_i32_1 = arith.constant 0 : i32
    return %c0_i32, %c0_i32_0 : i32, i32
  }
  func.func @transform_11(%arg0: i32) -> (i32, i32, i32) {
    %c0_i32 = arith.constant 0 : i32
    %c0_i32_0 = arith.constant 0 : i32
    %c0_i32_1 = arith.constant 0 : i32
    return %arg0, %c0_i32, %c0_i32_0 : i32, i32, i32
  }
}

</mosaic_0001>

<llo_original>
// kernel: tpu_custom_call.1
$region0: #{tpu_custom_call.1}
  #allocation0 [shape = 'u32[]', space=smem, size = 0x4, offset = 0x4, fixed_abs, tag = 'smem constant byte address 0x4 - core index']
  #allocation1 [shape = 'u32[144,128]{1,0:T(1,128)}', space=vmem, size = 0x12000, scoped, tag = 'internal scratch']
  %s0 = inlined_call_operand.hbm [shape: f32[2,8,32], index: 0, kind: input, shape index: {}]
  %s1 = inlined_call_operand.hbm [shape: f32[2,8,32], index: 1, kind: input, shape index: {}]
  %s2 = inlined_call_operand.hbm [shape: f32[2,8,32], index: 2, kind: input, shape index: {}]
  %s3 = inlined_call_operand.hbm [shape: f32[32,32], index: 3, kind: input, shape index: {}]
  %s4 = inlined_call_operand.vmem [shape: f32[1,32], index: 4, kind: input, shape index: {}]
  %s5 = inlined_call_operand.hbm [shape: f32[32,32], index: 5, kind: input, shape index: {}]
  %s6 = inlined_call_operand.vmem [shape: f32[1,32], index: 6, kind: input, shape index: {}]
  %s7 = inlined_call_operand.hbm [shape: f32[32,32], index: 7, kind: input, shape index: {}]
  %s8 = inlined_call_operand.hbm [shape: f32[1,32], index: 8, kind: input, shape index: {}]
  %s9 = inlined_call_operand.vmem [shape: f32[4,8,32], index: 9, kind: input, shape index: {}]
  %s10 = inlined_call_operand.vmem [shape: f32[1,32], index: 10, kind: input, shape index: {}]
  %s11 = inlined_call_operand.hbm [shape: f32[2,8,32], index: 11, kind: output, shape index: {}]
  %s12 = sld [smem:[#allocation0]]
  $region105: #{tpu_custom_call.1} parent=0
    _
  %s14 = ssub.s32 1, %s12
  %s15 = scalar_select 0, %s14, %s12
  $region1: #{tpu_custom_call.1} parent=0
    #allocation2 [shape = 'u8[8192]{0}', space=vmem, size = 0x2000, scoped, tag = 'input window, operand 0']
    #allocation3 [shape = 's32[2]{0}', space=sflag, size = 0x8, scoped, tag = 'scoped memory for tpu_custom_call.1']
    #allocation4 [shape = 's32[2]{0}', space=sflag, size = 0x8, scoped, tag = 'scoped memory for tpu_custom_call.1']
    #allocation5 [shape = 'u8[8192]{0}', space=vmem, size = 0x2000, scoped, tag = 'input window, operand 1']
    #allocation6 [shape = 's32[2]{0}', space=sflag, size = 0x8, scoped, tag = 'scoped memory for tpu_custom_call.1']
    #allocation7 [shape = 'u8[8192]{0}', space=vmem, size = 0x2000, scoped, tag = 'input window, operand 2']
    #allocation8 [shape = 'u8[16384]{0}', space=vmem, size = 0x4000, scoped, tag = 'input window, operand 3, single buffered']
    #allocation9 [shape = 's32[1]{0}', space=sflag, size = 0x4, scoped, tag = 'scoped memory for tpu_custom_call.1']
    #allocation10 [shape = 'u8[16384]{0}', space=vmem, size = 0x4000, scoped, tag = 'input window, operand 5, single buffered']
    #allocation11 [shape = 'u8[16384]{0}', space=vmem, size = 0x4000, scoped, tag = 'input window, operand 7, single buffered']
    #allocation12 [shape = 's32[1]{0}', space=sflag, size = 0x4, scoped, tag = 'scoped memory for tpu_custom_call.1']
    #allocation13 [shape = 'u8[512]{0}', space=vmem, size = 0x400, scoped, tag = 'input window, operand 8, single buffered']
    #allocation14 [shape = 'u8[8192]{0}', space=vmem, size = 0x2000, scoped, tag = 'output window, operand 0']
    %16 = vsyncpa [#allocation3], 0
    %s17 = scalar_lea.sflag [#allocation3], 1
    %18 = vsyncpa %s17, 0
    %19 = vsyncpa [#allocation6], 0
    %s20 = scalar_lea.sflag [#allocation6], 1
    %21 = vsyncpa %s20, 0
    %22 = vsyncpa [#allocation9], 0
    %23 = vsyncpa [#allocation12], 0
    %24 = vsyncpa [#allocation4], 0
    %s25 = scalar_lea.sflag [#allocation4], 1
    %26 = vsyncpa %s25, 0
    loop: start=0, step=1, limit=4
    $region2: #{tpu_custom_call.1} parent=1 // loop_pre_header
      _
    $region3: #{tpu_custom_call.1} parent=1 // loop_header
      %s28 = sphi 0, %s32
      %p29 = scmp.ge.s32.totalorder %s28, 4
      %s38 = sphi 0, %s40
      %s41 = sphi 0, %s38
      %s42 = sphi 0, %s41
      %s58 = sphi 0, %s42
      %s64 = sphi 0, %s66
      %s67 = sphi 0, %s64
      %s68 = sphi 0, %s67
      %s84 = sphi 0, %s68
      %s90 = sphi 0, %s92
      %s93 = sphi 0, %s90
      %s94 = sphi 0, %s93
      %s110 = sphi 0, %s94
      %s114 = sphi 0, %s114
      %s116 = sphi 0, %s114
      %s117 = sphi 0, %s116
      %s131 = sphi 0, %s117
      %s135 = sphi 0, %s135
      %s137 = sphi 0, %s135
      %s138 = sphi 0, %s137
      %s152 = sphi 0, %s138
      %s156 = sphi 0, %s156
      %s158 = sphi 0, %s156
      %s159 = sphi 0, %s158
      %s173 = sphi 0, %s159
      %s177 = sphi 0, %s177
      %s179 = sphi 0, %s177
      %s180 = sphi 0, %s179
      %s194 = sphi 0, %s180
      %s198 = sphi 0, %s198
      %s200 = sphi 0, %s198
      %s201 = sphi 0, %s200
      %s215 = sphi 0, %s201
      %s219 = sphi 0, %s219
      %s221 = sphi 0, %s219
      %s222 = sphi 0, %s221
      %s236 = sphi 0, %s222
      %s240 = sphi 0, %s240
      %s242 = sphi 0, %s240
      %s243 = sphi 0, %s242
      %s257 = sphi 0, %s243
      %s261 = sphi 0, %s261
      %s263 = sphi 0, %s261
      %s264 = sphi 0, %s263
      %s278 = sphi 0, %s264
      %s284 = sphi 0, %s286
      %s287 = sphi 0, %s284
      %s288 = sphi 0, %s287
      %s304 = sphi 0, %s288
    $region4: #{tpu_custom_call.1} parent=1 // loop_header_branch
      %31 = sbr.rel (%p29) target = $region8
    $region5: #{tpu_custom_call.1} parent=1 // loop_body
      %s33 = ssub.s32 %s28, 1
      %s34 = ssub.s32 %s28, 2
      %s35 = sadd.s32 %s28, 1
      %s36 = ssub.s32 %s28, %s35
      %p37 = scmp.eq.s32.totalorder %s36, 0
      %s39 = sadd.s32 %s38, 1
      %s40 = scalar_select %p37, %s38, %s39
      %p43 = pneg %p37
      %p44 = scmp.eq.s32.totalorder %s28, 1
      %p45 = por %p43, %p44
      %p46 = scmp.ne.s32.totalorder %s38, %s41
      %p47 = scmp.eq.s32.totalorder %s28, 0
      %p48 = por %p46, %p47
      %p49 = scmp.ne.s32.totalorder %s38, %s41
      %p50 = scmp.eq.s32.totalorder %s33, 1
      %p51 = por %p49, %p50
      %p52 = scmp.ne.s32.totalorder %s41, %s42
      %p53 = scmp.eq.s32.totalorder %s33, 0
      %p54 = por %p52, %p53
      %p55 = scmp.ne.s32.totalorder %s41, %s42
      %p56 = scmp.eq.s32.totalorder %s34, 1
      %p57 = por %p55, %p56
      %p59 = scmp.ne.s32.totalorder %s42, %s58
      %p60 = scmp.eq.s32.totalorder %s34, 0
      %p61 = por %p59, %p60
      %s62 = ssub.s32 %s28, %s35
      %p63 = scmp.eq.s32.totalorder %s62, 0
      %s65 = sadd.s32 %s64, 1
      %s66 = scalar_select %p63, %s64, %s65
      %p69 = pneg %p63
      %p70 = scmp.eq.s32.totalorder %s28, 1
      %p71 = por %p69, %p70
      %p72 = scmp.ne.s32.totalorder %s64, %s67
      %p73 = scmp.eq.s32.totalorder %s28, 0
      %p74 = por %p72, %p73
      %p75 = scmp.ne.s32.totalorder %s64, %s67
      %p76 = scmp.eq.s32.totalorder %s33, 1
      %p77 = por %p75, %p76
      %p78 = scmp.ne.s32.totalorder %s67, %s68
      %p79 = scmp.eq.s32.totalorder %s33, 0
      %p80 = por %p78, %p79
      %p81 = scmp.ne.s32.totalorder %s67, %s68
      %p82 = scmp.eq.s32.totalorder %s34, 1
      %p83 = por %p81, %p82
      %p85 = scmp.ne.s32.totalorder %s68, %s84
      %p86 = scmp.eq.s32.totalorder %s34, 0
      %p87 = por %p85, %p86
      %s88 = ssub.s32 %s28, %s35
      %p89 = scmp.eq.s32.totalorder %s88, 0
      %s91 = sadd.s32 %s90, 1
      %s92 = scalar_select %p89, %s90, %s91
      %p95 = pneg %p89
      %p96 = scmp.eq.s32.totalorder %s28, 1
      %p97 = por %p95, %p96
      %p98 = scmp.ne.s32.totalorder %s90, %s93
      %p99 = scmp.eq.s32.totalorder %s28, 0
      %p100 = por %p98, %p99
      %p101 = scmp.ne.s32.totalorder %s90, %s93
      %p102 = scmp.eq.s32.totalorder %s33, 1
      %p103 = por %p101, %p102
      %p104 = scmp.ne.s32.totalorder %s93, %s94
      %p105 = scmp.eq.s32.totalorder %s33, 0
      %p106 = por %p104, %p105
      %p107 = scmp.ne.s32.totalorder %s93, %s94
      %p108 = scmp.eq.s32.totalorder %s34, 1
      %p109 = por %p107, %p108
      %p111 = scmp.ne.s32.totalorder %s94, %s110
      %p112 = scmp.eq.s32.totalorder %s34, 0
      %p113 = por %p111, %p112
      %s115 = sadd.s32 %s114, 1
      %p118 = scmp.eq.s32.totalorder %s28, 1
      %p119 = scmp.ne.s32.totalorder %s114, %s116
      %p120 = scmp.eq.s32.totalorder %s28, 0
      %p121 = por %p119, %p120
      %p122 = scmp.ne.s32.totalorder %s114, %s116
      %p123 = scmp.eq.s32.totalorder %s33, 1
      %p124 = por %p122, %p123
      %p125 = scmp.ne.s32.totalorder %s116, %s117
      %p126 = scmp.eq.s32.totalorder %s33, 0
      %p127 = por %p125, %p126
      %p128 = scmp.ne.s32.totalorder %s116, %s117
      %p129 = scmp.eq.s32.totalorder %s34, 1
      %p130 = por %p128, %p129
      %p132 = scmp.ne.s32.totalorder %s117, %s131
      %p133 = scmp.eq.s32.totalorder %s34, 0
      %p134 = por %p132, %p133
      %s136 = sadd.s32 %s135, 1
      %p139 = scmp.eq.s32.totalorder %s28, 1
      %p140 = scmp.ne.s32.totalorder %s135, %s137
      %p141 = scmp.eq.s32.totalorder %s28, 0
      %p142 = por %p140, %p141
      %p143 = scmp.ne.s32.totalorder %s135, %s137
      %p144 = scmp.eq.s32.totalorder %s33, 1
      %p145 = por %p143, %p144
      %p146 = scmp.ne.s32.totalorder %s137, %s138
      %p147 = scmp.eq.s32.totalorder %s33, 0
      %p148 = por %p146, %p147
      %p149 = scmp.ne.s32.totalorder %s137, %s138
      %p150 = scmp.eq.s32.totalorder %s34, 1
      %p151 = por %p149, %p150
      %p153 = scmp.ne.s32.totalorder %s138, %s152
      %p154 = scmp.eq.s32.totalorder %s34, 0
      %p155 = por %p153, %p154
      %s157 = sadd.s32 %s156, 1
      %p160 = scmp.eq.s32.totalorder %s28, 1
      %p161 = scmp.ne.s32.totalorder %s156, %s158
      %p162 = scmp.eq.s32.totalorder %s28, 0
      %p163 = por %p161, %p162
      %p164 = scmp.ne.s32.totalorder %s156, %s158
      %p165 = scmp.eq.s32.totalorder %s33, 1
      %p166 = por %p164, %p165
      %p167 = scmp.ne.s32.totalorder %s158, %s159
      %p168 = scmp.eq.s32.totalorder %s33, 0
      %p169 = por %p167, %p168
      %p170 = scmp.ne.s32.totalorder %s158, %s159
      %p171 = scmp.eq.s32.totalorder %s34, 1
      %p172 = por %p170, %p171
      %p174 = scmp.ne.s32.totalorder %s159, %s173
      %p175 = scmp.eq.s32.totalorder %s34, 0
      %p176 = por %p174, %p175
      %s178 = sadd.s32 %s177, 1
      %p181 = scmp.eq.s32.totalorder %s28, 1
      %p182 = scmp.ne.s32.totalorder %s177, %s179
      %p183 = scmp.eq.s32.totalorder %s28, 0
      %p184 = por %p182, %p183
      %p185 = scmp.ne.s32.totalorder %s177, %s179
      %p186 = scmp.eq.s32.totalorder %s33, 1
      %p187 = por %p185, %p186
      %p188 = scmp.ne.s32.totalorder %s179, %s180
      %p189 = scmp.eq.s32.totalorder %s33, 0
      %p190 = por %p188, %p189
      %p191 = scmp.ne.s32.totalorder %s179, %s180
      %p192 = scmp.eq.s32.totalorder %s34, 1
      %p193 = por %p191, %p192
      %p195 = scmp.ne.s32.totalorder %s180, %s194
      %p196 = scmp.eq.s32.totalorder %s34, 0
      %p197 = por %p195, %p196
      %s199 = sadd.s32 %s198, 1
      %p202 = scmp.eq.s32.totalorder %s28, 1
      %p203 = scmp.ne.s32.totalorder %s198, %s200
      %p204 = scmp.eq.s32.totalorder %s28, 0
      %p205 = por %p203, %p204
      %p206 = scmp.ne.s32.totalorder %s198, %s200
      %p207 = scmp.eq.s32.totalorder %s33, 1
      %p208 = por %p206, %p207
      %p209 = scmp.ne.s32.totalorder %s200, %s201
      %p210 = scmp.eq.s32.totalorder %s33, 0
      %p211 = por %p209, %p210
      %p212 = scmp.ne.s32.totalorder %s200, %s201
      %p213 = scmp.eq.s32.totalorder %s34, 1
      %p214 = por %p212, %p213
      %p216 = scmp.ne.s32.totalorder %s201, %s215
      %p217 = scmp.eq.s32.totalorder %s34, 0
      %p218 = por %p216, %p217
      %s220 = sadd.s32 %s219, 1
      %p223 = scmp.eq.s32.totalorder %s28, 1
      %p224 = scmp.ne.s32.totalorder %s219, %s221
      %p225 = scmp.eq.s32.totalorder %s28, 0
      %p226 = por %p224, %p225
      %p227 = scmp.ne.s32.totalorder %s219, %s221
      %p228 = scmp.eq.s32.totalorder %s33, 1
      %p229 = por %p227, %p228
      %p230 = scmp.ne.s32.totalorder %s221, %s222
      %p231 = scmp.eq.s32.totalorder %s33, 0
      %p232 = por %p230, %p231
      %p233 = scmp.ne.s32.totalorder %s221, %s222
      %p234 = scmp.eq.s32.totalorder %s34, 1
      %p235 = por %p233, %p234
      %p237 = scmp.ne.s32.totalorder %s222, %s236
      %p238 = scmp.eq.s32.totalorder %s34, 0
      %p239 = por %p237, %p238
      %s241 = sadd.s32 %s240, 1
      %p244 = scmp.eq.s32.totalorder %s28, 1
      %p245 = scmp.ne.s32.totalorder %s240, %s242
      %p246 = scmp.eq.s32.totalorder %s28, 0
      %p247 = por %p245, %p246
      %p248 = scmp.ne.s32.totalorder %s240, %s242
      %p249 = scmp.eq.s32.totalorder %s33, 1
      %p250 = por %p248, %p249
      %p251 = scmp.ne.s32.totalorder %s242, %s243
      %p252 = scmp.eq.s32.totalorder %s33, 0
      %p253 = por %p251, %p252
      %p254 = scmp.ne.s32.totalorder %s242, %s243
      %p255 = scmp.eq.s32.totalorder %s34, 1
      %p256 = por %p254, %p255
      %p258 = scmp.ne.s32.totalorder %s243, %s257
      %p259 = scmp.eq.s32.totalorder %s34, 0
      %p260 = por %p258, %p259
      %s262 = sadd.s32 %s261, 1
      %p265 = scmp.eq.s32.totalorder %s28, 1
      %p266 = scmp.ne.s32.totalorder %s261, %s263
      %p267 = scmp.eq.s32.totalorder %s28, 0
      %p268 = por %p266, %p267
      %p269 = scmp.ne.s32.totalorder %s261, %s263
      %p270 = scmp.eq.s32.totalorder %s33, 1
      %p271 = por %p269, %p270
      %p272 = scmp.ne.s32.totalorder %s263, %s264
      %p273 = scmp.eq.s32.totalorder %s33, 0
      %p274 = por %p272, %p273
      %p275 = scmp.ne.s32.totalorder %s263, %s264
      %p276 = scmp.eq.s32.totalorder %s34, 1
      %p277 = por %p275, %p276
      %p279 = scmp.ne.s32.totalorder %s264, %s278
      %p280 = scmp.eq.s32.totalorder %s34, 0
      %p281 = por %p279, %p280
      %s282 = ssub.s32 %s28, %s35
      %p283 = scmp.eq.s32.totalorder %s282, 0
      %s285 = sadd.s32 %s284, 1
      %s286 = scalar_select %p283, %s284, %s285
      %p289 = pneg %p283
      %p290 = scmp.eq.s32.totalorder %s28, 1
      %p291 = por %p289, %p290
      %p292 = scmp.ne.s32.totalorder %s284, %s287
      %p293 = scmp.eq.s32.totalorder %s28, 0
      %p294 = por %p292, %p293
      %p295 = scmp.ne.s32.totalorder %s284, %s287
      %p296 = scmp.eq.s32.totalorder %s33, 1
      %p297 = por %p295, %p296
      %p298 = scmp.ne.s32.totalorder %s287, %s288
      %p299 = scmp.eq.s32.totalorder %s33, 0
      %p300 = por %p298, %p299
      %p301 = scmp.ne.s32.totalorder %s287, %s288
      %p302 = scmp.eq.s32.totalorder %s34, 1
      %p303 = por %p301, %p302
      %p305 = scmp.ne.s32.totalorder %s288, %s304
      %p306 = scmp.eq.s32.totalorder %s34, 0
      %p307 = por %p305, %p306
      %p308 = scmp.le.s32.totalorder 1, %s28
      %p309 = scmp.lt.s32.totalorder %s28, 3
      %p310 = pnand %p308, %p309
      %p311 = pneg %p310
      // Predicated region
      $region9: #{tpu_custom_call.1} parent=5 // pred_check
        _
      $region10: #{tpu_custom_call.1} parent=5 // pred_check_branch
        %313 = sbr.rel (%p310) target = $region12
      $region11: #{tpu_custom_call.1} parent=5 // pred_region
        %s314 = ssub.s32 %s28, 1
        // Predicated region
        $region13: #{tpu_custom_call.1} parent=11 // pred_check
          %p315 = pneg %p127
        $region14: #{tpu_custom_call.1} parent=11 // pred_check_branch
          %317 = sbr.rel (%p315) target = $region16
        $region15: #{tpu_custom_call.1} parent=11 // pred_region
          %s319 = ssub.s32 512, 512
          %320 = vsyncadd [#allocation9], %s319
          %s321 = sshll.u32 [#allocation8], 4
          %s322 = int_to_ptr.vmem [resolvable:$true] %s321
          %327 = dma.hbm_to_vmem [thread:$0]  %s3, 512, %s322, [#allocation9], 128, 128, 8
        $region16: #{tpu_custom_call.1} parent=11 // pred_fallthru
          _
        // Predicated region
        $region17: #{tpu_custom_call.1} parent=11 // pred_check
          %p328 = pneg %p148
        $region18: #{tpu_custom_call.1} parent=11 // pred_check_branch
          %330 = sbr.rel (%p328) target = $region20
        $region19: #{tpu_custom_call.1} parent=11 // pred_region
          _
        $region20: #{tpu_custom_call.1} parent=11 // pred_fallthru
          _
        // Predicated region
        $region21: #{tpu_custom_call.1} parent=11 // pred_check
          %p331 = pneg %p169
        $region22: #{tpu_custom_call.1} parent=11 // pred_check_branch
          %333 = sbr.rel (%p331) target = $region24
        $region23: #{tpu_custom_call.1} parent=11 // pred_region
          %s335 = ssub.s32 512, 512
          %336 = vsyncadd [#allocation9], %s335
          %s337 = sshll.u32 [#allocation10], 4
          %s338 = int_to_ptr.vmem [resolvable:$true] %s337
          %343 = dma.hbm_to_vmem [thread:$0]  %s5, 512, %s338, [#allocation9], 128, 128, 8
        $region24: #{tpu_custom_call.1} parent=11 // pred_fallthru
          _
        // Predicated region
        $region25: #{tpu_custom_call.1} parent=11 // pred_check
          %p344 = pneg %p190
        $region26: #{tpu_custom_call.1} parent=11 // pred_check_branch
          %346 = sbr.rel (%p344) target = $region28
        $region27: #{tpu_custom_call.1} parent=11 // pred_region
          _
        $region28: #{tpu_custom_call.1} parent=11 // pred_fallthru
          _
        // Predicated region
        $region29: #{tpu_custom_call.1} parent=11 // pred_check
          %p347 = pneg %p211
        $region30: #{tpu_custom_call.1} parent=11 // pred_check_branch
          %349 = sbr.rel (%p347) target = $region32
        $region31: #{tpu_custom_call.1} parent=11 // pred_region
          %s351 = ssub.s32 512, 512
          %352 = vsyncadd [#allocation12], %s351
          %s353 = sshll.u32 [#allocation11], 4
          %s354 = int_to_ptr.vmem [resolvable:$true] %s353
          %359 = dma.hbm_to_vmem [thread:$0]  %s7, 512, %s354, [#allocation12], 128, 128, 8
        $region32: #{tpu_custom_call.1} parent=11 // pred_fallthru
          _
        // Predicated region
        $region33: #{tpu_custom_call.1} parent=11 // pred_check
          %p360 = pneg %p232
        $region34: #{tpu_custom_call.1} parent=11 // pred_check_branch
          %362 = sbr.rel (%p360) target = $region36
        $region35: #{tpu_custom_call.1} parent=11 // pred_region
          %s364 = ssub.s32 16, 16
          %365 = vsyncadd [#allocation12], %s364
          %s367 = sshll.u32 [#allocation13], 4
          %s368 = int_to_ptr.vmem [resolvable:$true] %s367
          %370 = dma.hbm_to_vmem [thread:$0]  %s8, 16, %s368, [#allocation12]
        $region36: #{tpu_custom_call.1} parent=11 // pred_fallthru
          _
        // Predicated region
        $region37: #{tpu_custom_call.1} parent=11 // pred_check
          %p371 = pneg %p253
        $region38: #{tpu_custom_call.1} parent=11 // pred_check_branch
          %373 = sbr.rel (%p371) target = $region40
        $region39: #{tpu_custom_call.1} parent=11 // pred_region
          _
        $region40: #{tpu_custom_call.1} parent=11 // pred_fallthru
          _
        // Predicated region
        $region41: #{tpu_custom_call.1} parent=11 // pred_check
          %p374 = pneg %p274
        $region42: #{tpu_custom_call.1} parent=11 // pred_check_branch
          %376 = sbr.rel (%p374) target = $region44
        $region43: #{tpu_custom_call.1} parent=11 // pred_region
          _
        $region44: #{tpu_custom_call.1} parent=11 // pred_fallthru
          _
      $region12: #{tpu_custom_call.1} parent=5 // pred_fallthru
        _
      %p377 = scmp.lt.s32.totalorder %s28, 2
      // Predicated region
      $region45: #{tpu_custom_call.1} parent=5 // pred_check
        %p378 = pneg %p377
      $region46: #{tpu_custom_call.1} parent=5 // pred_check_branch
        %380 = sbr.rel (%p378) target = $region48
      $region47: #{tpu_custom_call.1} parent=5 // pred_region
        // Predicated region
        $region49: #{tpu_custom_call.1} parent=47 // pred_check
          %p381 = pneg %p48
        $region50: #{tpu_custom_call.1} parent=47 // pred_check_branch
          %383 = sbr.rel (%p381) target = $region52
        $region51: #{tpu_custom_call.1} parent=47 // pred_region
          %s384 = sand.u32 %s38, 1
          %s385 = scalar_lea.sflag [#allocation3], %s384
          %s386 = sand.u32 %s38, 1
          %s387 = smul.addr %s386, 8
          %s388 = scalar_lea.vmem [#allocation2], %s387
          %s390 = ssub.s32 128, 128
          %391 = vsyncadd %s385, %s390
          %s392 = smul.addr %s28, 128
          %s393 = scalar_lea.hbm %s0, %s392
          %s395 = sshll.u32 %s388, 4
          %s396 = int_to_ptr.vmem [resolvable:$true] %s395
          %398 = dma.hbm_to_vmem [thread:$0]  %s393, 128, %s396, %s385
        $region52: #{tpu_custom_call.1} parent=47 // pred_fallthru
          _
        // Predicated region
        $region53: #{tpu_custom_call.1} parent=47 // pred_check
          %p399 = pneg %p74
        $region54: #{tpu_custom_call.1} parent=47 // pred_check_branch
          %401 = sbr.rel (%p399) target = $region56
        $region55: #{tpu_custom_call.1} parent=47 // pred_region
          %s402 = sand.u32 %s28, 1
          %s403 = scalar_lea.sflag [#allocation6], %s402
          %s404 = sand.u32 %s64, 1
          %s405 = smul.addr %s404, 8
          %s406 = scalar_lea.vmem [#allocation5], %s405
          %s408 = ssub.s32 128, 128
          %409 = vsyncadd %s403, %s408
          %s410 = smul.addr %s28, 128
          %s411 = scalar_lea.hbm %s1, %s410
          %s413 = sshll.u32 %s406, 4
          %s414 = int_to_ptr.vmem [resolvable:$true] %s413
          %416 = dma.hbm_to_vmem [thread:$0]  %s411, 128, %s414, %s403
        $region56: #{tpu_custom_call.1} parent=47 // pred_fallthru
          _
        // Predicated region
        $region57: #{tpu_custom_call.1} parent=47 // pred_check
          %p417 = pneg %p100
        $region58: #{tpu_custom_call.1} parent=47 // pred_check_branch
          %419 = sbr.rel (%p417) target = $region60
        $region59: #{tpu_custom_call.1} parent=47 // pred_region
          %s420 = sand.u32 %s28, 1
          %s421 = scalar_lea.sflag [#allocation6], %s420
          %s422 = sand.u32 %s90, 1
          %s423 = smul.addr %s422, 8
          %s424 = scalar_lea.vmem [#allocation7], %s423
          %s426 = ssub.s32 128, 128
          %427 = vsyncadd %s421, %s426
          %s428 = smul.addr %s28, 128
          %s429 = scalar_lea.hbm %s2, %s428
          %s431 = sshll.u32 %s424, 4
          %s432 = int_to_ptr.vmem [resolvable:$true] %s431
          %434 = dma.hbm_to_vmem [thread:$0]  %s429, 128, %s432, %s421
        $region60: #{tpu_custom_call.1} parent=47 // pred_fallthru
          _
      $region48: #{tpu_custom_call.1} parent=5 // pred_fallthru
        _
      %p435 = scmp.le.s32.totalorder 1, %s28
      %p436 = scmp.lt.s32.totalorder %s28, 3
      %p437 = pnand %p435, %p436
      %p438 = pneg %p437
      // Predicated region
      $region61: #{tpu_custom_call.1} parent=5 // pred_check
        _
      $region62: #{tpu_custom_call.1} parent=5 // pred_check_branch
        %440 = sbr.rel (%p437) target = $region64
      $region63: #{tpu_custom_call.1} parent=5 // pred_region
        %s441 = ssub.s32 %s28, 1
        %s442 = sand.u32 %s41, 1
        %s443 = scalar_lea.sflag [#allocation3], %s442
        %s444 = sand.u32 %s41, 1
        %s445 = smul.addr %s444, 8
        %s446 = scalar_lea.vmem [#allocation2], %s445
        // Predicated region
        $region65: #{tpu_custom_call.1} parent=63 // pred_check
          %p447 = pneg %p54
        $region66: #{tpu_custom_call.1} parent=63 // pred_check_branch
          %449 = sbr.rel (%p447) target = $region68
        $region67: #{tpu_custom_call.1} parent=63 // pred_region
          %450 = dma.done %s443, 128
        $region68: #{tpu_custom_call.1} parent=63 // pred_fallthru
          _
        %s451 = sand.u32 %s33, 1
        %s452 = scalar_lea.sflag [#allocation6], %s451
        %s453 = sand.u32 %s67, 1
        %s454 = smul.addr %s453, 8
        %s455 = scalar_lea.vmem [#allocation5], %s454
        // Predicated region
        $region69: #{tpu_custom_call.1} parent=63 // pred_check
          %p456 = pneg %p80
        $region70: #{tpu_custom_call.1} parent=63 // pred_check_branch
          %458 = sbr.rel (%p456) target = $region72
        $region71: #{tpu_custom_call.1} parent=63 // pred_region
          %459 = dma.done %s452, 128
        $region72: #{tpu_custom_call.1} parent=63 // pred_fallthru
          _
        %s460 = sand.u32 %s33, 1
        %s461 = scalar_lea.sflag [#allocation6], %s460
        %s462 = sand.u32 %s93, 1
        %s463 = smul.addr %s462, 8
        %s464 = scalar_lea.vmem [#allocation7], %s463
        // Predicated region
        $region73: #{tpu_custom_call.1} parent=63 // pred_check
          %p465 = pneg %p106
        $region74: #{tpu_custom_call.1} parent=63 // pred_check_branch
          %467 = sbr.rel (%p465) target = $region76
        $region75: #{tpu_custom_call.1} parent=63 // pred_region
          %468 = dma.done %s461, 128
        $region76: #{tpu_custom_call.1} parent=63 // pred_fallthru
          _
        // Predicated region
        $region77: #{tpu_custom_call.1} parent=63 // pred_check
          %p469 = pneg %p127
        $region78: #{tpu_custom_call.1} parent=63 // pred_check_branch
          %471 = sbr.rel (%p469) target = $region80
        $region79: #{tpu_custom_call.1} parent=63 // pred_region
          %472 = dma.done [#allocation9], 512
        $region80: #{tpu_custom_call.1} parent=63 // pred_fallthru
          _
        // Predicated region
        $region81: #{tpu_custom_call.1} parent=63 // pred_check
          %p473 = pneg %p169
        $region82: #{tpu_custom_call.1} parent=63 // pred_check_branch
          %475 = sbr.rel (%p473) target = $region84
        $region83: #{tpu_custom_call.1} parent=63 // pred_region
          %476 = dma.done [#allocation9], 512
        $region84: #{tpu_custom_call.1} parent=63 // pred_fallthru
          _
        // Predicated region
        $region85: #{tpu_custom_call.1} parent=63 // pred_check
          %p477 = pneg %p211
        $region86: #{tpu_custom_call.1} parent=63 // pred_check_branch
          %479 = sbr.rel (%p477) target = $region88
        $region87: #{tpu_custom_call.1} parent=63 // pred_region
          %480 = dma.done [#allocation12], 512
        $region88: #{tpu_custom_call.1} parent=63 // pred_fallthru
          _
        // Predicated region
        $region89: #{tpu_custom_call.1} parent=63 // pred_check
          %p481 = pneg %p232
        $region90: #{tpu_custom_call.1} parent=63 // pred_check_branch
          %483 = sbr.rel (%p481) target = $region92
        $region91: #{tpu_custom_call.1} parent=63 // pred_region
          %484 = dma.done [#allocation12], 16
        $region92: #{tpu_custom_call.1} parent=63 // pred_fallthru
          _
        %s485 = sand.u32 %s41, 1
        %s486 = scalar_lea.sflag [#allocation3], %s485
        %s487 = sand.u32 %s41, 1
        %s488 = smul.addr %s487, 8
        %s489 = scalar_lea.vmem [#allocation2], %s488
        %p490 = pneg %p54
        %p491 = pneg %p51
        %s492 = sand.u32 %s33, 1
        %s493 = scalar_lea.sflag [#allocation6], %s492
        %s494 = sand.u32 %s67, 1
        %s495 = smul.addr %s494, 8
        %s496 = scalar_lea.vmem [#allocation5], %s495
        %p497 = pneg %p80
        %p498 = pneg %p77
        %s499 = sand.u32 %s33, 1
        %s500 = scalar_lea.sflag [#allocation6], %s499
        %s501 = sand.u32 %s93, 1
        %s502 = smul.addr %s501, 8
        %s503 = scalar_lea.vmem [#allocation7], %s502
        %p504 = pneg %p106
        %p505 = pneg %p103
        %p506 = pneg %p127
        %p507 = pneg %p124
        %p508 = pneg %p148
        %p509 = pneg %p145
        %p510 = pneg %p169
        %p511 = pneg %p166
        %p512 = pneg %p190
        %p513 = pneg %p187
        %p514 = pneg %p211
        %p515 = pneg %p208
        %p516 = pneg %p232
        %p517 = pneg %p229
        %p518 = pneg %p253
        %p519 = pneg %p250
        %p520 = pneg %p274
        %p521 = pneg %p271
        %p522 = pneg %p300
        %p523 = pneg %p297
        %s524 = sand.u32 %s287, 1
        %s525 = scalar_lea.sflag [#allocation4], %s524
        %s526 = sand.u32 %s287, 1
        %s527 = smul.addr %s526, 8
        %s528 = scalar_lea.vmem [#allocation14], %s527
        %v530 = vld [vmem:[%s446] sm:$0xff]
        %v531 = vpack.c.bf16 %v530, %v530
        %v532 = vld [vmem:[%s455] sm:$0xff]
        %v533 = vpack.c.bf16 %v532, %v532
        %v534 = vld [vmem:[%s464] sm:$0xff]
        %v535 = vpack.c.bf16 %v534, %v534
        %v536 = vld [vmem:[#allocation8] sm:$0xff]
        %v537 = vld [vmem:[#allocation8 + $0x8] sm:$0xff]
        %v538 = vld [vmem:[#allocation8 + $0x10] sm:$0xff]
        %v539 = vld [vmem:[#allocation8 + $0x18] sm:$0xff]
        %v540 = vpack.c.bf16 %v537, %v536
        %v541 = vpack.c.bf16 %v539, %v538
        %v542 = vld [vmem:[#allocation10] sm:$0xff]
        %v543 = vld [vmem:[#allocation10 + $0x8] sm:$0xff]
        %v544 = vld [vmem:[#allocation10 + $0x10] sm:$0xff]
        %v545 = vld [vmem:[#allocation10 + $0x18] sm:$0xff]
        %v546 = vpack.c.bf16 %v543, %v542
        %v547 = vpack.c.bf16 %v545, %v544
        %v548 = vld [vmem:[#allocation11] sm:$0xff]
        %v549 = vld [vmem:[#allocation11 + $0x8] sm:$0xff]
        %v550 = vld [vmem:[#allocation11 + $0x10] sm:$0xff]
        %v551 = vld [vmem:[#allocation11 + $0x18] sm:$0xff]
        %v552 = vpack.c.bf16 %v549, %v548
        %v553 = vpack.c.bf16 %v551, %v550
        %v554 = vld [vmem:[%s4] sm:$0x1]
        %v556 = vlaneseq
        %v557 = vshrl.u32 %v556, 7
        %v558 = vsub.s32 0, %v557
        %v559 = vrot.slane %v554, %v558
        %vm561 = vcmask 261120
        %v563 = vsel %vm561, %v531, 0
        %565 = vmatprep.subr.bf16.mxu0 0
        %566 = vmatpush1.bf16.msra.mxu0 %v540
        %567 = vmatprep.subr.bf16.mxu0 0
        %568 = vmatpush1.bf16.msra.mxu0 %v541
        %569 = vmatprep.subr.bf16.mxu0 0
        %570 = vmatpush1.bf16.msra.mxu0 0
        %571 = vmatprep.subr.bf16.mxu0 0
        %572 = vmatpush1.bf16.msra.mxu0 0
        %573 = vmatprep.subr.bf16.mxu0 0
        %574 = vmatpush1.bf16.msra.mxu0 0
        %575 = vmatprep.subr.bf16.mxu0 0
        %576 = vmatpush1.bf16.msra.mxu0 0
        %577 = vmatprep.subr.bf16.mxu0 0
        %578 = vmatpush1.bf16.msra.mxu0 0
        %579 = vmatprep.subr.bf16.mxu0 0
        %580 = vmatpush1.bf16.msra.mxu0 0
        %581 = vmatprep.subr.bf16.mxu0 0
        %582 = vmatpush1.bf16.msra.mxu0 0
        %583 = vmatprep.subr.bf16.mxu0 0
        %584 = vmatpush1.bf16.msra.mxu0 0
        %585 = vmatprep.subr.bf16.mxu0 0
        %586 = vmatpush1.bf16.msra.mxu0 0
        %587 = vmatprep.subr.bf16.mxu0 0
        %588 = vmatpush1.bf16.msra.mxu0 0
        %589 = vmatprep.subr.bf16.mxu0 0
        %590 = vmatpush1.bf16.msra.mxu0 0
        %591 = vmatprep.subr.bf16.mxu0 0
        %592 = vmatpush1.bf16.msra.mxu0 0
        %593 = vmatprep.subr.bf16.mxu0 0
        %594 = vmatpush1.bf16.msra.mxu0 0
        %595 = vmatprep.subr.bf16.mxu0 0
        %596 = vmatpush1.bf16.msra.mxu0 0
        %597 = vmatprep.mubr.bf16.mxu0 0
        %598 = vmatmul.mubr.bf16.gmra.mrb[0].mxu0 %v563
        %v599 = vpop.f32.mrb[0].mxu0
        %v600 = vadd.f32 %v559, %v599
        %v601 = vpop.f32.mrb[0].mxu0
        %v602 = vpop.f32.mrb[0].mxu0
        %v603 = vpop.f32.mrb[0].mxu0
        %604 = vdwg.mxu0
        %v605 = vmul.f32 %v600, 0.35355338
        %v606 = vpack.c.bf16 %v605, %v605
        %v607 = vld [vmem:[%s6] sm:$0x1]
        %v609 = vlaneseq
        %v610 = vshrl.u32 %v609, 7
        %v611 = vsub.s32 0, %v610
        %v612 = vrot.slane %v607, %v611
        %v615 = vsel %vm561, %v533, 0
        %617 = vmatprep.subr.bf16.mxu0 0
        %618 = vmatpush1.bf16.msra.mxu0 %v546
        %619 = vmatprep.subr.bf16.mxu0 0
        %620 = vmatpush1.bf16.msra.mxu0 %v547
        %621 = vmatprep.subr.bf16.mxu0 0
        %622 = vmatpush1.bf16.msra.mxu0 0
        %623 = vmatprep.subr.bf16.mxu0 0
        %624 = vmatpush1.bf16.msra.mxu0 0
        %625 = vmatprep.subr.bf16.mxu0 0
        %626 = vmatpush1.bf16.msra.mxu0 0
        %627 = vmatprep.subr.bf16.mxu0 0
        %628 = vmatpush1.bf16.msra.mxu0 0
        %629 = vmatprep.subr.bf16.mxu0 0
        %630 = vmatpush1.bf16.msra.mxu0 0
        %631 = vmatprep.subr.bf16.mxu0 0
        %632 = vmatpush1.bf16.msra.mxu0 0
        %633 = vmatprep.subr.bf16.mxu0 0
        %634 = vmatpush1.bf16.msra.mxu0 0
        %635 = vmatprep.subr.bf16.mxu0 0
        %636 = vmatpush1.bf16.msra.mxu0 0
        %637 = vmatprep.subr.bf16.mxu0 0
        %638 = vmatpush1.bf16.msra.mxu0 0
        %639 = vmatprep.subr.bf16.mxu0 0
        %640 = vmatpush1.bf16.msra.mxu0 0
        %641 = vmatprep.subr.bf16.mxu0 0
        %642 = vmatpush1.bf16.msra.mxu0 0
        %643 = vmatprep.subr.bf16.mxu0 0
        %644 = vmatpush1.bf16.msra.mxu0 0
        %645 = vmatprep.subr.bf16.mxu0 0
        %646 = vmatpush1.bf16.msra.mxu0 0
        %647 = vmatprep.subr.bf16.mxu0 0
        %648 = vmatpush1.bf16.msra.mxu0 0
        %649 = vmatprep.mubr.bf16.mxu0 0
        %650 = vmatmul.mubr.bf16.gmra.mrb[0].mxu0 %v615
        %v651 = vpop.f32.mrb[0].mxu0
        %v652 = vadd.f32 %v612, %v651
        %v653 = vpop.f32.mrb[0].mxu0
        %v654 = vpop.f32.mrb[0].mxu0
        %v655 = vpop.f32.mrb[0].mxu0
        %656 = vdwg.mxu0
        %v657 = vpack.c.bf16 %v652, %v652
        %v658 = vld [vmem:[#allocation13] sm:$0x1]
        %v660 = vlaneseq
        %v661 = vshrl.u32 %v660, 7
        %v662 = vsub.s32 0, %v661
        %v663 = vrot.slane %v658, %v662
        %v666 = vsel %vm561, %v535, 0
        %668 = vmatprep.subr.bf16.mxu0 0
        %669 = vmatpush1.bf16.msra.mxu0 %v552
        %670 = vmatprep.subr.bf16.mxu0 0
        %671 = vmatpush1.bf16.msra.mxu0 %v553
        %672 = vmatprep.subr.bf16.mxu0 0
        %673 = vmatpush1.bf16.msra.mxu0 0
        %674 = vmatprep.subr.bf16.mxu0 0
        %675 = vmatpush1.bf16.msra.mxu0 0
        %676 = vmatprep.subr.bf16.mxu0 0
        %677 = vmatpush1.bf16.msra.mxu0 0
        %678 = vmatprep.subr.bf16.mxu0 0
        %679 = vmatpush1.bf16.msra.mxu0 0
        %680 = vmatprep.subr.bf16.mxu0 0
        %681 = vmatpush1.bf16.msra.mxu0 0
        %682 = vmatprep.subr.bf16.mxu0 0
        %683 = vmatpush1.bf16.msra.mxu0 0
        %684 = vmatprep.subr.bf16.mxu0 0
        %685 = vmatpush1.bf16.msra.mxu0 0
        %686 = vmatprep.subr.bf16.mxu0 0
        %687 = vmatpush1.bf16.msra.mxu0 0
        %688 = vmatprep.subr.bf16.mxu0 0
        %689 = vmatpush1.bf16.msra.mxu0 0
        %690 = vmatprep.subr.bf16.mxu0 0
        %691 = vmatpush1.bf16.msra.mxu0 0
        %692 = vmatprep.subr.bf16.mxu0 0
        %693 = vmatpush1.bf16.msra.mxu0 0
        %694 = vmatprep.subr.bf16.mxu0 0
        %695 = vmatpush1.bf16.msra.mxu0 0
        %696 = vmatprep.subr.bf16.mxu0 0
        %697 = vmatpush1.bf16.msra.mxu0 0
        %698 = vmatprep.subr.bf16.mxu0 0
        %699 = vmatpush1.bf16.msra.mxu0 0
        %700 = vmatprep.mubr.bf16.mxu0 0
        %701 = vmatmul.mubr.bf16.gmra.mrb[0].mxu0 %v666
        %v702 = vpop.f32.mrb[0].mxu0
        %v703 = vadd.f32 %v663, %v702
        %v704 = vpop.f32.mrb[0].mxu0
        %v705 = vpop.f32.mrb[0].mxu0
        %v706 = vpop.f32.mrb[0].mxu0
        %707 = vdwg.mxu0
        %v708 = vpack.c.bf16 %v703, %v703
        %v709 = vlaneseq
        %v710 = vshrl.u32 %v709, 7
        %v711 = vlaneseq
        %v712 = vand.u32 %v711, 127
        %vm713 = vcmp.gt.s32.totalorder %v712, %v710
        %vm714 = vcmask 64512
        %v716 = vsel %vm714, %v606, 0
        %v719 = vsel %vm714, %v657, 0
        %721 = vmatprep.subr.bf16.mxu0 0
        %722 = vmatpush1.bf16.xpose.msra.mxu0 %v719
        %723 = vmatprep.subr.bf16.mxu0 0
        %724 = vmatpush1.bf16.xpose.msra.mxu0 0
        %725 = vmatprep.subr.bf16.mxu0 0
        %726 = vmatpush1.bf16.xpose.msra.mxu0 0
        %727 = vmatprep.subr.bf16.mxu0 0
        %728 = vmatpush1.bf16.xpose.msra.mxu0 0
        %729 = vmatprep.subr.bf16.mxu0 0
        %730 = vmatpush1.bf16.xpose.msra.mxu0 0
        %731 = vmatprep.subr.bf16.mxu0 0
        %732 = vmatpush1.bf16.xpose.msra.mxu0 0
        %733 = vmatprep.subr.bf16.mxu0 0
        %734 = vmatpush1.bf16.xpose.msra.mxu0 0
        %735 = vmatprep.subr.bf16.mxu0 0
        %736 = vmatpush1.bf16.xpose.msra.mxu0 0
        %737 = vmatprep.subr.bf16.mxu0 0
        %738 = vmatpush1.bf16.xpose.msra.mxu0 0
        %739 = vmatprep.subr.bf16.mxu0 0
        %740 = vmatpush1.bf16.xpose.msra.mxu0 0
        %741 = vmatprep.subr.bf16.mxu0 0
        %742 = vmatpush1.bf16.xpose.msra.mxu0 0
        %743 = vmatprep.subr.bf16.mxu0 0
        %744 = vmatpush1.bf16.xpose.msra.mxu0 0
        %745 = vmatprep.subr.bf16.mxu0 0
        %746 = vmatpush1.bf16.xpose.msra.mxu0 0
        %747 = vmatprep.subr.bf16.mxu0 0
        %748 = vmatpush1.bf16.xpose.msra.mxu0 0
        %749 = vmatprep.subr.bf16.mxu0 0
        %750 = vmatpush1.bf16.xpose.msra.mxu0 0
        %751 = vmatprep.subr.bf16.mxu0 0
        %752 = vmatpush1.bf16.xpose.msra.mxu0 0
        %753 = vmatprep.mubr.bf16.mxu0 0
        %754 = vmatmul.mubr.bf16.gmra.mrb[0].mxu0 %v716
        %v755 = vpop.f32.mrb[0].mxu0
        %v756 = vadd.f32 0.0, %v755
        %v757 = vpop.f32.mrb[0].mxu0
        %v758 = vpop.f32.mrb[0].mxu0
        %v759 = vpop.f32.mrb[0].mxu0
        %760 = vdwg.mxu0
        %v761 = vsel %vm713, -100.0, %v756
        %v762 = vsel %vm714, %v761, -inf
        %763 = vmax.xlane.f32.xlu0 %v762
        %v764 = vpop.xlane.xlu0 %763
        %v765 = vsub.f32 %v761, %v764
        %v766 = vmul.f32 %v765, 1.442695
        %v767 = vpow.pop %v766
        %v768 = vsel %vm714, %v767, 0.0
        %769 = vadd.xlane.f32.xlu0 %v768
        %v770 = vpop.xlane.xlu0 %769
        %v771 = vpack.c.bf16 %v767, %v767
        %v773 = vsel %vm714, %v771, 0
        %vm775 = vcmask 1043456
        %v777 = vsel %vm775, %v708, 0
        %779 = vmatprep.subr.bf16.mxu0 0
        %780 = vmatpush1.bf16.msra.mxu0 %v777
        %781 = vmatprep.subr.bf16.mxu0 0
        %782 = vmatpush1.bf16.msra.mxu0 0
        %783 = vmatprep.subr.bf16.mxu0 0
        %784 = vmatpush1.bf16.msra.mxu0 0
        %785 = vmatprep.subr.bf16.mxu0 0
        %786 = vmatpush1.bf16.msra.mxu0 0
        %787 = vmatprep.subr.bf16.mxu0 0
        %788 = vmatpush1.bf16.msra.mxu0 0
        %789 = vmatprep.subr.bf16.mxu0 0
        %790 = vmatpush1.bf16.msra.mxu0 0
        %791 = vmatprep.subr.bf16.mxu0 0
        %792 = vmatpush1.bf16.msra.mxu0 0
        %793 = vmatprep.subr.bf16.mxu0 0
        %794 = vmatpush1.bf16.msra.mxu0 0
        %795 = vmatprep.subr.bf16.mxu0 0
        %796 = vmatpush1.bf16.msra.mxu0 0
        %797 = vmatprep.subr.bf16.mxu0 0
        %798 = vmatpush1.bf16.msra.mxu0 0
        %799 = vmatprep.subr.bf16.mxu0 0
        %800 = vmatpush1.bf16.msra.mxu0 0
        %801 = vmatprep.subr.bf16.mxu0 0
        %802 = vmatpush1.bf16.msra.mxu0 0
        %803 = vmatprep.subr.bf16.mxu0 0
        %804 = vmatpush1.bf16.msra.mxu0 0
        %805 = vmatprep.subr.bf16.mxu0 0
        %806 = vmatpush1.bf16.msra.mxu0 0
        %807 = vmatprep.subr.bf16.mxu0 0
        %808 = vmatpush1.bf16.msra.mxu0 0
        %809 = vmatprep.subr.bf16.mxu0 0
        %810 = vmatpush1.bf16.msra.mxu0 0
        %811 = vmatprep.mubr.bf16.mxu0 0
        %812 = vmatmul.mubr.bf16.gmra.mrb[0].mxu0 %v773
        %v813 = vpop.f32.mrb[0].mxu0
        %v814 = vadd.f32 0.0, %v813
        %v815 = vpop.f32.mrb[0].mxu0
        %v816 = vpop.f32.mrb[0].mxu0
        %v817 = vpop.f32.mrb[0].mxu0
        %818 = vdwg.mxu0
        %v819 = vrcp.pop %v770
        %v820 = vmul.f32 %v814, %v819
        %v821 = vpack.c.bf16 %v820, %v820
        %v822 = vld [vmem:[%s9] sm:$0xff]
        %v823 = vpack.c.bf16 %v822, %v822
        %825 = vrot.lane.b32.xlu0 %v606, 120
        %v826 = vpop.permute.xlu0 %825
        %828 = vrot.lane.b32.xlu0 %v657, 120
        %v829 = vpop.permute.xlu0 %828
        %v831 = vsel %vm714, %v826, 0
        %v834 = vsel %vm714, %v829, 0
        %836 = vmatprep.subr.bf16.mxu0 0
        %837 = vmatpush1.bf16.xpose.msra.mxu0 %v834
        %838 = vmatprep.subr.bf16.mxu0 0
        %839 = vmatpush1.bf16.xpose.msra.mxu0 0
        %840 = vmatprep.subr.bf16.mxu0 0
        %841 = vmatpush1.bf16.xpose.msra.mxu0 0
        %842 = vmatprep.subr.bf16.mxu0 0
        %843 = vmatpush1.bf16.xpose.msra.mxu0 0
        %844 = vmatprep.subr.bf16.mxu0 0
        %845 = vmatpush1.bf16.xpose.msra.mxu0 0
        %846 = vmatprep.subr.bf16.mxu0 0
        %847 = vmatpush1.bf16.xpose.msra.mxu0 0
        %848 = vmatprep.subr.bf16.mxu0 0
        %849 = vmatpush1.bf16.xpose.msra.mxu0 0
        %850 = vmatprep.subr.bf16.mxu0 0
        %851 = vmatpush1.bf16.xpose.msra.mxu0 0
        %852 = vmatprep.subr.bf16.mxu0 0
        %853 = vmatpush1.bf16.xpose.msra.mxu0 0
        %854 = vmatprep.subr.bf16.mxu0 0
        %855 = vmatpush1.bf16.xpose.msra.mxu0 0
        %856 = vmatprep.subr.bf16.mxu0 0
        %857 = vmatpush1.bf16.xpose.msra.mxu0 0
        %858 = vmatprep.subr.bf16.mxu0 0
        %859 = vmatpush1.bf16.xpose.msra.mxu0 0
        %860 = vmatprep.subr.bf16.mxu0 0
        %861 = vmatpush1.bf16.xpose.msra.mxu0 0
        %862 = vmatprep.subr.bf16.mxu0 0
        %863 = vmatpush1.bf16.xpose.msra.mxu0 0
        %864 = vmatprep.subr.bf16.mxu0 0
        %865 = vmatpush1.bf16.xpose.msra.mxu0 0
        %866 = vmatprep.subr.bf16.mxu0 0
        %867 = vmatpush1.bf16.xpose.msra.mxu0 0
        %868 = vmatprep.mubr.bf16.mxu0 0
        %869 = vmatmul.mubr.bf16.gmra.mrb[0].mxu0 %v831
        %v870 = vpop.f32.mrb[0].mxu0
        %v871 = vadd.f32 0.0, %v870
        %v872 = vpop.f32.mrb[0].mxu0
        %v873 = vpop.f32.mrb[0].mxu0
        %v874 = vpop.f32.mrb[0].mxu0
        %875 = vdwg.mxu0
        %v876 = vsel %vm713, -100.0, %v871
        %v877 = vsel %vm714, %v876, -inf
        %878 = vmax.xlane.f32.xlu0 %v877
        %v879 = vpop.xlane.xlu0 %878
        %v880 = vsub.f32 %v876, %v879
        %v881 = vmul.f32 %v880, 1.442695
        %v882 = vpow.pop %v881
        %v883 = vsel %vm714, %v882, 0.0
        %884 = vadd.xlane.f32.xlu0 %v883
        %v885 = vpop.xlane.xlu0 %884
        %v886 = vpack.c.bf16 %v882, %v882
        %888 = vrot.lane.b32.xlu0 %v708, 120
        %v889 = vpop.permute.xlu0 %888
        %v891 = vsel %vm714, %v886, 0
        %v894 = vsel %vm775, %v889, 0
        %896 = vmatprep.subr.bf16.mxu0 0
        %897 = vmatpush1.bf16.msra.mxu0 %v894
        %898 = vmatprep.subr.bf16.mxu0 0
        %899 = vmatpush1.bf16.msra.mxu0 0
        %900 = vmatprep.subr.bf16.mxu0 0
        %901 = vmatpush1.bf16.msra.mxu0 0
        %902 = vmatprep.subr.bf16.mxu0 0
        %903 = vmatpush1.bf16.msra.mxu0 0
        %904 = vmatprep.subr.bf16.mxu0 0
        %905 = vmatpush1.bf16.msra.mxu0 0
        %906 = vmatprep.subr.bf16.mxu0 0
        %907 = vmatpush1.bf16.msra.mxu0 0
        %908 = vmatprep.subr.bf16.mxu0 0
        %909 = vmatpush1.bf16.msra.mxu0 0
        %910 = vmatprep.subr.bf16.mxu0 0
        %911 = vmatpush1.bf16.msra.mxu0 0
        %912 = vmatprep.subr.bf16.mxu0 0
        %913 = vmatpush1.bf16.msra.mxu0 0
        %914 = vmatprep.subr.bf16.mxu0 0
        %915 = vmatpush1.bf16.msra.mxu0 0
        %916 = vmatprep.subr.bf16.mxu0 0
        %917 = vmatpush1.bf16.msra.mxu0 0
        %918 = vmatprep.subr.bf16.mxu0 0
        %919 = vmatpush1.bf16.msra.mxu0 0
        %920 = vmatprep.subr.bf16.mxu0 0
        %921 = vmatpush1.bf16.msra.mxu0 0
        %922 = vmatprep.subr.bf16.mxu0 0
        %923 = vmatpush1.bf16.msra.mxu0 0
        %924 = vmatprep.subr.bf16.mxu0 0
        %925 = vmatpush1.bf16.msra.mxu0 0
        %926 = vmatprep.subr.bf16.mxu0 0
        %927 = vmatpush1.bf16.msra.mxu0 0
        %928 = vmatprep.mubr.bf16.mxu0 0
        %929 = vmatmul.mubr.bf16.gmra.mrb[0].mxu0 %v891
        %v930 = vpop.f32.mrb[0].mxu0
        %v931 = vadd.f32 0.0, %v930
        %v932 = vpop.f32.mrb[0].mxu0
        %v933 = vpop.f32.mrb[0].mxu0
        %v934 = vpop.f32.mrb[0].mxu0
        %935 = vdwg.mxu0
        %v936 = vrcp.pop %v885
        %v937 = vmul.f32 %v931, %v936
        %v938 = vpack.c.bf16 %v937, %v937
        %s939 = scalar_lea.vmem %s9, 8
        %v940 = vld [vmem:[%s939] sm:$0xff]
        %v941 = vpack.c.bf16 %v940, %v940
        %v943 = vsel %vm714, %v938, 0
        %v946 = vsel %vm775, %v941, 0
        %948 = vmatprep.subr.bf16.mxu0 0
        %949 = vmatpush1.bf16.msra.mxu0 %v946
        %950 = vmatprep.subr.bf16.mxu0 0
        %951 = vmatpush1.bf16.msra.mxu0 0
        %952 = vmatprep.subr.bf16.mxu0 0
        %953 = vmatpush1.bf16.msra.mxu0 0
        %954 = vmatprep.subr.bf16.mxu0 0
        %955 = vmatpush1.bf16.msra.mxu0 0
        %956 = vmatprep.subr.bf16.mxu0 0
        %957 = vmatpush1.bf16.msra.mxu0 0
        %958 = vmatprep.subr.bf16.mxu0 0
        %959 = vmatpush1.bf16.msra.mxu0 0
        %960 = vmatprep.subr.bf16.mxu0 0
        %961 = vmatpush1.bf16.msra.mxu0 0
        %962 = vmatprep.subr.bf16.mxu0 0
        %963 = vmatpush1.bf16.msra.mxu0 0
        %964 = vmatprep.subr.bf16.mxu0 0
        %965 = vmatpush1.bf16.msra.mxu0 0
        %966 = vmatprep.subr.bf16.mxu0 0
        %967 = vmatpush1.bf16.msra.mxu0 0
        %968 = vmatprep.subr.bf16.mxu0 0
        %969 = vmatpush1.bf16.msra.mxu0 0
        %970 = vmatprep.subr.bf16.mxu0 0
        %971 = vmatpush1.bf16.msra.mxu0 0
        %972 = vmatprep.subr.bf16.mxu0 0
        %973 = vmatpush1.bf16.msra.mxu0 0
        %974 = vmatprep.subr.bf16.mxu0 0
        %975 = vmatpush1.bf16.msra.mxu0 0
        %976 = vmatprep.subr.bf16.mxu0 0
        %977 = vmatpush1.bf16.msra.mxu0 0
        %978 = vmatprep.subr.bf16.mxu0 0
        %979 = vmatpush1.bf16.msra.mxu0 0
        %980 = vmatprep.mubr.bf16.mxu0 0
        %981 = vmatmul.mubr.bf16.gmra.mrb[0].mxu0 %v943
        %v982 = vpop.f32.mrb[0].mxu0
        %v983 = vadd.f32 0.0, %v982
        %v984 = vpop.f32.mrb[0].mxu0
        %v985 = vpop.f32.mrb[0].mxu0
        %v986 = vpop.f32.mrb[0].mxu0
        %987 = vdwg.mxu0
        %v989 = vsel %vm714, %v821, 0
        %v992 = vsel %vm775, %v823, 0
        %994 = vmatprep.subr.bf16.mxu0 0
        %995 = vmatpush1.bf16.msra.mxu0 %v992
        %996 = vmatprep.subr.bf16.mxu0 0
        %997 = vmatpush1.bf16.msra.mxu0 0
        %998 = vmatprep.subr.bf16.mxu0 0
        %999 = vmatpush1.bf16.msra.mxu0 0
        %1000 = vmatprep.subr.bf16.mxu0 0
        %1001 = vmatpush1.bf16.msra.mxu0 0
        %1002 = vmatprep.subr.bf16.mxu0 0
        %1003 = vmatpush1.bf16.msra.mxu0 0
        %1004 = vmatprep.subr.bf16.mxu0 0
        %1005 = vmatpush1.bf16.msra.mxu0 0
        %1006 = vmatprep.subr.bf16.mxu0 0
        %1007 = vmatpush1.bf16.msra.mxu0 0
        %1008 = vmatprep.subr.bf16.mxu0 0
        %1009 = vmatpush1.bf16.msra.mxu0 0
        %1010 = vmatprep.subr.bf16.mxu0 0
        %1011 = vmatpush1.bf16.msra.mxu0 0
        %1012 = vmatprep.subr.bf16.mxu0 0
        %1013 = vmatpush1.bf16.msra.mxu0 0
        %1014 = vmatprep.subr.bf16.mxu0 0
        %1015 = vmatpush1.bf16.msra.mxu0 0
        %1016 = vmatprep.subr.bf16.mxu0 0
        %1017 = vmatpush1.bf16.msra.mxu0 0
        %1018 = vmatprep.subr.bf16.mxu0 0
        %1019 = vmatpush1.bf16.msra.mxu0 0
        %1020 = vmatprep.subr.bf16.mxu0 0
        %1021 = vmatpush1.bf16.msra.mxu0 0
        %1022 = vmatprep.subr.bf16.mxu0 0
        %1023 = vmatpush1.bf16.msra.mxu0 0
        %1024 = vmatprep.subr.bf16.mxu0 0
        %1025 = vmatpush1.bf16.msra.mxu0 0
        %1026 = vmatprep.mubr.bf16.mxu0 0
        %1027 = vmatmul.mubr.bf16.gmra.mrb[0].mxu0 %v989
        %v1028 = vpop.f32.mrb[0].mxu0
        %v1029 = vadd.f32 %v983, %v1028
        %v1030 = vpop.f32.mrb[0].mxu0
        %v1031 = vpop.f32.mrb[0].mxu0
        %v1032 = vpop.f32.mrb[0].mxu0
        %1033 = vdwg.mxu0
        %1034 = vrot.lane.b32.xlu0 %v606, 112
        %v1035 = vpop.permute.xlu0 %1034
        %1036 = vrot.lane.b32.xlu0 %v657, 112
        %v1037 = vpop.permute.xlu0 %1036
        %v1039 = vsel %vm714, %v1035, 0
        %v1042 = vsel %vm714, %v1037, 0
        %1044 = vmatprep.subr.bf16.mxu0 0
        %1045 = vmatpush1.bf16.xpose.msra.mxu0 %v1042
        %1046 = vmatprep.subr.bf16.mxu0 0
        %1047 = vmatpush1.bf16.xpose.msra.mxu0 0
        %1048 = vmatprep.subr.bf16.mxu0 0
        %1049 = vmatpush1.bf16.xpose.msra.mxu0 0
        %1050 = vmatprep.subr.bf16.mxu0 0
        %1051 = vmatpush1.bf16.xpose.msra.mxu0 0
        %1052 = vmatprep.subr.bf16.mxu0 0
        %1053 = vmatpush1.bf16.xpose.msra.mxu0 0
        %1054 = vmatprep.subr.bf16.mxu0 0
        %1055 = vmatpush1.bf16.xpose.msra.mxu0 0
        %1056 = vmatprep.subr.bf16.mxu0 0
        %1057 = vmatpush1.bf16.xpose.msra.mxu0 0
        %1058 = vmatprep.subr.bf16.mxu0 0
        %1059 = vmatpush1.bf16.xpose.msra.mxu0 0
        %1060 = vmatprep.subr.bf16.mxu0 0
        %1061 = vmatpush1.bf16.xpose.msra.mxu0 0
        %1062 = vmatprep.subr.bf16.mxu0 0
        %1063 = vmatpush1.bf16.xpose.msra.mxu0 0
        %1064 = vmatprep.subr.bf16.mxu0 0
        %1065 = vmatpush1.bf16.xpose.msra.mxu0 0
        %1066 = vmatprep.subr.bf16.mxu0 0
        %1067 = vmatpush1.bf16.xpose.msra.mxu0 0
        %1068 = vmatprep.subr.bf16.mxu0 0
        %1069 = vmatpush1.bf16.xpose.msra.mxu0 0
        %1070 = vmatprep.subr.bf16.mxu0 0
        %1071 = vmatpush1.bf16.xpose.msra.mxu0 0
        %1072 = vmatprep.subr.bf16.mxu0 0
        %1073 = vmatpush1.bf16.xpose.msra.mxu0 0
        %1074 = vmatprep.subr.bf16.mxu0 0
        %1075 = vmatpush1.bf16.xpose.msra.mxu0 0
        %1076 = vmatprep.mubr.bf16.mxu0 0
        %1077 = vmatmul.mubr.bf16.gmra.mrb[0].mxu0 %v1039
        %v1078 = vpop.f32.mrb[0].mxu0
        %v1079 = vadd.f32 0.0, %v1078
        %v1080 = vpop.f32.mrb[0].mxu0
        %v1081 = vpop.f32.mrb[0].mxu0
        %v1082 = vpop.f32.mrb[0].mxu0
        %1083 = vdwg.mxu0
        %v1084 = vsel %vm713, -100.0, %v1079
        %v1085 = vsel %vm714, %v1084, -inf
        %1086 = vmax.xlane.f32.xlu0 %v1085
        %v1087 = vpop.xlane.xlu0 %1086
        %v1088 = vsub.f32 %v1084, %v1087
        %v1089 = vmul.f32 %v1088, 1.442695
        %v1090 = vpow.pop %v1089
        %v1091 = vsel %vm714, %v1090, 0.0
        %1092 = vadd.xlane.f32.xlu0 %v1091
        %v1093 = vpop.xlane.xlu0 %1092
        %v1094 = vpack.c.bf16 %v1090, %v1090
        %1095 = vrot.lane.b32.xlu0 %v708, 112
        %v1096 = vpop.permute.xlu0 %1095
        %v1098 = vsel %vm714, %v1094, 0
        %v1101 = vsel %vm775, %v1096, 0
        %1103 = vmatprep.subr.bf16.mxu0 0
        %1104 = vmatpush1.bf16.msra.mxu0 %v1101
        %1105 = vmatprep.subr.bf16.mxu0 0
        %1106 = vmatpush1.bf16.msra.mxu0 0
        %1107 = vmatprep.subr.bf16.mxu0 0
        %1108 = vmatpush1.bf16.msra.mxu0 0
        %1109 = vmatprep.subr.bf16.mxu0 0
        %1110 = vmatpush1.bf16.msra.mxu0 0
        %1111 = vmatprep.subr.bf16.mxu0 0
        %1112 = vmatpush1.bf16.msra.mxu0 0
        %1113 = vmatprep.subr.bf16.mxu0 0
        %1114 = vmatpush1.bf16.msra.mxu0 0
        %1115 = vmatprep.subr.bf16.mxu0 0
        %1116 = vmatpush1.bf16.msra.mxu0 0
        %1117 = vmatprep.subr.bf16.mxu0 0
        %1118 = vmatpush1.bf16.msra.mxu0 0
        %1119 = vmatprep.subr.bf16.mxu0 0
        %1120 = vmatpush1.bf16.msra.mxu0 0
        %1121 = vmatprep.subr.bf16.mxu0 0
        %1122 = vmatpush1.bf16.msra.mxu0 0
        %1123 = vmatprep.subr.bf16.mxu0 0
        %1124 = vmatpush1.bf16.msra.mxu0 0
        %1125 = vmatprep.subr.bf16.mxu0 0
        %1126 = vmatpush1.bf16.msra.mxu0 0
        %1127 = vmatprep.subr.bf16.mxu0 0
        %1128 = vmatpush1.bf16.msra.mxu0 0
        %1129 = vmatprep.subr.bf16.mxu0 0
        %1130 = vmatpush1.bf16.msra.mxu0 0
        %1131 = vmatprep.subr.bf16.mxu0 0
        %1132 = vmatpush1.bf16.msra.mxu0 0
        %1133 = vmatprep.subr.bf16.mxu0 0
        %1134 = vmatpush1.bf16.msra.mxu0 0
        %1135 = vmatprep.mubr.bf16.mxu0 0
        %1136 = vmatmul.mubr.bf16.gmra.mrb[0].mxu0 %v1098
        %v1137 = vpop.f32.mrb[0].mxu0
        %v1138 = vadd.f32 0.0, %v1137
        %v1139 = vpop.f32.mrb[0].mxu0
        %v1140 = vpop.f32.mrb[0].mxu0
        %v1141 = vpop.f32.mrb[0].mxu0
        %1142 = vdwg.mxu0
        %v1143 = vrcp.pop %v1093
        %v1144 = vmul.f32 %v1138, %v1143
        %v1145 = vpack.c.bf16 %v1144, %v1144
        %s1146 = scalar_lea.vmem %s9, 16
        %v1147 = vld [vmem:[%s1146] sm:$0xff]
        %v1148 = vpack.c.bf16 %v1147, %v1147
        %v1150 = vsel %vm714, %v1145, 0
        %v1153 = vsel %vm775, %v1148, 0
        %1155 = vmatprep.subr.bf16.mxu0 0
        %1156 = vmatpush1.bf16.msra.mxu0 %v1153
        %1157 = vmatprep.subr.bf16.mxu0 0
        %1158 = vmatpush1.bf16.msra.mxu0 0
        %1159 = vmatprep.subr.bf16.mxu0 0
        %1160 = vmatpush1.bf16.msra.mxu0 0
        %1161 = vmatprep.subr.bf16.mxu0 0
        %1162 = vmatpush1.bf16.msra.mxu0 0
        %1163 = vmatprep.subr.bf16.mxu0 0
        %1164 = vmatpush1.bf16.msra.mxu0 0
        %1165 = vmatprep.subr.bf16.mxu0 0
        %1166 = vmatpush1.bf16.msra.mxu0 0
        %1167 = vmatprep.subr.bf16.mxu0 0
        %1168 = vmatpush1.bf16.msra.mxu0 0
        %1169 = vmatprep.subr.bf16.mxu0 0
        %1170 = vmatpush1.bf16.msra.mxu0 0
        %1171 = vmatprep.subr.bf16.mxu0 0
        %1172 = vmatpush1.bf16.msra.mxu0 0
        %1173 = vmatprep.subr.bf16.mxu0 0
        %1174 = vmatpush1.bf16.msra.mxu0 0
        %1175 = vmatprep.subr.bf16.mxu0 0
        %1176 = vmatpush1.bf16.msra.mxu0 0
        %1177 = vmatprep.subr.bf16.mxu0 0
        %1178 = vmatpush1.bf16.msra.mxu0 0
        %1179 = vmatprep.subr.bf16.mxu0 0
        %1180 = vmatpush1.bf16.msra.mxu0 0
        %1181 = vmatprep.subr.bf16.mxu0 0
        %1182 = vmatpush1.bf16.msra.mxu0 0
        %1183 = vmatprep.subr.bf16.mxu0 0
        %1184 = vmatpush1.bf16.msra.mxu0 0
        %1185 = vmatprep.subr.bf16.mxu0 0
        %1186 = vmatpush1.bf16.msra.mxu0 0
        %1187 = vmatprep.mubr.bf16.mxu0 0
        %1188 = vmatmul.mubr.bf16.gmra.mrb[0].mxu0 %v1150
        %v1189 = vpop.f32.mrb[0].mxu0
        %v1190 = vadd.f32 0.0, %v1189
        %v1191 = vpop.f32.mrb[0].mxu0
        %v1192 = vpop.f32.mrb[0].mxu0
        %v1193 = vpop.f32.mrb[0].mxu0
        %1194 = vdwg.mxu0
        %v1195 = vadd.f32 %v1029, %v1190
        %1196 = vrot.lane.b32.xlu0 %v606, 104
        %v1197 = vpop.permute.xlu0 %1196
        %1198 = vrot.lane.b32.xlu0 %v657, 104
        %v1199 = vpop.permute.xlu0 %1198
        %v1201 = vsel %vm714, %v1197, 0
        %v1204 = vsel %vm714, %v1199, 0
        %1206 = vmatprep.subr.bf16.mxu0 0
        %1207 = vmatpush1.bf16.xpose.msra.mxu0 %v1204
        %1208 = vmatprep.subr.bf16.mxu0 0
        %1209 = vmatpush1.bf16.xpose.msra.mxu0 0
        %1210 = vmatprep.subr.bf16.mxu0 0
        %1211 = vmatpush1.bf16.xpose.msra.mxu0 0
        %1212 = vmatprep.subr.bf16.mxu0 0
        %1213 = vmatpush1.bf16.xpose.msra.mxu0 0
        %1214 = vmatprep.subr.bf16.mxu0 0
        %1215 = vmatpush1.bf16.xpose.msra.mxu0 0
        %1216 = vmatprep.subr.bf16.mxu0 0
        %1217 = vmatpush1.bf16.xpose.msra.mxu0 0
        %1218 = vmatprep.subr.bf16.mxu0 0
        %1219 = vmatpush1.bf16.xpose.msra.mxu0 0
        %1220 = vmatprep.subr.bf16.mxu0 0
        %1221 = vmatpush1.bf16.xpose.msra.mxu0 0
        %1222 = vmatprep.subr.bf16.mxu0 0
        %1223 = vmatpush1.bf16.xpose.msra.mxu0 0
        %1224 = vmatprep.subr.bf16.mxu0 0
        %1225 = vmatpush1.bf16.xpose.msra.mxu0 0
        %1226 = vmatprep.subr.bf16.mxu0 0
        %1227 = vmatpush1.bf16.xpose.msra.mxu0 0
        %1228 = vmatprep.subr.bf16.mxu0 0
        %1229 = vmatpush1.bf16.xpose.msra.mxu0 0
        %1230 = vmatprep.subr.bf16.mxu0 0
        %1231 = vmatpush1.bf16.xpose.msra.mxu0 0
        %1232 = vmatprep.subr.bf16.mxu0 0
        %1233 = vmatpush1.bf16.xpose.msra.mxu0 0
        %1234 = vmatprep.subr.bf16.mxu0 0
        %1235 = vmatpush1.bf16.xpose.msra.mxu0 0
        %1236 = vmatprep.subr.bf16.mxu0 0
        %1237 = vmatpush1.bf16.xpose.msra.mxu0 0
        %1238 = vmatprep.mubr.bf16.mxu0 0
        %1239 = vmatmul.mubr.bf16.gmra.mrb[0].mxu0 %v1201
        %v1240 = vpop.f32.mrb[0].mxu0
        %v1241 = vadd.f32 0.0, %v1240
        %v1242 = vpop.f32.mrb[0].mxu0
        %v1243 = vpop.f32.mrb[0].mxu0
        %v1244 = vpop.f32.mrb[0].mxu0
        %1245 = vdwg.mxu0
        %v1246 = vsel %vm713, -100.0, %v1241
        %v1247 = vsel %vm714, %v1246, -inf
        %1248 = vmax.xlane.f32.xlu0 %v1247
        %v1249 = vpop.xlane.xlu0 %1248
        %v1250 = vsub.f32 %v1246, %v1249
        %v1251 = vmul.f32 %v1250, 1.442695
        %v1252 = vpow.pop %v1251
        %v1253 = vsel %vm714, %v1252, 0.0
        %1254 = vadd.xlane.f32.xlu0 %v1253
        %v1255 = vpop.xlane.xlu0 %1254
        %v1256 = vpack.c.bf16 %v1252, %v1252
        %1257 = vrot.lane.b32.xlu0 %v708, 104
        %v1258 = vpop.permute.xlu0 %1257
        %v1260 = vsel %vm714, %v1256, 0
        %v1263 = vsel %vm775, %v1258, 0
        %1265 = vmatprep.subr.bf16.mxu0 0
        %1266 = vmatpush1.bf16.msra.mxu0 %v1263
        %1267 = vmatprep.subr.bf16.mxu0 0
        %1268 = vmatpush1.bf16.msra.mxu0 0
        %1269 = vmatprep.subr.bf16.mxu0 0
        %1270 = vmatpush1.bf16.msra.mxu0 0
        %1271 = vmatprep.subr.bf16.mxu0 0
        %1272 = vmatpush1.bf16.msra.mxu0 0
        %1273 = vmatprep.subr.bf16.mxu0 0
        %1274 = vmatpush1.bf16.msra.mxu0 0
        %1275 = vmatprep.subr.bf16.mxu0 0
        %1276 = vmatpush1.bf16.msra.mxu0 0
        %1277 = vmatprep.subr.bf16.mxu0 0
        %1278 = vmatpush1.bf16.msra.mxu0 0
        %1279 = vmatprep.subr.bf16.mxu0 0
        %1280 = vmatpush1.bf16.msra.mxu0 0
        %1281 = vmatprep.subr.bf16.mxu0 0
        %1282 = vmatpush1.bf16.msra.mxu0 0
        %1283 = vmatprep.subr.bf16.mxu0 0
        %1284 = vmatpush1.bf16.msra.mxu0 0
        %1285 = vmatprep.subr.bf16.mxu0 0
        %1286 = vmatpush1.bf16.msra.mxu0 0
        %1287 = vmatprep.subr.bf16.mxu0 0
        %1288 = vmatpush1.bf16.msra.mxu0 0
        %1289 = vmatprep.subr.bf16.mxu0 0
        %1290 = vmatpush1.bf16.msra.mxu0 0
        %1291 = vmatprep.subr.bf16.mxu0 0
        %1292 = vmatpush1.bf16.msra.mxu0 0
        %1293 = vmatprep.subr.bf16.mxu0 0
        %1294 = vmatpush1.bf16.msra.mxu0 0
        %1295 = vmatprep.subr.bf16.mxu0 0
        %1296 = vmatpush1.bf16.msra.mxu0 0
        %1297 = vmatprep.mubr.bf16.mxu0 0
        %1298 = vmatmul.mubr.bf16.gmra.mrb[0].mxu0 %v1260
        %v1299 = vpop.f32.mrb[0].mxu0
        %v1300 = vadd.f32 0.0, %v1299
        %v1301 = vpop.f32.mrb[0].mxu0
        %v1302 = vpop.f32.mrb[0].mxu0
        %v1303 = vpop.f32.mrb[0].mxu0
        %1304 = vdwg.mxu0
        %v1305 = vrcp.pop %v1255
        %v1306 = vmul.f32 %v1300, %v1305
        %v1307 = vpack.c.bf16 %v1306, %v1306
        %s1308 = scalar_lea.vmem %s9, 24
        %v1309 = vld [vmem:[%s1308] sm:$0xff]
        %v1310 = vpack.c.bf16 %v1309, %v1309
        %v1312 = vsel %vm714, %v1307, 0
        %v1315 = vsel %vm775, %v1310, 0
        %1317 = vmatprep.subr.bf16.mxu0 0
        %1318 = vmatpush1.bf16.msra.mxu0 %v1315
        %1319 = vmatprep.subr.bf16.mxu0 0
        %1320 = vmatpush1.bf16.msra.mxu0 0
        %1321 = vmatprep.subr.bf16.mxu0 0
        %1322 = vmatpush1.bf16.msra.mxu0 0
        %1323 = vmatprep.subr.bf16.mxu0 0
        %1324 = vmatpush1.bf16.msra.mxu0 0
        %1325 = vmatprep.subr.bf16.mxu0 0
        %1326 = vmatpush1.bf16.msra.mxu0 0
        %1327 = vmatprep.subr.bf16.mxu0 0
        %1328 = vmatpush1.bf16.msra.mxu0 0
        %1329 = vmatprep.subr.bf16.mxu0 0
        %1330 = vmatpush1.bf16.msra.mxu0 0
        %1331 = vmatprep.subr.bf16.mxu0 0
        %1332 = vmatpush1.bf16.msra.mxu0 0
        %1333 = vmatprep.subr.bf16.mxu0 0
        %1334 = vmatpush1.bf16.msra.mxu0 0
        %1335 = vmatprep.subr.bf16.mxu0 0
        %1336 = vmatpush1.bf16.msra.mxu0 0
        %1337 = vmatprep.subr.bf16.mxu0 0
        %1338 = vmatpush1.bf16.msra.mxu0 0
        %1339 = vmatprep.subr.bf16.mxu0 0
        %1340 = vmatpush1.bf16.msra.mxu0 0
        %1341 = vmatprep.subr.bf16.mxu0 0
        %1342 = vmatpush1.bf16.msra.mxu0 0
        %1343 = vmatprep.subr.bf16.mxu0 0
        %1344 = vmatpush1.bf16.msra.mxu0 0
        %1345 = vmatprep.subr.bf16.mxu0 0
        %1346 = vmatpush1.bf16.msra.mxu0 0
        %1347 = vmatprep.subr.bf16.mxu0 0
        %1348 = vmatpush1.bf16.msra.mxu0 0
        %1349 = vmatprep.mubr.bf16.mxu0 0
        %1350 = vmatmul.mubr.bf16.gmra.mrb[0].mxu0 %v1312
        %v1351 = vpop.f32.mrb[0].mxu0
        %v1352 = vadd.f32 0.0, %v1351
        %v1353 = vpop.f32.mrb[0].mxu0
        %v1354 = vpop.f32.mrb[0].mxu0
        %v1355 = vpop.f32.mrb[0].mxu0
        %1356 = vdwg.mxu0
        %v1357 = vadd.f32 %v1195, %v1352
        %v1358 = vld [vmem:[%s10] sm:$0x1]
        %v1360 = vlaneseq
        %v1361 = vshrl.u32 %v1360, 7
        %v1362 = vsub.s32 0, %v1361
        %v1363 = vrot.slane %v1358, %v1362
        %v1365 = vadd.f32 %v1357, %v1363
        %1366 = vst.msk [vmem:[%s528] sm:$0xff] %vm561, %v1365
        %s1367 = sand.u32 %s287, 1
        %s1368 = scalar_lea.sflag [#allocation4], %s1367
        %s1369 = sand.u32 %s287, 1
        %s1370 = smul.addr %s1369, 8
        %s1371 = scalar_lea.vmem [#allocation14], %s1370
        // Predicated region
        $region93: #{tpu_custom_call.1} parent=63 // pred_check
          %p1372 = pneg %p297
        $region94: #{tpu_custom_call.1} parent=63 // pred_check_branch
          %1374 = sbr.rel (%p1372) target = $region96
        $region95: #{tpu_custom_call.1} parent=63 // pred_region
          %s1376 = ssub.s32 128, 128
          %1377 = vsyncadd %s1368, %s1376
          %s1378 = smul.addr %s33, 128
          %s1379 = scalar_lea.hbm %s11, %s1378
          %s1381 = sshll.u32 %s1371, 4
          %s1382 = int_to_ptr.vmem [resolvable:$true] %s1381
          %1384 = dma.vmem_to_hbm [thread:$0]  %s1382, 128, %s1379, %s1368
        $region96: #{tpu_custom_call.1} parent=63 // pred_fallthru
          _
      $region64: #{tpu_custom_call.1} parent=5 // pred_fallthru
        _
      %p1385 = scmp.le.s32.totalorder 2, %s28
      // Predicated region
      $region97: #{tpu_custom_call.1} parent=5 // pred_check
        %p1386 = pneg %p1385
      $region98: #{tpu_custom_call.1} parent=5 // pred_check_branch
        %1388 = sbr.rel (%p1386) target = $region100
      $region99: #{tpu_custom_call.1} parent=5 // pred_region
        %s1389 = ssub.s32 %s28, 2
        // Predicated region
        $region101: #{tpu_custom_call.1} parent=99 // pred_check
          %p1390 = pneg %p303
        $region102: #{tpu_custom_call.1} parent=99 // pred_check_branch
          %1392 = sbr.rel (%p1390) target = $region104
        $region103: #{tpu_custom_call.1} parent=99 // pred_region
          %s1393 = sand.u32 %s288, 1
          %s1394 = scalar_lea.sflag [#allocation4], %s1393
          %s1395 = sand.u32 %s288, 1
          %s1396 = smul.addr %s1395, 8
          %s1397 = scalar_lea.vmem [#allocation14], %s1396
          %1398 = dma.done %s1394, 128
        $region104: #{tpu_custom_call.1} parent=99 // pred_fallthru
          _
      $region100: #{tpu_custom_call.1} parent=5 // pred_fallthru
        _
    $region6: #{tpu_custom_call.1} parent=1 // loop_footer
      %s32 = sadd.s32 1, %s28
    $region7: #{tpu_custom_call.1} parent=1 // loop_footer_branch
      %27 = sbr.rel target = $region3
    $region8: #{tpu_custom_call.1} parent=1 // loop_exit
      _
    %1399 = vsyncpa [#allocation3], 1
    %s1400 = scalar_lea.sflag [#allocation3], 1
    %1401 = vsyncpa %s1400, 1
    %1402 = vsyncpa [#allocation6], 1
    %s1403 = scalar_lea.sflag [#allocation6], 1
    %1404 = vsyncpa %s1403, 1
    %1405 = vsyncpa [#allocation9], 1
    %1406 = vsyncpa [#allocation12], 1
    %1407 = vsyncpa [#allocation4], 1
    %s1408 = scalar_lea.sflag [#allocation4], 1
    %1409 = vsyncpa %s1408, 1

// kernel: tpu_custom_call.1
$region0: #{tpu_custom_call.1}
  #allocation0 [shape = 'u32[]', space=smem, size = 0x4, offset = 0x4, fixed_abs, tag = 'smem constant byte address 0x4 - core index']
  #allocation1 [shape = 'u32[144,128]{1,0:T(1,128)}', space=vmem, size = 0x12000, scoped, tag = 'internal scratch']
  %s0 = inlined_call_operand.hbm [shape: f32[2,8,32], index: 0, kind: input, shape index: {}]
  %s1 = inlined_call_operand.hbm [shape: f32[2,8,32], index: 1, kind: input, shape index: {}]
  %s2 = inlined_call_operand.hbm [shape: f32[2,8,32], index: 2, kind: input, shape index: {}]
  %s3 = inlined_call_operand.hbm [shape: f32[32,32], index: 3, kind: input, shape index: {}]
  %s4 = inlined_call_operand.vmem [shape: f32[1,32], index: 4, kind: input, shape index: {}]
  %s5 = inlined_call_operand.hbm [shape: f32[32,32], index: 5, kind: input, shape index: {}]
  %s6 = inlined_call_operand.vmem [shape: f32[1,32], index: 6, kind: input, shape index: {}]
  %s7 = inlined_call_operand.hbm [shape: f32[32,32], index: 7, kind: input, shape index: {}]
  %s8 = inlined_call_operand.hbm [shape: f32[1,32], index: 8, kind: input, shape index: {}]
  %s9 = inlined_call_operand.vmem [shape: f32[4,8,32], index: 9, kind: input, shape index: {}]
  %s10 = inlined_call_operand.vmem [shape: f32[1,32], index: 10, kind: input, shape index: {}]
  %s11 = inlined_call_operand.hbm [shape: f32[2,8,32], index: 11, kind: output, shape index: {}]
  %s12 = sld [smem:[#allocation0]]
  $region105: #{tpu_custom_call.1} parent=0
    _
  %s14 = ssub.s32 1, %s12
  %s15 = scalar_select 0, %s14, %s12
  $region1: #{tpu_custom_call.1} parent=0
    #allocation2 [shape = 'u8[8192]{0}', space=vmem, size = 0x2000, scoped, tag = 'input window, operand 0']
    #allocation3 [shape = 's32[2]{0}', space=sflag, size = 0x8, scoped, tag = 'scoped memory for tpu_custom_call.1']
    #allocation4 [shape = 's32[2]{0}', space=sflag, size = 0x8, scoped, tag = 'scoped memory for tpu_custom_call.1']
    #allocation5 [shape = 'u8[8192]{0}', space=vmem, size = 0x2000, scoped, tag = 'input window, operand 1']
    #allocation6 [shape = 's32[2]{0}', space=sflag, size = 0x8, scoped, tag = 'scoped memory for tpu_custom_call.1']
    #allocation7 [shape = 'u8[8192]{0}', space=vmem, size = 0x2000, scoped, tag = 'input window, operand 2']
    #allocation8 [shape = 'u8[16384]{0}', space=vmem, size = 0x4000, scoped, tag = 'input window, operand 3, single buffered']
    #allocation9 [shape = 's32[1]{0}', space=sflag, size = 0x4, scoped, tag = 'scoped memory for tpu_custom_call.1']
    #allocation10 [shape = 'u8[16384]{0}', space=vmem, size = 0x4000, scoped, tag = 'input window, operand 5, single buffered']
    #allocation11 [shape = 'u8[16384]{0}', space=vmem, size = 0x4000, scoped, tag = 'input window, operand 7, single buffered']
    #allocation12 [shape = 's32[1]{0}', space=sflag, size = 0x4, scoped, tag = 'scoped memory for tpu_custom_call.1']
    #allocation13 [shape = 'u8[512]{0}', space=vmem, size = 0x400, scoped, tag = 'input window, operand 8, single buffered']
    #allocation14 [shape = 'u8[8192]{0}', space=vmem, size = 0x2000, scoped, tag = 'output window, operand 0']
    %16 = vsyncpa [#allocation3], 0
    %s17 = scalar_lea.sflag [#allocation3], 1
    %18 = vsyncpa %s17, 0
    %19 = vsyncpa [#allocation6], 0
    %s20 = scalar_lea.sflag [#allocation6], 1
    %21 = vsyncpa %s20, 0
    %22 = vsyncpa [#allocation9], 0
    %23 = vsyncpa [#allocation12], 0
    %24 = vsyncpa [#allocation4], 0
    %s25 = scalar_lea.sflag [#allocation4], 1
    %26 = vsyncpa %s25, 0
    loop: start=0, step=1, limit=4
    $region2: #{tpu_custom_call.1} parent=1 // loop_pre_header
      _
    $region3: #{tpu_custom_call.1} parent=1 // loop_header
      %s28 = sphi 0, %s32
      %p29 = scmp.ge.s32.totalorder %s28, 4
      %s38 = sphi 0, %s40
      %s41 = sphi 0, %s38
      %s42 = sphi 0, %s41
      %s58 = sphi 0, %s42
      %s64 = sphi 0, %s66
      %s67 = sphi 0, %s64
      %s68 = sphi 0, %s67
      %s84 = sphi 0, %s68
      %s90 = sphi 0, %s92
      %s93 = sphi 0, %s90
      %s94 = sphi 0, %s93
      %s110 = sphi 0, %s94
      %s114 = sphi 0, %s114
      %s116 = sphi 0, %s114
      %s117 = sphi 0, %s116
      %s131 = sphi 0, %s117
      %s135 = sphi 0, %s135
      %s137 = sphi 0, %s135
      %s138 = sphi 0, %s137
      %s152 = sphi 0, %s138
      %s156 = sphi 0, %s156
      %s158 = sphi 0, %s156
      %s159 = sphi 0, %s158
      %s173 = sphi 0, %s159
      %s177 = sphi 0, %s177
      %s179 = sphi 0, %s177
      %s180 = sphi 0, %s179
      %s194 = sphi 0, %s180
      %s198 = sphi 0, %s198
      %s200 = sphi 0, %s198
      %s201 = sphi 0, %s200
      %s215 = sphi 0, %s201
      %s219 = sphi 0, %s219
      %s221 = sphi 0, %s219
      %s222 = sphi 0, %s221
      %s236 = sphi 0, %s222
      %s240 = sphi 0, %s240
      %s242 = sphi 0, %s240
      %s243 = sphi 0, %s242
      %s257 = sphi 0, %s243
      %s261 = sphi 0, %s261
      %s263 = sphi 0, %s261
      %s264 = sphi 0, %s263
      %s278 = sphi 0, %s264
      %s284 = sphi 0, %s286
      %s287 = sphi 0, %s284
      %s288 = sphi 0, %s287
      %s304 = sphi 0, %s288
    $region4: #{tpu_custom_call.1} parent=1 // loop_header_branch
      %31 = sbr.rel (%p29) target = $region8
    $region5: #{tpu_custom_call.1} parent=1 // loop_body
      %s33 = ssub.s32 %s28, 1
      %s34 = ssub.s32 %s28, 2
      %s35 = sadd.s32 %s28, 1
      %s36 = ssub.s32 %s28, %s35
      %p37 = scmp.eq.s32.totalorder %s36, 0
      %s39 = sadd.s32 %s38, 1
      %s40 = scalar_select %p37, %s38, %s39
      %p43 = pneg %p37
      %p44 = scmp.eq.s32.totalorder %s28, 1
      %p45 = por %p43, %p44
      %p46 = scmp.ne.s32.totalorder %s38, %s41
      %p47 = scmp.eq.s32.totalorder %s28, 0
      %p48 = por %p46, %p47
      %p49 = scmp.ne.s32.totalorder %s38, %s41
      %p50 = scmp.eq.s32.totalorder %s33, 1
      %p51 = por %p49, %p50
      %p52 = scmp.ne.s32.totalorder %s41, %s42
      %p53 = scmp.eq.s32.totalorder %s33, 0
      %p54 = por %p52, %p53
      %p55 = scmp.ne.s32.totalorder %s41, %s42
      %p56 = scmp.eq.s32.totalorder %s34, 1
      %p57 = por %p55, %p56
      %p59 = scmp.ne.s32.totalorder %s42, %s58
      %p60 = scmp.eq.s32.totalorder %s34, 0
      %p61 = por %p59, %p60
      %s62 = ssub.s32 %s28, %s35
      %p63 = scmp.eq.s32.totalorder %s62, 0
      %s65 = sadd.s32 %s64, 1
      %s66 = scalar_select %p63, %s64, %s65
      %p69 = pneg %p63
      %p70 = scmp.eq.s32.totalorder %s28, 1
      %p71 = por %p69, %p70
      %p72 = scmp.ne.s32.totalorder %s64, %s67
      %p73 = scmp.eq.s32.totalorder %s28, 0
      %p74 = por %p72, %p73
      %p75 = scmp.ne.s32.totalorder %s64, %s67
      %p76 = scmp.eq.s32.totalorder %s33, 1
      %p77 = por %p75, %p76
      %p78 = scmp.ne.s32.totalorder %s67, %s68
      %p79 = scmp.eq.s32.totalorder %s33, 0
      %p80 = por %p78, %p79
      %p81 = scmp.ne.s32.totalorder %s67, %s68
      %p82 = scmp.eq.s32.totalorder %s34, 1
      %p83 = por %p81, %p82
      %p85 = scmp.ne.s32.totalorder %s68, %s84
      %p86 = scmp.eq.s32.totalorder %s34, 0
      %p87 = por %p85, %p86
      %s88 = ssub.s32 %s28, %s35
      %p89 = scmp.eq.s32.totalorder %s88, 0
      %s91 = sadd.s32 %s90, 1
      %s92 = scalar_select %p89, %s90, %s91
      %p95 = pneg %p89
      %p96 = scmp.eq.s32.totalorder %s28, 1
      %p97 = por %p95, %p96
      %p98 = scmp.ne.s32.totalorder %s90, %s93
      %p99 = scmp.eq.s32.totalorder %s28, 0
      %p100 = por %p98, %p99
      %p101 = scmp.ne.s32.totalorder %s90, %s93
      %p102 = scmp.eq.s32.totalorder %s33, 1
      %p103 = por %p101, %p102
      %p104 = scmp.ne.s32.totalorder %s93, %s94
      %p105 = scmp.eq.s32.totalorder %s33, 0
      %p106 = por %p104, %p105
      %p107 = scmp.ne.s32.totalorder %s93, %s94
      %p108 = scmp.eq.s32.totalorder %s34, 1
      %p109 = por %p107, %p108
      %p111 = scmp.ne.s32.totalorder %s94, %s110
      %p112 = scmp.eq.s32.totalorder %s34, 0
      %p113 = por %p111, %p112
      %s115 = sadd.s32 %s114, 1
      %p118 = scmp.eq.s32.totalorder %s28, 1
      %p119 = scmp.ne.s32.totalorder %s114, %s116
      %p120 = scmp.eq.s32.totalorder %s28, 0
      %p121 = por %p119, %p120
      %p122 = scmp.ne.s32.totalorder %s114, %s116
      %p123 = scmp.eq.s32.totalorder %s33, 1
      %p124 = por %p122, %p123
      %p125 = scmp.ne.s32.totalorder %s116, %s117
      %p126 = scmp.eq.s32.totalorder %s33, 0
      %p127 = por %p125, %p126
      %p128 = scmp.ne.s32.totalorder %s116, %s117
      %p129 = scmp.eq.s32.totalorder %s34, 1
      %p130 = por %p128, %p129
      %p132 = scmp.ne.s32.totalorder %s117, %s131
      %p133 = scmp.eq.s32.totalorder %s34, 0
      %p134 = por %p132, %p133
      %s136 = sadd.s32 %s135, 1
      %p139 = scmp.eq.s32.totalorder %s28, 1
      %p140 = scmp.ne.s32.totalorder %s135, %s137
      %p141 = scmp.eq.s32.totalorder %s28, 0
      %p142 = por %p140, %p141
      %p143 = scmp.ne.s32.totalorder %s135, %s137
      %p144 = scmp.eq.s32.totalorder %s33, 1
      %p145 = por %p143, %p144
      %p146 = scmp.ne.s32.totalorder %s137, %s138
      %p147 = scmp.eq.s32.totalorder %s33, 0
      %p148 = por %p146, %p147
      %p149 = scmp.ne.s32.totalorder %s137, %s138
      %p150 = scmp.eq.s32.totalorder %s34, 1
      %p151 = por %p149, %p150
      %p153 = scmp.ne.s32.totalorder %s138, %s152
      %p154 = scmp.eq.s32.totalorder %s34, 0
      %p155 = por %p153, %p154
      %s157 = sadd.s32 %s156, 1
      %p160 = scmp.eq.s32.totalorder %s28, 1
      %p161 = scmp.ne.s32.totalorder %s156, %s158
      %p162 = scmp.eq.s32.totalorder %s28, 0
      %p163 = por %p161, %p162
      %p164 = scmp.ne.s32.totalorder %s156, %s158
      %p165 = scmp.eq.s32.totalorder %s33, 1
      %p166 = por %p164, %p165
      %p167 = scmp.ne.s32.totalorder %s158, %s159
      %p168 = scmp.eq.s32.totalorder %s33, 0
      %p169 = por %p167, %p168
      %p170 = scmp.ne.s32.totalorder %s158, %s159
      %p171 = scmp.eq.s32.totalorder %s34, 1
      %p172 = por %p170, %p171
      %p174 = scmp.ne.s32.totalorder %s159, %s173
      %p175 = scmp.eq.s32.totalorder %s34, 0
      %p176 = por %p174, %p175
      %s178 = sadd.s32 %s177, 1
      %p181 = scmp.eq.s32.totalorder %s28, 1
      %p182 = scmp.ne.s32.totalorder %s177, %s179
      %p183 = scmp.eq.s32.totalorder %s28, 0
      %p184 = por %p182, %p183
      %p185 = scmp.ne.s32.totalorder %s177, %s179
      %p186 = scmp.eq.s32.totalorder %s33, 1
      %p187 = por %p185, %p186
      %p188 = scmp.ne.s32.totalorder %s179, %s180
      %p189 = scmp.eq.s32.totalorder %s33, 0
      %p190 = por %p188, %p189
      %p191 = scmp.ne.s32.totalorder %s179, %s180
      %p192 = scmp.eq.s32.totalorder %s34, 1
      %p193 = por %p191, %p192
      %p195 = scmp.ne.s32.totalorder %s180, %s194
      %p196 = scmp.eq.s32.totalorder %s34, 0
      %p197 = por %p195, %p196
      %s199 = sadd.s32 %s198, 1
      %p202 = scmp.eq.s32.totalorder %s28, 1
      %p203 = scmp.ne.s32.totalorder %s198, %s200
      %p204 = scmp.eq.s32.totalorder %s28, 0
      %p205 = por %p203, %p204
      %p206 = scmp.ne.s32.totalorder %s198, %s200
      %p207 = scmp.eq.s32.totalorder %s33, 1
      %p208 = por %p206, %p207
      %p209 = scmp.ne.s32.totalorder %s200, %s201
      %p210 = scmp.eq.s32.totalorder %s33, 0
      %p211 = por %p209, %p210
      %p212 = scmp.ne.s32.totalorder %s200, %s201
      %p213 = scmp.eq.s32.totalorder %s34, 1
      %p214 = por %p212, %p213
      %p216 = scmp.ne.s32.totalorder %s201, %s215
      %p217 = scmp.eq.s32.totalorder %s34, 0
      %p218 = por %p216, %p217
      %s220 = sadd.s32 %s219, 1
      %p223 = scmp.eq.s32.totalorder %s28, 1
      %p224 = scmp.ne.s32.totalorder %s219, %s221
      %p225 = scmp.eq.s32.totalorder %s28, 0
      %p226 = por %p224, %p225
      %p227 = scmp.ne.s32.totalorder %s219, %s221
      %p228 = scmp.eq.s32.totalorder %s33, 1
      %p229 = por %p227, %p228
      %p230 = scmp.ne.s32.totalorder %s221, %s222
      %p231 = scmp.eq.s32.totalorder %s33, 0
      %p232 = por %p230, %p231
      %p233 = scmp.ne.s32.totalorder %s221, %s222
      %p234 = scmp.eq.s32.totalorder %s34, 1
      %p235 = por %p233, %p234
      %p237 = scmp.ne.s32.totalorder %s222, %s236
      %p238 = scmp.eq.s32.totalorder %s34, 0
      %p239 = por %p237, %p238
      %s241 = sadd.s32 %s240, 1
      %p244 = scmp.eq.s32.totalorder %s28, 1
      %p245 = scmp.ne.s32.totalorder %s240, %s242
      %p246 = scmp.eq.s32.totalorder %s28, 0
      %p247 = por %p245, %p246
      %p248 = scmp.ne.s32.totalorder %s240, %s242
      %p249 = scmp.eq.s32.totalorder %s33, 1
      %p250 = por %p248, %p249
      %p251 = scmp.ne.s32.totalorder %s242, %s243
      %p252 = scmp.eq.s32.totalorder %s33, 0
      %p253 = por %p251, %p252
      %p254 = scmp.ne.s32.totalorder %s242, %s243
      %p255 = scmp.eq.s32.totalorder %s34, 1
      %p256 = por %p254, %p255
      %p258 = scmp.ne.s32.totalorder %s243, %s257
      %p259 = scmp.eq.s32.totalorder %s34, 0
      %p260 = por %p258, %p259
      %s262 = sadd.s32 %s261, 1
      %p265 = scmp.eq.s32.totalorder %s28, 1
      %p266 = scmp.ne.s32.totalorder %s261, %s263
      %p267 = scmp.eq.s32.totalorder %s28, 0
      %p268 = por %p266, %p267
      %p269 = scmp.ne.s32.totalorder %s261, %s263
      %p270 = scmp.eq.s32.totalorder %s33, 1
      %p271 = por %p269, %p270
      %p272 = scmp.ne.s32.totalorder %s263, %s264
      %p273 = scmp.eq.s32.totalorder %s33, 0
      %p274 = por %p272, %p273
      %p275 = scmp.ne.s32.totalorder %s263, %s264
      %p276 = scmp.eq.s32.totalorder %s34, 1
      %p277 = por %p275, %p276
      %p279 = scmp.ne.s32.totalorder %s264, %s278
      %p280 = scmp.eq.s32.totalorder %s34, 0
      %p281 = por %p279, %p280
      %s282 = ssub.s32 %s28, %s35
      %p283 = scmp.eq.s32.totalorder %s282, 0
      %s285 = sadd.s32 %s284, 1
      %s286 = scalar_select %p283, %s284, %s285
      %p289 = pneg %p283
      %p290 = scmp.eq.s32.totalorder %s28, 1
      %p291 = por %p289, %p290
      %p292 = scmp.ne.s32.totalorder %s284, %s287
      %p293 = scmp.eq.s32.totalorder %s28, 0
      %p294 = por %p292, %p293
      %p295 = scmp.ne.s32.totalorder %s284, %s287
      %p296 = scmp.eq.s32.totalorder %s33, 1
      %p297 = por %p295, %p296
      %p298 = scmp.ne.s32.totalorder %s287, %s288
      %p299 = scmp.eq.s32.totalorder %s33, 0
      %p300 = por %p298, %p299
      %p301 = scmp.ne.s32.totalorder %s287, %s288
      %p302 = scmp.eq.s32.totalorder %s34, 1
      %p303 = por %p301, %p302
      %p305 = scmp.ne.s32.totalorder %s288, %s304
      %p306 = scmp.eq.s32.totalorder %s34, 0
      %p307 = por %p305, %p306
      %p308 = scmp.le.s32.totalorder 1, %s28
      %p309 = scmp.lt.s32.totalorder %s28, 3
      %p310 = pnand %p308, %p309
      %p311 = pneg %p310
      // Predicated region
      $region9: #{tpu_custom_call.1} parent=5 // pred_check
        _
      $region10: #{tpu_custom_call.1} parent=5 // pred_check_branch
        %313 = sbr.rel (%p310) target = $region12
      $region11: #{tpu_custom_call.1} parent=5 // pred_region
        %s314 = ssub.s32 %s28, 1
        // Predicated region
        $region13: #{tpu_custom_call.1} parent=11 // pred_check
          %p315 = pneg %p127
        $region14: #{tpu_custom_call.1} parent=11 // pred_check_branch
          %317 = sbr.rel (%p315) target = $region16
        $region15: #{tpu_custom_call.1} parent=11 // pred_region
          %s319 = ssub.s32 512, 512
          %320 = vsyncadd [#allocation9], %s319
          %s321 = sshll.u32 [#allocation8], 4
          %s322 = int_to_ptr.vmem [resolvable:$true] %s321
          %327 = dma.hbm_to_vmem [thread:$0]  %s3, 512, %s322, [#allocation9], 128, 128, 8
        $region16: #{tpu_custom_call.1} parent=11 // pred_fallthru
          _
        // Predicated region
        $region17: #{tpu_custom_call.1} parent=11 // pred_check
          %p328 = pneg %p148
        $region18: #{tpu_custom_call.1} parent=11 // pred_check_branch
          %330 = sbr.rel (%p328) target = $region20
        $region19: #{tpu_custom_call.1} parent=11 // pred_region
          _
        $region20: #{tpu_custom_call.1} parent=11 // pred_fallthru
          _
        // Predicated region
        $region21: #{tpu_custom_call.1} parent=11 // pred_check
          %p331 = pneg %p169
        $region22: #{tpu_custom_call.1} parent=11 // pred_check_branch
          %333 = sbr.rel (%p331) target = $region24
        $region23: #{tpu_custom_call.1} parent=11 // pred_region
          %s335 = ssub.s32 512, 512
          %336 = vsyncadd [#allocation9], %s335
          %s337 = sshll.u32 [#allocation10], 4
          %s338 = int_to_ptr.vmem [resolvable:$true] %s337
          %343 = dma.hbm_to_vmem [thread:$0]  %s5, 512, %s338, [#allocation9], 128, 128, 8
        $region24: #{tpu_custom_call.1} parent=11 // pred_fallthru
          _
        // Predicated region
        $region25: #{tpu_custom_call.1} parent=11 // pred_check
          %p344 = pneg %p190
        $region26: #{tpu_custom_call.1} parent=11 // pred_check_branch
          %346 = sbr.rel (%p344) target = $region28
        $region27: #{tpu_custom_call.1} parent=11 // pred_region
          _
        $region28: #{tpu_custom_call.1} parent=11 // pred_fallthru
          _
        // Predicated region
        $region29: #{tpu_custom_call.1} parent=11 // pred_check
          %p347 = pneg %p211
        $region30: #{tpu_custom_call.1} parent=11 // pred_check_branch
          %349 = sbr.rel (%p347) target = $region32
        $region31: #{tpu_custom_call.1} parent=11 // pred_region
          %s351 = ssub.s32 512, 512
          %352 = vsyncadd [#allocation12], %s351
          %s353 = sshll.u32 [#allocation11], 4
          %s354 = int_to_ptr.vmem [resolvable:$true] %s353
          %359 = dma.hbm_to_vmem [thread:$0]  %s7, 512, %s354, [#allocation12], 128, 128, 8
        $region32: #{tpu_custom_call.1} parent=11 // pred_fallthru
          _
        // Predicated region
        $region33: #{tpu_custom_call.1} parent=11 // pred_check
          %p360 = pneg %p232
        $region34: #{tpu_custom_call.1} parent=11 // pred_check_branch
          %362 = sbr.rel (%p360) target = $region36
        $region35: #{tpu_custom_call.1} parent=11 // pred_region
          %s364 = ssub.s32 16, 16
          %365 = vsyncadd [#allocation12], %s364
          %s367 = sshll.u32 [#allocation13], 4
          %s368 = int_to_ptr.vmem [resolvable:$true] %s367
          %370 = dma.hbm_to_vmem [thread:$0]  %s8, 16, %s368, [#allocation12]
        $region36: #{tpu_custom_call.1} parent=11 // pred_fallthru
          _
        // Predicated region
        $region37: #{tpu_custom_call.1} parent=11 // pred_check
          %p371 = pneg %p253
        $region38: #{tpu_custom_call.1} parent=11 // pred_check_branch
          %373 = sbr.rel (%p371) target = $region40
        $region39: #{tpu_custom_call.1} parent=11 // pred_region
          _
        $region40: #{tpu_custom_call.1} parent=11 // pred_fallthru
          _
        // Predicated region
        $region41: #{tpu_custom_call.1} parent=11 // pred_check
          %p374 = pneg %p274
        $region42: #{tpu_custom_call.1} parent=11 // pred_check_branch
          %376 = sbr.rel (%p374) target = $region44
        $region43: #{tpu_custom_call.1} parent=11 // pred_region
          _
        $region44: #{tpu_custom_call.1} parent=11 // pred_fallthru
          _
      $region12: #{tpu_custom_call.1} parent=5 // pred_fallthru
        _
      %p377 = scmp.lt.s32.totalorder %s28, 2
      // Predicated region
      $region45: #{tpu_custom_call.1} parent=5 // pred_check
        %p378 = pneg %p377
      $region46: #{tpu_custom_call.1} parent=5 // pred_check_branch
        %380 = sbr.rel (%p378) target = $region48
      $region47: #{tpu_custom_call.1} parent=5 // pred_region
        // Predicated region
        $region49: #{tpu_custom_call.1} parent=47 // pred_check
          %p381 = pneg %p48
        $region50: #{tpu_custom_call.1} parent=47 // pred_check_branch
          %383 = sbr.rel (%p381) target = $region52
        $region51: #{tpu_custom_call.1} parent=47 // pred_region
          %s384 = sand.u32 %s38, 1
          %s385 = scalar_lea.sflag [#allocation3], %s384
          %s386 = sand.u32 %s38, 1
          %s387 = smul.addr %s386, 8
          %s388 = scalar_lea.vmem [#allocation2], %s387
          %s390 = ssub.s32 128, 128
          %391 = vsyncadd %s385, %s390
          %s392 = smul.addr %s28, 128
          %s393 = scalar_lea.hbm %s0, %s392
          %s395 = sshll.u32 %s388, 4
          %s396 = int_to_ptr.vmem [resolvable:$true] %s395
          %398 = dma.hbm_to_vmem [thread:$0]  %s393, 128, %s396, %s385
        $region52: #{tpu_custom_call.1} parent=47 // pred_fallthru
          _
        // Predicated region
        $region53: #{tpu_custom_call.1} parent=47 // pred_check
          %p399 = pneg %p74
        $region54: #{tpu_custom_call.1} parent=47 // pred_check_branch
          %401 = sbr.rel (%p399) target = $region56
        $region55: #{tpu_custom_call.1} parent=47 // pred_region
          %s402 = sand.u32 %s28, 1
          %s403 = scalar_lea.sflag [#allocation6], %s402
          %s404 = sand.u32 %s64, 1
          %s405 = smul.addr %s404, 8
          %s406 = scalar_lea.vmem [#allocation5], %s405
          %s408 = ssub.s32 128, 128
          %409 = vsyncadd %s403, %s408
          %s410 = smul.addr %s28, 128
          %s411 = scalar_lea.hbm %s1, %s410
          %s413 = sshll.u32 %s406, 4
          %s414 = int_to_ptr.vmem [resolvable:$true] %s413
          %416 = dma.hbm_to_vmem [thread:$0]  %s411, 128, %s414, %s403
        $region56: #{tpu_custom_call.1} parent=47 // pred_fallthru
          _
        // Predicated region
        $region57: #{tpu_custom_call.1} parent=47 // pred_check
          %p417 = pneg %p100
        $region58: #{tpu_custom_call.1} parent=47 // pred_check_branch
          %419 = sbr.rel (%p417) target = $region60
        $region59: #{tpu_custom_call.1} parent=47 // pred_region
          %s420 = sand.u32 %s28, 1
          %s421 = scalar_lea.sflag [#allocation6], %s420
          %s422 = sand.u32 %s90, 1
          %s423 = smul.addr %s422, 8
          %s424 = scalar_lea.vmem [#allocation7], %s423
          %s426 = ssub.s32 128, 128
          %427 = vsyncadd %s421, %s426
          %s428 = smul.addr %s28, 128
          %s429 = scalar_lea.hbm %s2, %s428
          %s431 = sshll.u32 %s424, 4
          %s432 = int_to_ptr.vmem [resolvable:$true] %s431
          %434 = dma.hbm_to_vmem [thread:$0]  %s429, 128, %s432, %s421
        $region60: #{tpu_custom_call.1} parent=47 // pred_fallthru
          _
      $region48: #{tpu_custom_call.1} parent=5 // pred_fallthru
        _
      %p435 = scmp.le.s32.totalorder 1, %s28
      %p436 = scmp.lt.s32.totalorder %s28, 3
      %p437 = pnand %p435, %p436
      %p438 = pneg %p437
      // Predicated region
      $region61: #{tpu_custom_call.1} parent=5 // pred_check
        _
      $region62: #{tpu_custom_call.1} parent=5 // pred_check_branch
        %440 = sbr.rel (%p437) target = $region64
      $region63: #{tpu_custom_call.1} parent=5 // pred_region
        %s441 = ssub.s32 %s28, 1
        %s442 = sand.u32 %s41, 1
        %s443 = scalar_lea.sflag [#allocation3], %s442
        %s444 = sand.u32 %s41, 1
        %s445 = smul.addr %s444, 8
        %s446 = scalar_lea.vmem [#allocation2], %s445
        // Predicated region
        $region65: #{tpu_custom_call.1} parent=63 // pred_check
          %p447 = pneg %p54
        $region66: #{tpu_custom_call.1} parent=63 // pred_check_branch
          %449 = sbr.rel (%p447) target = $region68
        $region67: #{tpu_custom_call.1} parent=63 // pred_region
          %450 = dma.done %s443, 128
        $region68: #{tpu_custom_call.1} parent=63 // pred_fallthru
          _
        %s451 = sand.u32 %s33, 1
        %s452 = scalar_lea.sflag [#allocation6], %s451
        %s453 = sand.u32 %s67, 1
        %s454 = smul.addr %s453, 8
        %s455 = scalar_lea.vmem [#allocation5], %s454
        // Predicated region
        $region69: #{tpu_custom_call.1} parent=63 // pred_check
          %p456 = pneg %p80
        $region70: #{tpu_custom_call.1} parent=63 // pred_check_branch
          %458 = sbr.rel (%p456) target = $region72
        $region71: #{tpu_custom_call.1} parent=63 // pred_region
          %459 = dma.done %s452, 128
        $region72: #{tpu_custom_call.1} parent=63 // pred_fallthru
          _
        %s460 = sand.u32 %s33, 1
        %s461 = scalar_lea.sflag [#allocation6], %s460
        %s462 = sand.u32 %s93, 1
        %s463 = smul.addr %s462, 8
        %s464 = scalar_lea.vmem [#allocation7], %s463
        // Predicated region
        $region73: #{tpu_custom_call.1} parent=63 // pred_check
          %p465 = pneg %p106
        $region74: #{tpu_custom_call.1} parent=63 // pred_check_branch
          %467 = sbr.rel (%p465) target = $region76
        $region75: #{tpu_custom_call.1} parent=63 // pred_region
          %468 = dma.done %s461, 128
        $region76: #{tpu_custom_call.1} parent=63 // pred_fallthru
          _
        // Predicated region
        $region77: #{tpu_custom_call.1} parent=63 // pred_check
          %p469 = pneg %p127
        $region78: #{tpu_custom_call.1} parent=63 // pred_check_branch
          %471 = sbr.rel (%p469) target = $region80
        $region79: #{tpu_custom_call.1} parent=63 // pred_region
          %472 = dma.done [#allocation9], 512
        $region80: #{tpu_custom_call.1} parent=63 // pred_fallthru
          _
        // Predicated region
        $region81: #{tpu_custom_call.1} parent=63 // pred_check
          %p473 = pneg %p169
        $region82: #{tpu_custom_call.1} parent=63 // pred_check_branch
          %475 = sbr.rel (%p473) target = $region84
        $region83: #{tpu_custom_call.1} parent=63 // pred_region
          %476 = dma.done [#allocation9], 512
        $region84: #{tpu_custom_call.1} parent=63 // pred_fallthru
          _
        // Predicated region
        $region85: #{tpu_custom_call.1} parent=63 // pred_check
          %p477 = pneg %p211
        $region86: #{tpu_custom_call.1} parent=63 // pred_check_branch
          %479 = sbr.rel (%p477) target = $region88
        $region87: #{tpu_custom_call.1} parent=63 // pred_region
          %480 = dma.done [#allocation12], 512
        $region88: #{tpu_custom_call.1} parent=63 // pred_fallthru
          _
        // Predicated region
        $region89: #{tpu_custom_call.1} parent=63 // pred_check
          %p481 = pneg %p232
        $region90: #{tpu_custom_call.1} parent=63 // pred_check_branch
          %483 = sbr.rel (%p481) target = $region92
        $region91: #{tpu_custom_call.1} parent=63 // pred_region
          %484 = dma.done [#allocation12], 16
        $region92: #{tpu_custom_call.1} parent=63 // pred_fallthru
          _
        %s485 = sand.u32 %s41, 1
        %s486 = scalar_lea.sflag [#allocation3], %s485
        %s487 = sand.u32 %s41, 1
        %s488 = smul.addr %s487, 8
        %s489 = scalar_lea.vmem [#allocation2], %s488
        %p490 = pneg %p54
        %p491 = pneg %p51
        %s492 = sand.u32 %s33, 1
        %s493 = scalar_lea.sflag [#allocation6], %s492
        %s494 = sand.u32 %s67, 1
        %s495 = smul.addr %s494, 8
        %s496 = scalar_lea.vmem [#allocation5], %s495
        %p497 = pneg %p80
        %p498 = pneg %p77
        %s499 = sand.u32 %s33, 1
        %s500 = scalar_lea.sflag [#allocation6], %s499
        %s501 = sand.u32 %s93, 1
        %s502 = smul.addr %s501, 8
        %s503 = scalar_lea.vmem [#allocation7], %s502
        %p504 = pneg %p106
        %p505 = pneg %p103
        %p506 = pneg %p127
        %p507 = pneg %p124
        %p508 = pneg %p148
        %p509 = pneg %p145
        %p510 = pneg %p169
        %p511 = pneg %p166
        %p512 = pneg %p190
        %p513 = pneg %p187
        %p514 = pneg %p211
        %p515 = pneg %p208
        %p516 = pneg %p232
        %p517 = pneg %p229
        %p518 = pneg %p253
        %p519 = pneg %p250
        %p520 = pneg %p274
        %p521 = pneg %p271
        %p522 = pneg %p300
        %p523 = pneg %p297
        %s524 = sand.u32 %s287, 1
        %s525 = scalar_lea.sflag [#allocation4], %s524
        %s526 = sand.u32 %s287, 1
        %s527 = smul.addr %s526, 8
        %s528 = scalar_lea.vmem [#allocation14], %s527
        %v530 = vld [vmem:[%s446] sm:$0xff]
        %v531 = vpack.c.bf16 %v530, %v530
        %v532 = vld [vmem:[%s455] sm:$0xff]
        %v533 = vpack.c.bf16 %v532, %v532
        %v534 = vld [vmem:[%s464] sm:$0xff]
        %v535 = vpack.c.bf16 %v534, %v534
        %v536 = vld [vmem:[#allocation8] sm:$0xff]
        %v537 = vld [vmem:[#allocation8 + $0x8] sm:$0xff]
        %v538 = vld [vmem:[#allocation8 + $0x10] sm:$0xff]
        %v539 = vld [vmem:[#allocation8 + $0x18] sm:$0xff]
        %v540 = vpack.c.bf16 %v537, %v536
        %v541 = vpack.c.bf16 %v539, %v538
        %v542 = vld [vmem:[#allocation10] sm:$0xff]
        %v543 = vld [vmem:[#allocation10 + $0x8] sm:$0xff]
        %v544 = vld [vmem:[#allocation10 + $0x10] sm:$0xff]
        %v545 = vld [vmem:[#allocation10 + $0x18] sm:$0xff]
        %v546 = vpack.c.bf16 %v543, %v542
        %v547 = vpack.c.bf16 %v545, %v544
        %v548 = vld [vmem:[#allocation11] sm:$0xff]
        %v549 = vld [vmem:[#allocation11 + $0x8] sm:$0xff]
        %v550 = vld [vmem:[#allocation11 + $0x10] sm:$0xff]
        %v551 = vld [vmem:[#allocation11 + $0x18] sm:$0xff]
        %v552 = vpack.c.bf16 %v549, %v548
        %v553 = vpack.c.bf16 %v551, %v550
        %v554 = vld [vmem:[%s4] sm:$0x1]
        %v556 = vlaneseq
        %v557 = vshrl.u32 %v556, 7
        %v558 = vsub.s32 0, %v557
        %v559 = vrot.slane %v554, %v558
        %vm561 = vcmask 261120
        %v563 = vsel %vm561, %v531, 0
        %565 = vmatprep.subr.bf16.mxu0 0
        %566 = vmatpush1.bf16.msra.mxu0 %v540
        %567 = vmatprep.subr.bf16.mxu0 0
        %568 = vmatpush1.bf16.msra.mxu0 %v541
        %569 = vmatprep.subr.bf16.mxu0 0
        %570 = vmatpush1.bf16.msra.mxu0 0
        %571 = vmatprep.subr.bf16.mxu0 0
        %572 = vmatpush1.bf16.msra.mxu0 0
        %573 = vmatprep.subr.bf16.mxu0 0
        %574 = vmatpush1.bf16.msra.mxu0 0
        %575 = vmatprep.subr.bf16.mxu0 0
        %576 = vmatpush1.bf16.msra.mxu0 0
        %577 = vmatprep.subr.bf16.mxu0 0
        %578 = vmatpush1.bf16.msra.mxu0 0
        %579 = vmatprep.subr.bf16.mxu0 0
        %580 = vmatpush1.bf16.msra.mxu0 0
        %581 = vmatprep.subr.bf16.mxu0 0
        %582 = vmatpush1.bf16.msra.mxu0 0
        %583 = vmatprep.subr.bf16.mxu0 0
        %584 = vmatpush1.bf16.msra.mxu0 0
        %585 = vmatprep.subr.bf16.mxu0 0
        %586 = vmatpush1.bf16.msra.mxu0 0
        %587 = vmatprep.subr.bf16.mxu0 0
        %588 = vmatpush1.bf16.msra.mxu0 0
        %589 = vmatprep.subr.bf16.mxu0 0
        %590 = vmatpush1.bf16.msra.mxu0 0
        %591 = vmatprep.subr.bf16.mxu0 0
        %592 = vmatpush1.bf16.msra.mxu0 0
        %593 = vmatprep.subr.bf16.mxu0 0
        %594 = vmatpush1.bf16.msra.mxu0 0
        %595 = vmatprep.subr.bf16.mxu0 0
        %596 = vmatpush1.bf16.msra.mxu0 0
        %597 = vmatprep.mubr.bf16.mxu0 0
        %598 = vmatmul.mubr.bf16.gmra.mrb[0].mxu0 %v563
        %v599 = vpop.f32.mrb[0].mxu0
        %v600 = vadd.f32 %v559, %v599
        %v601 = vpop.f32.mrb[0].mxu0
        %v602 = vpop.f32.mrb[0].mxu0
        %v603 = vpop.f32.mrb[0].mxu0
        %604 = vdwg.mxu0
        %v605 = vmul.f32 %v600, 0.35355338
        %v606 = vpack.c.bf16 %v605, %v605
        %v607 = vld [vmem:[%s6] sm:$0x1]
        %v609 = vlaneseq
        %v610 = vshrl.u32 %v609, 7
        %v611 = vsub.s32 0, %v610
        %v612 = vrot.slane %v607, %v611
        %v615 = vsel %vm561, %v533, 0
        %617 = vmatprep.subr.bf16.mxu0 0
        %618 = vmatpush1.bf16.msra.mxu0 %v546
        %619 = vmatprep.subr.bf16.mxu0 0
        %620 = vmatpush1.bf16.msra.mxu0 %v547
        %621 = vmatprep.subr.bf16.mxu0 0
        %622 = vmatpush1.bf16.msra.mxu0 0
        %623 = vmatprep.subr.bf16.mxu0 0
        %624 = vmatpush1.bf16.msra.mxu0 0
        %625 = vmatprep.subr.bf16.mxu0 0
        %626 = vmatpush1.bf16.msra.mxu0 0
        %627 = vmatprep.subr.bf16.mxu0 0
        %628 = vmatpush1.bf16.msra.mxu0 0
        %629 = vmatprep.subr.bf16.mxu0 0
        %630 = vmatpush1.bf16.msra.mxu0 0
        %631 = vmatprep.subr.bf16.mxu0 0
        %632 = vmatpush1.bf16.msra.mxu0 0
        %633 = vmatprep.subr.bf16.mxu0 0
        %634 = vmatpush1.bf16.msra.mxu0 0
        %635 = vmatprep.subr.bf16.mxu0 0
        %636 = vmatpush1.bf16.msra.mxu0 0
        %637 = vmatprep.subr.bf16.mxu0 0
        %638 = vmatpush1.bf16.msra.mxu0 0
        %639 = vmatprep.subr.bf16.mxu0 0
        %640 = vmatpush1.bf16.msra.mxu0 0
        %641 = vmatprep.subr.bf16.mxu0 0
        %642 = vmatpush1.bf16.msra.mxu0 0
        %643 = vmatprep.subr.bf16.mxu0 0
        %644 = vmatpush1.bf16.msra.mxu0 0
        %645 = vmatprep.subr.bf16.mxu0 0
        %646 = vmatpush1.bf16.msra.mxu0 0
        %647 = vmatprep.subr.bf16.mxu0 0
        %648 = vmatpush1.bf16.msra.mxu0 0
        %649 = vmatprep.mubr.bf16.mxu0 0
        %650 = vmatmul.mubr.bf16.gmra.mrb[0].mxu0 %v615
        %v651 = vpop.f32.mrb[0].mxu0
        %v652 = vadd.f32 %v612, %v651
        %v653 = vpop.f32.mrb[0].mxu0
        %v654 = vpop.f32.mrb[0].mxu0
        %v655 = vpop.f32.mrb[0].mxu0
        %656 = vdwg.mxu0
        %v657 = vpack.c.bf16 %v652, %v652
        %v658 = vld [vmem:[#allocation13] sm:$0x1]
        %v660 = vlaneseq
        %v661 = vshrl.u32 %v660, 7
        %v662 = vsub.s32 0, %v661
        %v663 = vrot.slane %v658, %v662
        %v666 = vsel %vm561, %v535, 0
        %668 = vmatprep.subr.bf16.mxu0 0
        %669 = vmatpush1.bf16.msra.mxu0 %v552
        %670 = vmatprep.subr.bf16.mxu0 0
        %671 = vmatpush1.bf16.msra.mxu0 %v553
        %672 = vmatprep.subr.bf16.mxu0 0
        %673 = vmatpush1.bf16.msra.mxu0 0
        %674 = vmatprep.subr.bf16.mxu0 0
        %675 = vmatpush1.bf16.msra.mxu0 0
        %676 = vmatprep.subr.bf16.mxu0 0
        %677 = vmatpush1.bf16.msra.mxu0 0
        %678 = vmatprep.subr.bf16.mxu0 0
        %679 = vmatpush1.bf16.msra.mxu0 0
        %680 = vmatprep.subr.bf16.mxu0 0
        %681 = vmatpush1.bf16.msra.mxu0 0
        %682 = vmatprep.subr.bf16.mxu0 0
        %683 = vmatpush1.bf16.msra.mxu0 0
        %684 = vmatprep.subr.bf16.mxu0 0
        %685 = vmatpush1.bf16.msra.mxu0 0
        %686 = vmatprep.subr.bf16.mxu0 0
        %687 = vmatpush1.bf16.msra.mxu0 0
        %688 = vmatprep.subr.bf16.mxu0 0
        %689 = vmatpush1.bf16.msra.mxu0 0
        %690 = vmatprep.subr.bf16.mxu0 0
        %691 = vmatpush1.bf16.msra.mxu0 0
        %692 = vmatprep.subr.bf16.mxu0 0
        %693 = vmatpush1.bf16.msra.mxu0 0
        %694 = vmatprep.subr.bf16.mxu0 0
        %695 = vmatpush1.bf16.msra.mxu0 0
        %696 = vmatprep.subr.bf16.mxu0 0
        %697 = vmatpush1.bf16.msra.mxu0 0
        %698 = vmatprep.subr.bf16.mxu0 0
        %699 = vmatpush1.bf16.msra.mxu0 0
        %700 = vmatprep.mubr.bf16.mxu0 0
        %701 = vmatmul.mubr.bf16.gmra.mrb[0].mxu0 %v666
        %v702 = vpop.f32.mrb[0].mxu0
        %v703 = vadd.f32 %v663, %v702
        %v704 = vpop.f32.mrb[0].mxu0
        %v705 = vpop.f32.mrb[0].mxu0
        %v706 = vpop.f32.mrb[0].mxu0
        %707 = vdwg.mxu0
        %v708 = vpack.c.bf16 %v703, %v703
        %v709 = vlaneseq
        %v710 = vshrl.u32 %v709, 7
        %v711 = vlaneseq
        %v712 = vand.u32 %v711, 127
        %vm713 = vcmp.gt.s32.totalorder %v712, %v710
        %vm714 = vcmask 64512
        %v716 = vsel %vm714, %v606, 0
        %v719 = vsel %vm714, %v657, 0
        %721 = vmatprep.subr.bf16.mxu0 0
        %722 = vmatpush1.bf16.xpose.msra.mxu0 %v719
        %723 = vmatprep.subr.bf16.mxu0 0
        %724 = vmatpush1.bf16.xpose.msra.mxu0 0
        %725 = vmatprep.subr.bf16.mxu0 0
        %726 = vmatpush1.bf16.xpose.msra.mxu0 0
        %727 = vmatprep.subr.bf16.mxu0 0
        %728 = vmatpush1.bf16.xpose.msra.mxu0 0
        %729 = vmatprep.subr.bf16.mxu0 0
        %730 = vmatpush1.bf16.xpose.msra.mxu0 0
        %731 = vmatprep.subr.bf16.mxu0 0
        %732 = vmatpush1.bf16.xpose.msra.mxu0 0
        %733 = vmatprep.subr.bf16.mxu0 0
        %734 = vmatpush1.bf16.xpose.msra.mxu0 0
        %735 = vmatprep.subr.bf16.mxu0 0
        %736 = vmatpush1.bf16.xpose.msra.mxu0 0
        %737 = vmatprep.subr.bf16.mxu0 0
        %738 = vmatpush1.bf16.xpose.msra.mxu0 0
        %739 = vmatprep.subr.bf16.mxu0 0
        %740 = vmatpush1.bf16.xpose.msra.mxu0 0
        %741 = vmatprep.subr.bf16.mxu0 0
        %742 = vmatpush1.bf16.xpose.msra.mxu0 0
        %743 = vmatprep.subr.bf16.mxu0 0
        %744 = vmatpush1.bf16.xpose.msra.mxu0 0
        %745 = vmatprep.subr.bf16.mxu0 0
        %746 = vmatpush1.bf16.xpose.msra.mxu0 0
        %747 = vmatprep.subr.bf16.mxu0 0
        %748 = vmatpush1.bf16.xpose.msra.mxu0 0
        %749 = vmatprep.subr.bf16.mxu0 0
        %750 = vmatpush1.bf16.xpose.msra.mxu0 0
        %751 = vmatprep.subr.bf16.mxu0 0
        %752 = vmatpush1.bf16.xpose.msra.mxu0 0
        %753 = vmatprep.mubr.bf16.mxu0 0
        %754 = vmatmul.mubr.bf16.gmra.mrb[0].mxu0 %v716
        %v755 = vpop.f32.mrb[0].mxu0
        %v756 = vadd.f32 0.0, %v755
        %v757 = vpop.f32.mrb[0].mxu0
        %v758 = vpop.f32.mrb[0].mxu0
        %v759 = vpop.f32.mrb[0].mxu0
        %760 = vdwg.mxu0
        %v761 = vsel %vm713, -100.0, %v756
        %v762 = vsel %vm714, %v761, -inf
        %763 = vmax.xlane.f32.xlu0 %v762
        %v764 = vpop.xlane.xlu0 %763
        %v765 = vsub.f32 %v761, %v764
        %v766 = vmul.f32 %v765, 1.442695
        %v767 = vpow.pop %v766
        %v768 = vsel %vm714, %v767, 0.0
        %769 = vadd.xlane.f32.xlu0 %v768
        %v770 = vpop.xlane.xlu0 %769
        %v771 = vpack.c.bf16 %v767, %v767
        %v773 = vsel %vm714, %v771, 0
        %vm775 = vcmask 1043456
        %v777 = vsel %vm775, %v708, 0
        %779 = vmatprep.subr.bf16.mxu0 0
        %780 = vmatpush1.bf16.msra.mxu0 %v777
        %781 = vmatprep.subr.bf16.mxu0 0
        %782 = vmatpush1.bf16.msra.mxu0 0
        %783 = vmatprep.subr.bf16.mxu0 0
        %784 = vmatpush1.bf16.msra.mxu0 0
        %785 = vmatprep.subr.bf16.mxu0 0
        %786 = vmatpush1.bf16.msra.mxu0 0
        %787 = vmatprep.subr.bf16.mxu0 0
        %788 = vmatpush1.bf16.msra.mxu0 0
        %789 = vmatprep.subr.bf16.mxu0 0
        %790 = vmatpush1.bf16.msra.mxu0 0
        %791 = vmatprep.subr.bf16.mxu0 0
        %792 = vmatpush1.bf16.msra.mxu0 0
        %793 = vmatprep.subr.bf16.mxu0 0
        %794 = vmatpush1.bf16.msra.mxu0 0
        %795 = vmatprep.subr.bf16.mxu0 0
        %796 = vmatpush1.bf16.msra.mxu0 0
        %797 = vmatprep.subr.bf16.mxu0 0
        %798 = vmatpush1.bf16.msra.mxu0 0
        %799 = vmatprep.subr.bf16.mxu0 0
        %800 = vmatpush1.bf16.msra.mxu0 0
        %801 = vmatprep.subr.bf16.mxu0 0
        %802 = vmatpush1.bf16.msra.mxu0 0
        %803 = vmatprep.subr.bf16.mxu0 0
        %804 = vmatpush1.bf16.msra.mxu0 0
        %805 = vmatprep.subr.bf16.mxu0 0
        %806 = vmatpush1.bf16.msra.mxu0 0
        %807 = vmatprep.subr.bf16.mxu0 0
        %808 = vmatpush1.bf16.msra.mxu0 0
        %809 = vmatprep.subr.bf16.mxu0 0
        %810 = vmatpush1.bf16.msra.mxu0 0
        %811 = vmatprep.mubr.bf16.mxu0 0
        %812 = vmatmul.mubr.bf16.gmra.mrb[0].mxu0 %v773
        %v813 = vpop.f32.mrb[0].mxu0
        %v814 = vadd.f32 0.0, %v813
        %v815 = vpop.f32.mrb[0].mxu0
        %v816 = vpop.f32.mrb[0].mxu0
        %v817 = vpop.f32.mrb[0].mxu0
        %818 = vdwg.mxu0
        %v819 = vrcp.pop %v770
        %v820 = vmul.f32 %v814, %v819
        %v821 = vpack.c.bf16 %v820, %v820
        %v822 = vld [vmem:[%s9] sm:$0xff]
        %v823 = vpack.c.bf16 %v822, %v822
        %825 = vrot.lane.b32.xlu0 %v606, 120
        %v826 = vpop.permute.xlu0 %825
        %828 = vrot.lane.b32.xlu0 %v657, 120
        %v829 = vpop.permute.xlu0 %828
        %v831 = vsel %vm714, %v826, 0
        %v834 = vsel %vm714, %v829, 0
        %836 = vmatprep.subr.bf16.mxu0 0
        %837 = vmatpush1.bf16.xpose.msra.mxu0 %v834
        %838 = vmatprep.subr.bf16.mxu0 0
        %839 = vmatpush1.bf16.xpose.msra.mxu0 0
        %840 = vmatprep.subr.bf16.mxu0 0
        %841 = vmatpush1.bf16.xpose.msra.mxu0 0
        %842 = vmatprep.subr.bf16.mxu0 0
        %843 = vmatpush1.bf16.xpose.msra.mxu0 0
        %844 = vmatprep.subr.bf16.mxu0 0
        %845 = vmatpush1.bf16.xpose.msra.mxu0 0
        %846 = vmatprep.subr.bf16.mxu0 0
        %847 = vmatpush1.bf16.xpose.msra.mxu0 0
        %848 = vmatprep.subr.bf16.mxu0 0
        %849 = vmatpush1.bf16.xpose.msra.mxu0 0
        %850 = vmatprep.subr.bf16.mxu0 0
        %851 = vmatpush1.bf16.xpose.msra.mxu0 0
        %852 = vmatprep.subr.bf16.mxu0 0
        %853 = vmatpush1.bf16.xpose.msra.mxu0 0
        %854 = vmatprep.subr.bf16.mxu0 0
        %855 = vmatpush1.bf16.xpose.msra.mxu0 0
        %856 = vmatprep.subr.bf16.mxu0 0
        %857 = vmatpush1.bf16.xpose.msra.mxu0 0
        %858 = vmatprep.subr.bf16.mxu0 0
        %859 = vmatpush1.bf16.xpose.msra.mxu0 0
        %860 = vmatprep.subr.bf16.mxu0 0
        %861 = vmatpush1.bf16.xpose.msra.mxu0 0
        %862 = vmatprep.subr.bf16.mxu0 0
        %863 = vmatpush1.bf16.xpose.msra.mxu0 0
        %864 = vmatprep.subr.bf16.mxu0 0
        %865 = vmatpush1.bf16.xpose.msra.mxu0 0
        %866 = vmatprep.subr.bf16.mxu0 0
        %867 = vmatpush1.bf16.xpose.msra.mxu0 0
        %868 = vmatprep.mubr.bf16.mxu0 0
        %869 = vmatmul.mubr.bf16.gmra.mrb[0].mxu0 %v831
        %v870 = vpop.f32.mrb[0].mxu0
        %v871 = vadd.f32 0.0, %v870
        %v872 = vpop.f32.mrb[0].mxu0
        %v873 = vpop.f32.mrb[0].mxu0
        %v874 = vpop.f32.mrb[0].mxu0
        %875 = vdwg.mxu0
        %v876 = vsel %vm713, -100.0, %v871
        %v877 = vsel %vm714, %v876, -inf
        %878 = vmax.xlane.f32.xlu0 %v877
        %v879 = vpop.xlane.xlu0 %878
        %v880 = vsub.f32 %v876, %v879
        %v881 = vmul.f32 %v880, 1.442695
        %v882 = vpow.pop %v881
        %v883 = vsel %vm714, %v882, 0.0
        %884 = vadd.xlane.f32.xlu0 %v883
        %v885 = vpop.xlane.xlu0 %884
        %v886 = vpack.c.bf16 %v882, %v882
        %888 = vrot.lane.b32.xlu0 %v708, 120
        %v889 = vpop.permute.xlu0 %888
        %v891 = vsel %vm714, %v886, 0
        %v894 = vsel %vm775, %v889, 0
        %896 = vmatprep.subr.bf16.mxu0 0
        %897 = vmatpush1.bf16.msra.mxu0 %v894
        %898 = vmatprep.subr.bf16.mxu0 0
        %899 = vmatpush1.bf16.msra.mxu0 0
        %900 = vmatprep.subr.bf16.mxu0 0
        %901 = vmatpush1.bf16.msra.mxu0 0
        %902 = vmatprep.subr.bf16.mxu0 0
        %903 = vmatpush1.bf16.msra.mxu0 0
        %904 = vmatprep.subr.bf16.mxu0 0
        %905 = vmatpush1.bf16.msra.mxu0 0
        %906 = vmatprep.subr.bf16.mxu0 0
        %907 = vmatpush1.bf16.msra.mxu0 0
        %908 = vmatprep.subr.bf16.mxu0 0
        %909 = vmatpush1.bf16.msra.mxu0 0
        %910 = vmatprep.subr.bf16.mxu0 0
        %911 = vmatpush1.bf16.msra.mxu0 0
        %912 = vmatprep.subr.bf16.mxu0 0
        %913 = vmatpush1.bf16.msra.mxu0 0
        %914 = vmatprep.subr.bf16.mxu0 0
        %915 = vmatpush1.bf16.msra.mxu0 0
        %916 = vmatprep.subr.bf16.mxu0 0
        %917 = vmatpush1.bf16.msra.mxu0 0
        %918 = vmatprep.subr.bf16.mxu0 0
        %919 = vmatpush1.bf16.msra.mxu0 0
        %920 = vmatprep.subr.bf16.mxu0 0
        %921 = vmatpush1.bf16.msra.mxu0 0
        %922 = vmatprep.subr.bf16.mxu0 0
        %923 = vmatpush1.bf16.msra.mxu0 0
        %924 = vmatprep.subr.bf16.mxu0 0
        %925 = vmatpush1.bf16.msra.mxu0 0
        %926 = vmatprep.subr.bf16.mxu0 0
        %927 = vmatpush1.bf16.msra.mxu0 0
        %928 = vmatprep.mubr.bf16.mxu0 0
        %929 = vmatmul.mubr.bf16.gmra.mrb[0].mxu0 %v891
        %v930 = vpop.f32.mrb[0].mxu0
        %v931 = vadd.f32 0.0, %v930
        %v932 = vpop.f32.mrb[0].mxu0
        %v933 = vpop.f32.mrb[0].mxu0
        %v934 = vpop.f32.mrb[0].mxu0
        %935 = vdwg.mxu0
        %v936 = vrcp.pop %v885
        %v937 = vmul.f32 %v931, %v936
        %v938 = vpack.c.bf16 %v937, %v937
        %s939 = scalar_lea.vmem %s9, 8
        %v940 = vld [vmem:[%s939] sm:$0xff]
        %v941 = vpack.c.bf16 %v940, %v940
        %v943 = vsel %vm714, %v938, 0
        %v946 = vsel %vm775, %v941, 0
        %948 = vmatprep.subr.bf16.mxu0 0
        %949 = vmatpush1.bf16.msra.mxu0 %v946
        %950 = vmatprep.subr.bf16.mxu0 0
        %951 = vmatpush1.bf16.msra.mxu0 0
        %952 = vmatprep.subr.bf16.mxu0 0
        %953 = vmatpush1.bf16.msra.mxu0 0
        %954 = vmatprep.subr.bf16.mxu0 0
        %955 = vmatpush1.bf16.msra.mxu0 0
        %956 = vmatprep.subr.bf16.mxu0 0
        %957 = vmatpush1.bf16.msra.mxu0 0
        %958 = vmatprep.subr.bf16.mxu0 0
        %959 = vmatpush1.bf16.msra.mxu0 0
        %960 = vmatprep.subr.bf16.mxu0 0
        %961 = vmatpush1.bf16.msra.mxu0 0
        %962 = vmatprep.subr.bf16.mxu0 0
        %963 = vmatpush1.bf16.msra.mxu0 0
        %964 = vmatprep.subr.bf16.mxu0 0
        %965 = vmatpush1.bf16.msra.mxu0 0
        %966 = vmatprep.subr.bf16.mxu0 0
        %967 = vmatpush1.bf16.msra.mxu0 0
        %968 = vmatprep.subr.bf16.mxu0 0
        %969 = vmatpush1.bf16.msra.mxu0 0
        %970 = vmatprep.subr.bf16.mxu0 0
        %971 = vmatpush1.bf16.msra.mxu0 0
        %972 = vmatprep.subr.bf16.mxu0 0
        %973 = vmatpush1.bf16.msra.mxu0 0
        %974 = vmatprep.subr.bf16.mxu0 0
        %975 = vmatpush1.bf16.msra.mxu0 0
        %976 = vmatprep.subr.bf16.mxu0 0
        %977 = vmatpush1.bf16.msra.mxu0 0
        %978 = vmatprep.subr.bf16.mxu0 0
        %979 = vmatpush1.bf16.msra.mxu0 0
        %980 = vmatprep.mubr.bf16.mxu0 0
        %981 = vmatmul.mubr.bf16.gmra.mrb[0].mxu0 %v943
        %v982 = vpop.f32.mrb[0].mxu0
        %v983 = vadd.f32 0.0, %v982
        %v984 = vpop.f32.mrb[0].mxu0
        %v985 = vpop.f32.mrb[0].mxu0
        %v986 = vpop.f32.mrb[0].mxu0
        %987 = vdwg.mxu0
        %v989 = vsel %vm714, %v821, 0
        %v992 = vsel %vm775, %v823, 0
        %994 = vmatprep.subr.bf16.mxu0 0
        %995 = vmatpush1.bf16.msra.mxu0 %v992
        %996 = vmatprep.subr.bf16.mxu0 0
        %997 = vmatpush1.bf16.msra.mxu0 0
        %998 = vmatprep.subr.bf16.mxu0 0
        %999 = vmatpush1.bf16.msra.mxu0 0
        %1000 = vmatprep.subr.bf16.mxu0 0
        %1001 = vmatpush1.bf16.msra.mxu0 0
        %1002 = vmatprep.subr.bf16.mxu0 0
        %1003 = vmatpush1.bf16.msra.mxu0 0
        %1004 = vmatprep.subr.bf16.mxu0 0
        %1005 = vmatpush1.bf16.msra.mxu0 0
        %1006 = vmatprep.subr.bf16.mxu0 0
        %1007 = vmatpush1.bf16.msra.mxu0 0
        %1008 = vmatprep.subr.bf16.mxu0 0
        %1009 = vmatpush1.bf16.msra.mxu0 0
        %1010 = vmatprep.subr.bf16.mxu0 0
        %1011 = vmatpush1.bf16.msra.mxu0 0
        %1012 = vmatprep.subr.bf16.mxu0 0
        %1013 = vmatpush1.bf16.msra.mxu0 0
        %1014 = vmatprep.subr.bf16.mxu0 0
        %1015 = vmatpush1.bf16.msra.mxu0 0
        %1016 = vmatprep.subr.bf16.mxu0 0
        %1017 = vmatpush1.bf16.msra.mxu0 0
        %1018 = vmatprep.subr.bf16.mxu0 0
        %1019 = vmatpush1.bf16.msra.mxu0 0
        %1020 = vmatprep.subr.bf16.mxu0 0
        %1021 = vmatpush1.bf16.msra.mxu0 0
        %1022 = vmatprep.subr.bf16.mxu0 0
        %1023 = vmatpush1.bf16.msra.mxu0 0
        %1024 = vmatprep.subr.bf16.mxu0 0
        %1025 = vmatpush1.bf16.msra.mxu0 0
        %1026 = vmatprep.mubr.bf16.mxu0 0
        %1027 = vmatmul.mubr.bf16.gmra.mrb[0].mxu0 %v989
        %v1028 = vpop.f32.mrb[0].mxu0
        %v1029 = vadd.f32 %v983, %v1028
        %v1030 = vpop.f32.mrb[0].mxu0
        %v1031 = vpop.f32.mrb[0].mxu0
        %v1032 = vpop.f32.mrb[0].mxu0
        %1033 = vdwg.mxu0
        %1034 = vrot.lane.b32.xlu0 %v606, 112
        %v1035 = vpop.permute.xlu0 %1034
        %1036 = vrot.lane.b32.xlu0 %v657, 112
        %v1037 = vpop.permute.xlu0 %1036
        %v1039 = vsel %vm714, %v1035, 0
        %v1042 = vsel %vm714, %v1037, 0
        %1044 = vmatprep.subr.bf16.mxu0 0
        %1045 = vmatpush1.bf16.xpose.msra.mxu0 %v1042
        %1046 = vmatprep.subr.bf16.mxu0 0
        %1047 = vmatpush1.bf16.xpose.msra.mxu0 0
        %1048 = vmatprep.subr.bf16.mxu0 0
        %1049 = vmatpush1.bf16.xpose.msra.mxu0 0
        %1050 = vmatprep.subr.bf16.mxu0 0
        %1051 = vmatpush1.bf16.xpose.msra.mxu0 0
        %1052 = vmatprep.subr.bf16.mxu0 0
        %1053 = vmatpush1.bf16.xpose.msra.mxu0 0
        %1054 = vmatprep.subr.bf16.mxu0 0
        %1055 = vmatpush1.bf16.xpose.msra.mxu0 0
        %1056 = vmatprep.subr.bf16.mxu0 0
        %1057 = vmatpush1.bf16.xpose.msra.mxu0 0
        %1058 = vmatprep.subr.bf16.mxu0 0
        %1059 = vmatpush1.bf16.xpose.msra.mxu0 0
        %1060 = vmatprep.subr.bf16.mxu0 0
        %1061 = vmatpush1.bf16.xpose.msra.mxu0 0
        %1062 = vmatprep.subr.bf16.mxu0 0
        %1063 = vmatpush1.bf16.xpose.msra.mxu0 0
        %1064 = vmatprep.subr.bf16.mxu0 0
        %1065 = vmatpush1.bf16.xpose.msra.mxu0 0
        %1066 = vmatprep.subr.bf16.mxu0 0
        %1067 = vmatpush1.bf16.xpose.msra.mxu0 0
        %1068 = vmatprep.subr.bf16.mxu0 0
        %1069 = vmatpush1.bf16.xpose.msra.mxu0 0
        %1070 = vmatprep.subr.bf16.mxu0 0
        %1071 = vmatpush1.bf16.xpose.msra.mxu0 0
        %1072 = vmatprep.subr.bf16.mxu0 0
        %1073 = vmatpush1.bf16.xpose.msra.mxu0 0
        %1074 = vmatprep.subr.bf16.mxu0 0
        %1075 = vmatpush1.bf16.xpose.msra.mxu0 0
        %1076 = vmatprep.mubr.bf16.mxu0 0
        %1077 = vmatmul.mubr.bf16.gmra.mrb[0].mxu0 %v1039
        %v1078 = vpop.f32.mrb[0].mxu0
        %v1079 = vadd.f32 0.0, %v1078
        %v1080 = vpop.f32.mrb[0].mxu0
        %v1081 = vpop.f32.mrb[0].mxu0
        %v1082 = vpop.f32.mrb[0].mxu0
        %1083 = vdwg.mxu0
        %v1084 = vsel %vm713, -100.0, %v1079
        %v1085 = vsel %vm714, %v1084, -inf
        %1086 = vmax.xlane.f32.xlu0 %v1085
        %v1087 = vpop.xlane.xlu0 %1086
        %v1088 = vsub.f32 %v1084, %v1087
        %v1089 = vmul.f32 %v1088, 1.442695
        %v1090 = vpow.pop %v1089
        %v1091 = vsel %vm714, %v1090, 0.0
        %1092 = vadd.xlane.f32.xlu0 %v1091
        %v1093 = vpop.xlane.xlu0 %1092
        %v1094 = vpack.c.bf16 %v1090, %v1090
        %1095 = vrot.lane.b32.xlu0 %v708, 112
        %v1096 = vpop.permute.xlu0 %1095
        %v1098 = vsel %vm714, %v1094, 0
        %v1101 = vsel %vm775, %v1096, 0
        %1103 = vmatprep.subr.bf16.mxu0 0
        %1104 = vmatpush1.bf16.msra.mxu0 %v1101
        %1105 = vmatprep.subr.bf16.mxu0 0
        %1106 = vmatpush1.bf16.msra.mxu0 0
        %1107 = vmatprep.subr.bf16.mxu0 0
        %1108 = vmatpush1.bf16.msra.mxu0 0
        %1109 = vmatprep.subr.bf16.mxu0 0
        %1110 = vmatpush1.bf16.msra.mxu0 0
        %1111 = vmatprep.subr.bf16.mxu0 0
        %1112 = vmatpush1.bf16.msra.mxu0 0
        %1113 = vmatprep.subr.bf16.mxu0 0
        %1114 = vmatpush1.bf16.msra.mxu0 0
        %1115 = vmatprep.subr.bf16.mxu0 0
        %1116 = vmatpush1.bf16.msra.mxu0 0
        %1117 = vmatprep.subr.bf16.mxu0 0
        %1118 = vmatpush1.bf16.msra.mxu0 0
        %1119 = vmatprep.subr.bf16.mxu0 0
        %1120 = vmatpush1.bf16.msra.mxu0 0
        %1121 = vmatprep.subr.bf16.mxu0 0
        %1122 = vmatpush1.bf16.msra.mxu0 0
        %1123 = vmatprep.subr.bf16.mxu0 0
        %1124 = vmatpush1.bf16.msra.mxu0 0
        %1125 = vmatprep.subr.bf16.mxu0 0
        %1126 = vmatpush1.bf16.msra.mxu0 0
        %1127 = vmatprep.subr.bf16.mxu0 0
        %1128 = vmatpush1.bf16.msra.mxu0 0
        %1129 = vmatprep.subr.bf16.mxu0 0
        %1130 = vmatpush1.bf16.msra.mxu0 0
        %1131 = vmatprep.subr.bf16.mxu0 0
        %1132 = vmatpush1.bf16.msra.mxu0 0
        %1133 = vmatprep.subr.bf16.mxu0 0
        %1134 = vmatpush1.bf16.msra.mxu0 0
        %1135 = vmatprep.mubr.bf16.mxu0 0
        %1136 = vmatmul.mubr.bf16.gmra.mrb[0].mxu0 %v1098
        %v1137 = vpop.f32.mrb[0].mxu0
        %v1138 = vadd.f32 0.0, %v1137
        %v1139 = vpop.f32.mrb[0].mxu0
        %v1140 = vpop.f32.mrb[0].mxu0
        %v1141 = vpop.f32.mrb[0].mxu0
        %1142 = vdwg.mxu0
        %v1143 = vrcp.pop %v1093
        %v1144 = vmul.f32 %v1138, %v1143
        %v1145 = vpack.c.bf16 %v1144, %v1144
        %s1146 = scalar_lea.vmem %s9, 16
        %v1147 = vld [vmem:[%s1146] sm:$0xff]
        %v1148 = vpack.c.bf16 %v1147, %v1147
        %v1150 = vsel %vm714, %v1145, 0
        %v1153 = vsel %vm775, %v1148, 0
        %1155 = vmatprep.subr.bf16.mxu0 0
        %1156 = vmatpush1.bf16.msra.mxu0 %v1153
        %1157 = vmatprep.subr.bf16.mxu0 0
        %1158 = vmatpush1.bf16.msra.mxu0 0
        %1159 = vmatprep.subr.bf16.mxu0 0
        %1160 = vmatpush1.bf16.msra.mxu0 0
        %1161 = vmatprep.subr.bf16.mxu0 0
        %1162 = vmatpush1.bf16.msra.mxu0 0
        %1163 = vmatprep.subr.bf16.mxu0 0
        %1164 = vmatpush1.bf16.msra.mxu0 0
        %1165 = vmatprep.subr.bf16.mxu0 0
        %1166 = vmatpush1.bf16.msra.mxu0 0
        %1167 = vmatprep.subr.bf16.mxu0 0
        %1168 = vmatpush1.bf16.msra.mxu0 0
        %1169 = vmatprep.subr.bf16.mxu0 0
        %1170 = vmatpush1.bf16.msra.mxu0 0
        %1171 = vmatprep.subr.bf16.mxu0 0
        %1172 = vmatpush1.bf16.msra.mxu0 0
        %1173 = vmatprep.subr.bf16.mxu0 0
        %1174 = vmatpush1.bf16.msra.mxu0 0
        %1175 = vmatprep.subr.bf16.mxu0 0
        %1176 = vmatpush1.bf16.msra.mxu0 0
        %1177 = vmatprep.subr.bf16.mxu0 0
        %1178 = vmatpush1.bf16.msra.mxu0 0
        %1179 = vmatprep.subr.bf16.mxu0 0
        %1180 = vmatpush1.bf16.msra.mxu0 0
        %1181 = vmatprep.subr.bf16.mxu0 0
        %1182 = vmatpush1.bf16.msra.mxu0 0
        %1183 = vmatprep.subr.bf16.mxu0 0
        %1184 = vmatpush1.bf16.msra.mxu0 0
        %1185 = vmatprep.subr.bf16.mxu0 0
        %1186 = vmatpush1.bf16.msra.mxu0 0
        %1187 = vmatprep.mubr.bf16.mxu0 0
        %1188 = vmatmul.mubr.bf16.gmra.mrb[0].mxu0 %v1150
        %v1189 = vpop.f32.mrb[0].mxu0
        %v1190 = vadd.f32 0.0, %v1189
        %v1191 = vpop.f32.mrb[0].mxu0
        %v1192 = vpop.f32.mrb[0].mxu0
        %v1193 = vpop.f32.mrb[0].mxu0
        %1194 = vdwg.mxu0
        %v1195 = vadd.f32 %v1029, %v1190
        %1196 = vrot.lane.b32.xlu0 %v606, 104
        %v1197 = vpop.permute.xlu0 %1196
        %1198 = vrot.lane.b32.xlu0 %v657, 104
        %v1199 = vpop.permute.xlu0 %1198
        %v1201 = vsel %vm714, %v1197, 0
        %v1204 = vsel %vm714, %v1199, 0
        %1206 = vmatprep.subr.bf16.mxu0 0
        %1207 = vmatpush1.bf16.xpose.msra.mxu0 %v1204
        %1208 = vmatprep.subr.bf16.mxu0 0
        %1209 = vmatpush1.bf16.xpose.msra.mxu0 0
        %1210 = vmatprep.subr.bf16.mxu0 0
        %1211 = vmatpush1.bf16.xpose.msra.mxu0 0
        %1212 = vmatprep.subr.bf16.mxu0 0
        %1213 = vmatpush1.bf16.xpose.msra.mxu0 0
        %1214 = vmatprep.subr.bf16.mxu0 0
        %1215 = vmatpush1.bf16.xpose.msra.mxu0 0
        %1216 = vmatprep.subr.bf16.mxu0 0
        %1217 = vmatpush1.bf16.xpose.msra.mxu0 0
        %1218 = vmatprep.subr.bf16.mxu0 0
        %1219 = vmatpush1.bf16.xpose.msra.mxu0 0
        %1220 = vmatprep.subr.bf16.mxu0 0
        %1221 = vmatpush1.bf16.xpose.msra.mxu0 0
        %1222 = vmatprep.subr.bf16.mxu0 0
        %1223 = vmatpush1.bf16.xpose.msra.mxu0 0
        %1224 = vmatprep.subr.bf16.mxu0 0
        %1225 = vmatpush1.bf16.xpose.msra.mxu0 0
        %1226 = vmatprep.subr.bf16.mxu0 0
        %1227 = vmatpush1.bf16.xpose.msra.mxu0 0
        %1228 = vmatprep.subr.bf16.mxu0 0
        %1229 = vmatpush1.bf16.xpose.msra.mxu0 0
        %1230 = vmatprep.subr.bf16.mxu0 0
        %1231 = vmatpush1.bf16.xpose.msra.mxu0 0
        %1232 = vmatprep.subr.bf16.mxu0 0
        %1233 = vmatpush1.bf16.xpose.msra.mxu0 0
        %1234 = vmatprep.subr.bf16.mxu0 0
        %1235 = vmatpush1.bf16.xpose.msra.mxu0 0
        %1236 = vmatprep.subr.bf16.mxu0 0
        %1237 = vmatpush1.bf16.xpose.msra.mxu0 0
        %1238 = vmatprep.mubr.bf16.mxu0 0
        %1239 = vmatmul.mubr.bf16.gmra.mrb[0].mxu0 %v1201
        %v1240 = vpop.f32.mrb[0].mxu0
        %v1241 = vadd.f32 0.0, %v1240
        %v1242 = vpop.f32.mrb[0].mxu0
        %v1243 = vpop.f32.mrb[0].mxu0
        %v1244 = vpop.f32.mrb[0].mxu0
        %1245 = vdwg.mxu0
        %v1246 = vsel %vm713, -100.0, %v1241
        %v1247 = vsel %vm714, %v1246, -inf
        %1248 = vmax.xlane.f32.xlu0 %v1247
        %v1249 = vpop.xlane.xlu0 %1248
        %v1250 = vsub.f32 %v1246, %v1249
        %v1251 = vmul.f32 %v1250, 1.442695
        %v1252 = vpow.pop %v1251
        %v1253 = vsel %vm714, %v1252, 0.0
        %1254 = vadd.xlane.f32.xlu0 %v1253
        %v1255 = vpop.xlane.xlu0 %1254
        %v1256 = vpack.c.bf16 %v1252, %v1252
        %1257 = vrot.lane.b32.xlu0 %v708, 104
        %v1258 = vpop.permute.xlu0 %1257
        %v1260 = vsel %vm714, %v1256, 0
        %v1263 = vsel %vm775, %v1258, 0
        %1265 = vmatprep.subr.bf16.mxu0 0
        %1266 = vmatpush1.bf16.msra.mxu0 %v1263
        %1267 = vmatprep.subr.bf16.mxu0 0
        %1268 = vmatpush1.bf16.msra.mxu0 0
        %1269 = vmatprep.subr.bf16.mxu0 0
        %1270 = vmatpush1.bf16.msra.mxu0 0
        %1271 = vmatprep.subr.bf16.mxu0 0
        %1272 = vmatpush1.bf16.msra.mxu0 0
        %1273 = vmatprep.subr.bf16.mxu0 0
        %1274 = vmatpush1.bf16.msra.mxu0 0
        %1275 = vmatprep.subr.bf16.mxu0 0
        %1276 = vmatpush1.bf16.msra.mxu0 0
        %1277 = vmatprep.subr.bf16.mxu0 0
        %1278 = vmatpush1.bf16.msra.mxu0 0
        %1279 = vmatprep.subr.bf16.mxu0 0
        %1280 = vmatpush1.bf16.msra.mxu0 0
        %1281 = vmatprep.subr.bf16.mxu0 0
        %1282 = vmatpush1.bf16.msra.mxu0 0
        %1283 = vmatprep.subr.bf16.mxu0 0
        %1284 = vmatpush1.bf16.msra.mxu0 0
        %1285 = vmatprep.subr.bf16.mxu0 0
        %1286 = vmatpush1.bf16.msra.mxu0 0
        %1287 = vmatprep.subr.bf16.mxu0 0
        %1288 = vmatpush1.bf16.msra.mxu0 0
        %1289 = vmatprep.subr.bf16.mxu0 0
        %1290 = vmatpush1.bf16.msra.mxu0 0
        %1291 = vmatprep.subr.bf16.mxu0 0
        %1292 = vmatpush1.bf16.msra.mxu0 0
        %1293 = vmatprep.subr.bf16.mxu0 0
        %1294 = vmatpush1.bf16.msra.mxu0 0
        %1295 = vmatprep.subr.bf16.mxu0 0
        %1296 = vmatpush1.bf16.msra.mxu0 0
        %1297 = vmatprep.mubr.bf16.mxu0 0
        %1298 = vmatmul.mubr.bf16.gmra.mrb[0].mxu0 %v1260
        %v1299 = vpop.f32.mrb[0].mxu0
        %v1300 = vadd.f32 0.0, %v1299
        %v1301 = vpop.f32.mrb[0].mxu0
        %v1302 = vpop.f32.mrb[0].mxu0
        %v1303 = vpop.f32.mrb[0].mxu0
        %1304 = vdwg.mxu0
        %v1305 = vrcp.pop %v1255
        %v1306 = vmul.f32 %v1300, %v1305
        %v1307 = vpack.c.bf16 %v1306, %v1306
        %s1308 = scalar_lea.vmem %s9, 24
        %v1309 = vld [vmem:[%s1308] sm:$0xff]
        %v1310 = vpack.c.bf16 %v1309, %v1309
        %v1312 = vsel %vm714, %v1307, 0
        %v1315 = vsel %vm775, %v1310, 0
        %1317 = vmatprep.subr.bf16.mxu0 0
        %1318 = vmatpush1.bf16.msra.mxu0 %v1315
        %1319 = vmatprep.subr.bf16.mxu0 0
        %1320 = vmatpush1.bf16.msra.mxu0 0
        %1321 = vmatprep.subr.bf16.mxu0 0
        %1322 = vmatpush1.bf16.msra.mxu0 0
        %1323 = vmatprep.subr.bf16.mxu0 0
        %1324 = vmatpush1.bf16.msra.mxu0 0
        %1325 = vmatprep.subr.bf16.mxu0 0
        %1326 = vmatpush1.bf16.msra.mxu0 0
        %1327 = vmatprep.subr.bf16.mxu0 0
        %1328 = vmatpush1.bf16.msra.mxu0 0
        %1329 = vmatprep.subr.bf16.mxu0 0
        %1330 = vmatpush1.bf16.msra.mxu0 0
        %1331 = vmatprep.subr.bf16.mxu0 0
        %1332 = vmatpush1.bf16.msra.mxu0 0
        %1333 = vmatprep.subr.bf16.mxu0 0
        %1334 = vmatpush1.bf16.msra.mxu0 0
        %1335 = vmatprep.subr.bf16.mxu0 0
        %1336 = vmatpush1.bf16.msra.mxu0 0
        %1337 = vmatprep.subr.bf16.mxu0 0
        %1338 = vmatpush1.bf16.msra.mxu0 0
        %1339 = vmatprep.subr.bf16.mxu0 0
        %1340 = vmatpush1.bf16.msra.mxu0 0
        %1341 = vmatprep.subr.bf16.mxu0 0
        %1342 = vmatpush1.bf16.msra.mxu0 0
        %1343 = vmatprep.subr.bf16.mxu0 0
        %1344 = vmatpush1.bf16.msra.mxu0 0
        %1345 = vmatprep.subr.bf16.mxu0 0
        %1346 = vmatpush1.bf16.msra.mxu0 0
        %1347 = vmatprep.subr.bf16.mxu0 0
        %1348 = vmatpush1.bf16.msra.mxu0 0
        %1349 = vmatprep.mubr.bf16.mxu0 0
        %1350 = vmatmul.mubr.bf16.gmra.mrb[0].mxu0 %v1312
        %v1351 = vpop.f32.mrb[0].mxu0
        %v1352 = vadd.f32 0.0, %v1351
        %v1353 = vpop.f32.mrb[0].mxu0
        %v1354 = vpop.f32.mrb[0].mxu0
        %v1355 = vpop.f32.mrb[0].mxu0
        %1356 = vdwg.mxu0
        %v1357 = vadd.f32 %v1195, %v1352
        %v1358 = vld [vmem:[%s10] sm:$0x1]
        %v1360 = vlaneseq
        %v1361 = vshrl.u32 %v1360, 7
        %v1362 = vsub.s32 0, %v1361
        %v1363 = vrot.slane %v1358, %v1362
        %v1365 = vadd.f32 %v1357, %v1363
        %1366 = vst.msk [vmem:[%s528] sm:$0xff] %vm561, %v1365
        %s1367 = sand.u32 %s287, 1
        %s1368 = scalar_lea.sflag [#allocation4], %s1367
        %s1369 = sand.u32 %s287, 1
        %s1370 = smul.addr %s1369, 8
        %s1371 = scalar_lea.vmem [#allocation14], %s1370
        // Predicated region
        $region93: #{tpu_custom_call.1} parent=63 // pred_check
          %p1372 = pneg %p297
        $region94: #{tpu_custom_call.1} parent=63 // pred_check_branch
          %1374 = sbr.rel (%p1372) target = $region96
        $region95: #{tpu_custom_call.1} parent=63 // pred_region
          %s1376 = ssub.s32 128, 128
          %1377 = vsyncadd %s1368, %s1376
          %s1378 = smul.addr %s33, 128
          %s1379 = scalar_lea.hbm %s11, %s1378
          %s1381 = sshll.u32 %s1371, 4
          %s1382 = int_to_ptr.vmem [resolvable:$true] %s1381
          %1384 = dma.vmem_to_hbm [thread:$0]  %s1382, 128, %s1379, %s1368
        $region96: #{tpu_custom_call.1} parent=63 // pred_fallthru
          _
      $region64: #{tpu_custom_call.1} parent=5 // pred_fallthru
        _
      %p1385 = scmp.le.s32.totalorder 2, %s28
      // Predicated region
      $region97: #{tpu_custom_call.1} parent=5 // pred_check
        %p1386 = pneg %p1385
      $region98: #{tpu_custom_call.1} parent=5 // pred_check_branch
        %1388 = sbr.rel (%p1386) target = $region100
      $region99: #{tpu_custom_call.1} parent=5 // pred_region
        %s1389 = ssub.s32 %s28, 2
        // Predicated region
        $region101: #{tpu_custom_call.1} parent=99 // pred_check
          %p1390 = pneg %p303
        $region102: #{tpu_custom_call.1} parent=99 // pred_check_branch
          %1392 = sbr.rel (%p1390) target = $region104
        $region103: #{tpu_custom_call.1} parent=99 // pred_region
          %s1393 = sand.u32 %s288, 1
          %s1394 = scalar_lea.sflag [#allocation4], %s1393
          %s1395 = sand.u32 %s288, 1
          %s1396 = smul.addr %s1395, 8
          %s1397 = scalar_lea.vmem [#allocation14], %s1396
          %1398 = dma.done %s1394, 128
        $region104: #{tpu_custom_call.1} parent=99 // pred_fallthru
          _
      $region100: #{tpu_custom_call.1} parent=5 // pred_fallthru
        _
    $region6: #{tpu_custom_call.1} parent=1 // loop_footer
      %s32 = sadd.s32 1, %s28
    $region7: #{tpu_custom_call.1} parent=1 // loop_footer_branch
      %27 = sbr.rel target = $region3
    $region8: #{tpu_custom_call.1} parent=1 // loop_exit
      _
    %1399 = vsyncpa [#allocation3], 1
    %s1400 = scalar_lea.sflag [#allocation3], 1
    %1401 = vsyncpa %s1400, 1
    %1402 = vsyncpa [#allocation6], 1
    %s1403 = scalar_lea.sflag [#allocation6], 1
    %1404 = vsyncpa %s1403, 1
    %1405 = vsyncpa [#allocation9], 1
    %1406 = vsyncpa [#allocation12], 1
    %1407 = vsyncpa [#allocation4], 1
    %s1408 = scalar_lea.sflag [#allocation4], 1
    %1409 = vsyncpa %s1408, 1

</llo_original>
